<compile_context>
chip_gen: v7x
topology: tpu7x:2x2x1
jax: 0.10.0
libtpu: 0.0.40
codegen_flags: <defaults>
</compile_context>

<pallas_src>
import functools
import math

import jax
import jax.numpy as jnp
from jax import lax
from jax.experimental import pallas as pl
from jax.experimental.pallas import tpu as pltpu


def _round_up(n, m):
    return ((n + m - 1) // m) * m


def _pick_time_chunk(T, Bp, Hp, e_total, budget_bytes=40 << 20):
    """Largest time chunk whose streamed buffers (double-buffered x/y, xw scratch and
    phase-1 temporaries) plus resident weights fit a ~40 MiB budget (v7x-safe)."""
    per_step = 4 * Bp * (4 * e_total + 20 * Hp)          # bytes per chunk timestep
    weights = 4 * 4 * (e_total + Hp) * 4 * Hp            # W_ih + W_hh (2 dirs x 2 buffers)
    avail = max(budget_bytes - weights, per_step)
    tc = int(max(1, min(T, avail // per_step)))
    if tc < T:
        # prefer a divisor of T (no padded timesteps / no ragged masking)
        for d in range(tc, max(tc // 2, 1) - 1, -1):
            if T % d == 0:
                return d
    return tc


# ----------------------------------------------------------------------------
# Pallas kernels
# ----------------------------------------------------------------------------
def bilstm_kernel(*refs, T, TC, Bp, Hp, n_parts, ragged, unroll):
    """Both LSTM directions, one time chunk per grid step.

    Ref layout (inputs, outputs, scratch):
      [x_p fwd-chunk, x_p rev-chunk]*n_parts   (TC*Bp, E_p)  streamed per chunk
      [wih_p]*n_parts                          (2, E_p, 4Hp) resident
      whh (2, Hp, 4Hp), b (2, 1, 4Hp)          resident
      y_fwd, y_rev                             (TC*Bp, Hp)   written per chunk
      h, c                                     (2, Bp, Hp)   resident accumulators (carry)
      xw_f, xw_r                               (TC*Bp, 4Hp)  VMEM scratch
    """
    xs = refs[:2 * n_parts]
    wih = refs[2 * n_parts:3 * n_parts]
    whh_ref = refs[3 * n_parts]
    b_ref = refs[3 * n_parts + 1]
    yf_ref = refs[3 * n_parts + 2]
    yr_ref = refs[3 * n_parts + 3]
    h_ref = refs[3 * n_parts + 4]
    c_ref = refs[3 * n_parts + 5]
    xwf_ref = refs[3 * n_parts + 6]
    xwr_ref = refs[3 * n_parts + 7]

    t = pl.program_id(0)
    nc = pl.num_programs(0)

    # ---- zero initial state at the first chunk (PyTorch default h0 = c0 = 0)
    @pl.when(t == 0)
    def _():
        h_ref[...] = jnp.zeros_like(h_ref)
        c_ref[...] = jnp.zeros_like(c_ref)

    if ragged:
        # the reverse direction's (only) partial chunk is processed at grid step 0:
        # rows past T in that y block are never written by the loop -> make them deterministic
        @pl.when(t == 0)
        def _():
            yr_ref[...] = jnp.zeros_like(yr_ref)

    # ---- Phase 1: hoisted input projection (+bias) for this chunk, both directions.
    #      One big MXU matmul per direction; only h @ W_hh stays inside the recurrence.
    xwf_ref[...] = jnp.dot(xs[0][...], wih[0][0],
                           preferred_element_type=jnp.float32) + b_ref[0]
    xwr_ref[...] = jnp.dot(xs[1][...], wih[0][1],
                           preferred_element_type=jnp.float32) + b_ref[1]
    for p in range(1, n_parts):
        xwf_ref[...] += jnp.dot(xs[2 * p][...], wih[p][0],
                                preferred_element_type=jnp.float32)
        xwr_ref[...] += jnp.dot(xs[2 * p + 1][...], wih[p][1],
                                preferred_element_type=jnp.float32)

    # ---- Phase 2: serial recurrence, fwd + rev interleaved in ONE loop so their two
    #      independent (Bp,Hp)x(Hp,4Hp) matmuls overlap on a single TensorCore.
    whh_f = whh_ref[0]
    whh_r = whh_ref[1]
    if ragged:
        nf = jnp.minimum(TC, T - t * TC)                 # valid fwd steps in this chunk
        nb = jnp.minimum(TC, T - (nc - 1 - t) * TC)      # valid rev steps in this chunk
    else:
        nf = nb = TC

    def cell(gates, c_prev):
        # kernel gate order [i, f, o, g]: one sigmoid over 3*Hp + one tanh over Hp
        sg = jax.nn.sigmoid(gates[:, :3 * Hp])
        i_g = sg[:, 0 * Hp:1 * Hp]
        f_g = sg[:, 1 * Hp:2 * Hp]
        o_g = sg[:, 2 * Hp:3 * Hp]
        g_g = jnp.tanh(gates[:, 3 * Hp:4 * Hp])
        c_new = f_g * c_prev + i_g * g_g
        h_new = o_g * jnp.tanh(c_new)
        return h_new, c_new

    def step(s, carry):
        h_f, c_f, h_r, c_r = carry

        # forward: local row s (time increases)
        row_f = pl.multiple_of(s * Bp, Bp)
        g_f = xwf_ref[pl.ds(row_f, Bp), :] + jnp.dot(
            h_f, whh_f, preferred_element_type=jnp.float32)

        # reverse: local row counts down inside the (mirrored) chunk
        s_r = nb - 1 - s
        if ragged:
            s_r = jnp.maximum(s_r, 0)
        row_r = pl.multiple_of(s_r * Bp, Bp)
        g_r = xwr_ref[pl.ds(row_r, Bp), :] + jnp.dot(
            h_r, whh_r, preferred_element_type=jnp.float32)

        h_f_new, c_f_new = cell(g_f, c_f)
        h_r_new, c_r_new = cell(g_r, c_r)

        if ragged:  # mask state updates on padded timesteps (partial chunk only)
            h_f_new = jnp.where(s < nf, h_f_new, h_f)
            c_f_new = jnp.where(s < nf, c_f_new, c_f)
            h_r_new = jnp.where(s < nb, h_r_new, h_r)
            c_r_new = jnp.where(s < nb, c_r_new, c_r)

        yf_ref[pl.ds(row_f, Bp), :] = h_f_new
        yr_ref[pl.ds(row_r, Bp), :] = h_r_new
        return (h_f_new, c_f_new, h_r_new, c_r_new)

    carry0 = (h_ref[0], c_ref[0], h_ref[1], c_ref[1])
    h_f, c_f, h_r, c_r = lax.fori_loop(0, TC, step, carry0, unroll=unroll)

    # carried state lives in the resident output blocks (constant index_map)
    h_ref[0] = h_f
    c_ref[0] = c_f
    h_ref[1] = h_r
    c_ref[1] = c_r


def seq_head_kernel(yf_ref, yr_ref, wt_ref, wb_ref, b_ref, o_ref):
    """Sequence-output rows of the shared Linear: NO tanh (matches `output = linear(output)`)."""
    o_ref[...] = (
        jnp.dot(yf_ref[...], wt_ref[...], preferred_element_type=jnp.float32)
        + jnp.dot(yr_ref[...], wb_ref[...], preferred_element_type=jnp.float32)
        + b_ref[...]
    ).astype(o_ref.dtype)


def hc_head_kernel(h_ref, c_ref, wt_ref, wb_ref, b_ref, o_ref):
    """tanh(linear(cat(h_fwd, h_bwd))) and tanh(linear(cat(c_fwd, c_bwd))) — tiny."""
    wt = wt_ref[...]
    wb = wb_ref[...]
    bias = b_ref[...]
    hid = (jnp.dot(h_ref[0], wt, preferred_element_type=jnp.float32)
           + jnp.dot(h_ref[1], wb, preferred_element_type=jnp.float32) + bias)
    cel = (jnp.dot(c_ref[0], wt, preferred_element_type=jnp.float32)
           + jnp.dot(c_ref[1], wb, preferred_element_type=jnp.float32) + bias)
    o_ref[0] = jnp.tanh(hid)
    o_ref[1] = jnp.tanh(cel)


# ----------------------------------------------------------------------------
# Wrappers around pallas_call
# ----------------------------------------------------------------------------
def bilstm_layer(x_parts, T, TC, nc, Bp, Hp, wih_parts, whh, b):
    """Fused bidirectional LSTM layer, streamed over time chunks.

    x_parts   : list of (T_pad*Bp, E_p) time-major row-flattened feature parts
    wih_parts : list of (2, E_p, 4Hp) per-direction W_ih^T parts (gate-padded)
    whh       : (2, Hp, 4Hp);  b : (2, 1, 4Hp)
    Returns y_fwd (T_pad*Bp, Hp), y_rev (T_pad*Bp, Hp), h (2, Bp, Hp), c (2, Bp, Hp).
    """
    n_parts = len(x_parts)
    TCB = TC * Bp
    TB = nc * TCB
    ragged = (nc * TC != T)
    unroll = True if TC <= 16 else 8

    in_specs = []
    args = []
    for xp in x_parts:
        E_p = int(xp.shape[1])
        in_specs.append(pl.BlockSpec((TCB, E_p), lambda t: (t, 0)))                  # fwd chunk
        in_specs.append(pl.BlockSpec((TCB, E_p), lambda t, _n=nc: (_n - 1 - t, 0)))  # mirrored chunk
        args += [xp, xp]
    for wp in wih_parts:
        in_specs.append(pl.BlockSpec(tuple(wp.shape), lambda t: (0, 0, 0)))
        args.append(wp)
    in_specs += [pl.BlockSpec(tuple(whh.shape), lambda t: (0, 0, 0)),
                 pl.BlockSpec(tuple(b.shape), lambda t: (0, 0, 0))]
    args += [whh, b]

    e_total = sum(int(xp.shape[1]) for xp in x_parts)
    vmem_bytes = 4 * (4 * TCB * e_total              # x tiles: 2 dirs x 2 buffers
                      + 4 * TCB * Hp                 # y tiles: 2 dirs x 2 buffers
                      + 4 * TCB * 4 * Hp             # xw scratch (2 dirs) + phase-1 temps
                      + 4 * (e_total + Hp) * 4 * Hp  # W_ih / W_hh: 2 dirs x 2 buffers
                      + 8 * Bp * Hp + 8 * Hp)        # h/c accumulators + bias
    vmem_limit = int(min(max(vmem_bytes + (4 << 20), 16 << 20), 48 << 20))

    y_f, y_r, h, c = pl.pallas_call(
        functools.partial(bilstm_kernel, T=T, TC=TC, Bp=Bp, Hp=Hp,
                          n_parts=n_parts, ragged=ragged, unroll=unroll),
        out_shape=(jax.ShapeDtypeStruct((TB, Hp), jnp.float32),
                   jax.ShapeDtypeStruct((TB, Hp), jnp.float32),
                   jax.ShapeDtypeStruct((2, Bp, Hp), jnp.float32),
                   jax.ShapeDtypeStruct((2, Bp, Hp), jnp.float32)),
        grid=(nc,),
        in_specs=in_specs,
        out_specs=(pl.BlockSpec((TCB, Hp), lambda t: (t, 0)),
                   pl.BlockSpec((TCB, Hp), lambda t, _n=nc: (_n - 1 - t, 0)),
                   pl.BlockSpec((2, Bp, Hp), lambda t: (0, 0, 0)),
                   pl.BlockSpec((2, Bp, Hp), lambda t: (0, 0, 0))),
        scratch_shapes=[pltpu.VMEM((TCB, 4 * Hp), jnp.float32),
                        pltpu.VMEM((TCB, 4 * Hp), jnp.float32)],
        compiler_params=pltpu.CompilerParams(
            dimension_semantics=("arbitrary",),      # serial recurrence over time chunks
            vmem_limit_bytes=vmem_limit),
    )(*args)
    return y_f, y_r, h, c


def seq_head(y_f, y_r, w_top, w_bot, b, block_rows=512):
    """Row-tiled, pipelined y_f @ W_top + y_r @ W_bot + b over the whole sequence (no tanh)."""
    N, Hp = y_f.shape
    Hout = w_top.shape[1]
    block_rows = max(8, min(block_rows, _round_up(N, 8)))

    def _fp(br):  # approximate VMEM footprint (double-buffered tiles + resident weights)
        return 4 * (4 * br * Hp + 2 * br * Hout + 4 * Hp * Hout + 2 * Hout)

    while block_rows > 8 and _fp(block_rows) > (40 << 20):
        block_rows = _round_up(block_rows // 2, 8)

    grid = (pl.cdiv(N, block_rows),)
    vmem_limit = int(min(max(_fp(block_rows) + (2 << 20), 16 << 20), 48 << 20))
    return pl.pallas_call(
        seq_head_kernel,
        out_shape=jax.ShapeDtypeStruct((N, Hout), jnp.float32),
        grid=grid,
        in_specs=[pl.BlockSpec((block_rows, Hp), lambda i: (i, 0)),
                  pl.BlockSpec((block_rows, Hp), lambda i: (i, 0)),
                  pl.BlockSpec((Hp, Hout), lambda i: (0, 0)),
                  pl.BlockSpec((Hp, Hout), lambda i: (0, 0)),
                  pl.BlockSpec((1, Hout), lambda i: (0, 0))],
        out_specs=pl.BlockSpec((block_rows, Hout), lambda i: (i, 0)),
        compiler_params=pltpu.CompilerParams(
            dimension_semantics=("parallel",),
            vmem_limit_bytes=vmem_limit),
    )(y_f, y_r, w_top, w_bot, b)


def hc_head(h, c, w_top, w_bot, b):
    """Tiny tanh'ed heads for the final hidden and cell states."""
    _, Bp, Hp = h.shape
    Hout = w_top.shape[1]
    return pl.pallas_call(
        hc_head_kernel,
        out_shape=jax.ShapeDtypeStruct((2, Bp, Hout), jnp.float32),
        grid=(1,),
        in_specs=[pl.BlockSpec((2, Bp, Hp), lambda i: (0, 0, 0)),
                  pl.BlockSpec((2, Bp, Hp), lambda i: (0, 0, 0)),
                  pl.BlockSpec((Hp, Hout), lambda i: (0, 0)),
                  pl.BlockSpec((Hp, Hout), lambda i: (0, 0)),
                  pl.BlockSpec((1, Hout), lambda i: (0, 0))],
        out_specs=pl.BlockSpec((2, Bp, Hout), lambda i: (0, 0, 0)),
        compiler_params=pltpu.CompilerParams(
            dimension_semantics=("arbitrary",),
            vmem_limit_bytes=16 << 20),
    )(h, c, w_top, w_bot, b)


# ----------------------------------------------------------------------------
# Parameter init (deterministic, synthetic — no checkpoint load) + TPU padding
# ----------------------------------------------------------------------------
def init_params(key, vocab_size, embed_size, hidden_size, layer_num, lane=128):
    """PyTorch-equivalent synthetic weights, pre-padded/stacked for the kernels.

    Padding/packing (exactness preserved):
      * each gate's H columns are lane-padded to Hp=round_up(H,128) with zeros, so the
        padded hidden/cell units stay exactly 0 for all time;
      * gates are repacked from PyTorch order [i,f,g,o] to kernel order [i,f,o,g];
      * the per-direction feature halves of layer>0 W_ih and of the Linear are kept as
        separate row-blocks so the kernels can consume y_fwd / y_rev without a concat.
    """
    H = hidden_size
    Hp = _round_up(H, lane)
    params = {"hidden_size": H, "Hp": Hp}

    key, sub = jax.random.split(key)
    params["embedding"] = jax.random.normal(sub, (vocab_size, embed_size), jnp.float32)

    perm = jnp.array([0, 1, 3, 2])   # [i,f,g,o] -> [i,f,o,g]

    def pack_gates(w):  # (..., 4H) -> (..., 4Hp)
        lead = w.shape[:-1]
        w4 = w.reshape(lead + (4, H))[..., perm, :]
        w4 = jnp.pad(w4, [(0, 0)] * len(lead) + [(0, 0), (0, Hp - H)])
        return w4.reshape(lead + (4 * Hp,))

    k = 1.0 / math.sqrt(H)
    layers = []
    for l in range(layer_num):
        d_in = embed_size if l == 0 else 2 * H
        wih_per_dir, whhs, bs = [], [], []
        for _ in range(2):  # forward, reverse
            key, k1, k2, k3, k4 = jax.random.split(key, 5)
            w_ih_t = jax.random.uniform(k1, (d_in, 4 * H), jnp.float32, -k, k)  # W_ih^T
            w_hh_t = jax.random.uniform(k2, (H, 4 * H), jnp.float32, -k, k)     # W_hh^T
            b_ih = jax.random.uniform(k3, (4 * H,), jnp.float32, -k, k)
            b_hh = jax.random.uniform(k4, (4 * H,), jnp.float32, -k, k)

            w_ih_p = pack_gates(w_ih_t)                       # (d_in, 4Hp)
            if l == 0:
                parts = [w_ih_p]                              # single E-wide part
            else:                                             # fwd-feature rows / bwd-feature rows
                top = jnp.zeros((Hp, 4 * Hp), jnp.float32).at[:H].set(w_ih_p[:H])
                bot = jnp.zeros((Hp, 4 * Hp), jnp.float32).at[:H].set(w_ih_p[H:2 * H])
                parts = [top, bot]
            wih_per_dir.append(parts)
            whhs.append(jnp.zeros((Hp, 4 * Hp), jnp.float32).at[:H].set(pack_gates(w_hh_t)))
            bs.append(pack_gates(b_ih + b_hh)[None, :])
        n_parts = len(wih_per_dir[0])
        wih_parts = [jnp.stack([wih_per_dir[0][p], wih_per_dir[1][p]]) for p in range(n_parts)]
        layers.append({"wih_parts": wih_parts,                # list of (2, E_p, 4Hp)
                       "whh": jnp.stack(whhs),                # (2, Hp, 4Hp)
                       "b": jnp.stack(bs)})                   # (2, 1, 4Hp)
    params["lstm"] = layers

    key, k1, k2 = jax.random.split(key, 3)
    kl = 1.0 / math.sqrt(2 * H)
    lin_w_t = jax.random.uniform(k1, (2 * H, H), jnp.float32, -kl, kl)  # shared Linear W^T
    lin_b = jax.random.uniform(k2, (H,), jnp.float32, -kl, kl)
    params["lin_wt"] = jnp.zeros((Hp, Hp), jnp.float32).at[:H, :H].set(lin_w_t[:H])     # fwd rows
    params["lin_wb"] = jnp.zeros((Hp, Hp), jnp.float32).at[:H, :H].set(lin_w_t[H:2 * H])  # bwd rows
    params["lin_b"] = jnp.pad(lin_b, (0, Hp - H))[None, :]                              # (1, Hp)
    return params


# ----------------------------------------------------------------------------
# Encoder forward (mirrors the PyTorch module)
# ----------------------------------------------------------------------------
def encoder_forward(params, idxs, max_time_chunk=None):
    B, T = idxs.shape
    H, Hp = params["hidden_size"], params["Hp"]
    E = int(params["embedding"].shape[1])
    Bp = _round_up(B, 8)

    # embedding lookup (glue, plain JAX gather)
    embed = params["embedding"][idxs]                    # (B, T, E)
    x = jnp.transpose(embed, (1, 0, 2))                  # time-major (T, B, E)
    if Bp != B:
        x = jnp.pad(x, ((0, 0), (0, Bp - B), (0, 0)))    # sublane-pad the batch

    # time-chunked streaming: chunk sized from a per-core VMEM budget (v7x-safe)
    e_widest = max(E, 2 * Hp) if len(params["lstm"]) > 1 else E
    TC = _pick_time_chunk(T, Bp, Hp, e_widest)
    if max_time_chunk is not None:
        TC = max(1, min(TC, max_time_chunk))
    nc = -(-T // TC)
    T_pad = nc * TC
    if T_pad != T:                                       # only in the ragged case
        x = jnp.pad(x, ((0, T_pad - T), (0, 0), (0, 0)))
    x_parts = [x.reshape(T_pad * Bp, E)]

    y_f = y_r = h = c = None
    for layer in params["lstm"]:
        y_f, y_r, h, c = bilstm_layer(x_parts, T, TC, nc, Bp, Hp,
                                      layer["wih_parts"], layer["whh"], layer["b"])
        x_parts = [y_f, y_r]        # next layer consumes the two direction halves directly

    seq = seq_head(y_f, y_r, params["lin_wt"], params["lin_wb"], params["lin_b"])
    hc = hc_head(h, c, params["lin_wt"], params["lin_wb"], params["lin_b"])

    out_seq = seq.reshape(T_pad, Bp, Hp)[:T, :B, :H]     # strip time/batch/lane padding
    output = jnp.transpose(out_seq, (1, 0, 2))           # (B, T, H)
    out_hid = hc[0, :B, :H][None]                        # (1, B, H)
    out_cell = hc[1, :B, :H][None]                       # (1, B, H)
    return output, out_hid, out_cell


# ----------------------------------------------------------------------------
if __name__ == "__main__":
    VOCAB, EMBED, HIDDEN = 50, 32, 32

    key = jax.random.PRNGKey(0)

    # --- config 1: single bi-LSTM layer, B=2, T=8 (single time chunk)
    B, T, LAYERS = 2, 8, 1
    key, pkey, ikey = jax.random.split(key, 3)
    params = init_params(pkey, VOCAB, EMBED, HIDDEN, LAYERS)
    idxs = jax.random.randint(ikey, (B, T), 0, VOCAB, dtype=jnp.int32)
    output, out_hid, out_cell = encoder_forward(params, idxs)
    jax.block_until_ready((output, out_hid, out_cell))
    assert output.shape == (B, T, HIDDEN)
    assert out_hid.shape == (1, B, HIDDEN)
    assert out_cell.shape == (1, B, HIDDEN)
    assert bool(jnp.all(jnp.isfinite(output)))

    # --- config 2: 2 stacked layers, B=3, T=7, forced time chunking (nc=2, ragged last chunk)
    key, pkey2, ikey2 = jax.random.split(key, 3)
    params2 = init_params(pkey2, VOCAB, EMBED, HIDDEN, 2)
    B2, T2 = 3, 7
    idxs2 = jax.random.randint(ikey2, (B2, T2), 0, VOCAB, dtype=jnp.int32)
    out2, hid2, cell2 = encoder_forward(params2, idxs2, max_time_chunk=4)
    jax.block_until_ready((out2, hid2, cell2))
    assert out2.shape == (B2, T2, HIDDEN)
    assert hid2.shape == (1, B2, HIDDEN)
    assert cell2.shape == (1, B2, HIDDEN)
    assert bool(jnp.all(jnp.isfinite(out2)))

    print("KERNEL_OK")
</pallas_src>

<mosaic_0001>
module attributes {stable_mosaic.version = 11 : i64} {
  func.func @bilstm_kernel(%arg0: i32, %arg1: memref<64x32xf32, #tpu.memory_space<vmem>>, %arg2: memref<64x32xf32, #tpu.memory_space<vmem>>, %arg3: memref<2x32x512xf32, #tpu.memory_space<vmem>>, %arg4: memref<2x128x512xf32, #tpu.memory_space<vmem>>, %arg5: memref<2x1x512xf32, #tpu.memory_space<vmem>>, %arg6: memref<64x128xf32, #tpu.memory_space<vmem>>, %arg7: memref<64x128xf32, #tpu.memory_space<vmem>>, %arg8: memref<2x8x128xf32, #tpu.memory_space<vmem>>, %arg9: memref<2x8x128xf32, #tpu.memory_space<vmem>>, %arg10: memref<64x512xf32, #tpu.memory_space<vmem>>, %arg11: memref<64x512xf32, #tpu.memory_space<vmem>>) attributes {dimension_semantics = [#tpu.dimension_semantics<arbitrary>], iteration_bounds = array<i64: 1>, scalar_prefetch = 0 : i64, scratch_operands = 2 : i64, tpu.core_type = #tpu.core_type<tc>, window_params = [{transform_indices = @transform_0, window_bounds = array<i64: 64, 32>}, {transform_indices = @transform_1, window_bounds = array<i64: 64, 32>}, {pipeline_mode = #tpu.pipeline_mode<synchronous>, transform_indices = @transform_2, window_bounds = array<i64: 2, 32, 512>}, {pipeline_mode = #tpu.pipeline_mode<synchronous>, transform_indices = @transform_3, window_bounds = array<i64: 2, 128, 512>}, {pipeline_mode = #tpu.pipeline_mode<synchronous>, transform_indices = @transform_4, window_bounds = array<i64: 2, 1, 512>}, {transform_indices = @transform_5, window_bounds = array<i64: 64, 128>}, {transform_indices = @transform_6, window_bounds = array<i64: 64, 128>}, {pipeline_mode = #tpu.pipeline_mode<synchronous>, transform_indices = @transform_7, window_bounds = array<i64: 2, 8, 128>}, {pipeline_mode = #tpu.pipeline_mode<synchronous>, transform_indices = @transform_8, window_bounds = array<i64: 2, 8, 128>}]} {
    %c0_i32 = arith.constant 0 : i32
    %0 = arith.cmpi eq, %arg0, %c0_i32 : i32
    %1 = arith.extui %0 : i1 to i32
    %c0_i32_0 = arith.constant 0 : i32
    %2 = arith.cmpi ne, %1, %c0_i32_0 : i32
    scf.if %2 {
      %cst_139 = arith.constant 0.000000e+00 : f32
      %437 = vector.broadcast %cst_139 : f32 to vector<2x8x128xf32>
      %c0_140 = arith.constant 0 : index
      %c0_141 = arith.constant 0 : index
      %c0_142 = arith.constant 0 : index
      %438 = vector.load %arg8[%c0_140, %c0_141, %c0_142] : memref<2x8x128xf32, #tpu.memory_space<vmem>>, vector<2x8x128xf32>
      tpu.vector_store %arg8[%c0_140, %c0_141, %c0_142], %437 {strides = array<i32>} : memref<2x8x128xf32, #tpu.memory_space<vmem>>, vector<2x8x128xf32>,
      %cst_143 = arith.constant 0.000000e+00 : f32
      %439 = vector.broadcast %cst_143 : f32 to vector<2x8x128xf32>
      %c0_144 = arith.constant 0 : index
      %c0_145 = arith.constant 0 : index
      %c0_146 = arith.constant 0 : index
      %440 = vector.load %arg9[%c0_144, %c0_145, %c0_146] : memref<2x8x128xf32, #tpu.memory_space<vmem>>, vector<2x8x128xf32>
      tpu.vector_store %arg9[%c0_144, %c0_145, %c0_146], %439 {strides = array<i32>} : memref<2x8x128xf32, #tpu.memory_space<vmem>>, vector<2x8x128xf32>,
    } else {
    }
    %c0 = arith.constant 0 : index
    %c0_1 = arith.constant 0 : index
    %3 = vector.load %arg1[%c0, %c0_1] : memref<64x32xf32, #tpu.memory_space<vmem>>, vector<64x32xf32>
    %c0_2 = arith.constant 0 : index
    %c0_3 = arith.constant 0 : index
    %c0_4 = arith.constant 0 : index
    %4 = vector.load %arg3[%c0_2, %c0_3, %c0_4] : memref<2x32x512xf32, #tpu.memory_space<vmem>>, vector<1x32x512xf32>
    %5 = vector.shape_cast %4 : vector<1x32x512xf32> to vector<32x512xf32>
    %cst = arith.constant dense<0.000000e+00> : vector<64x512xf32>
    %6 = tpu.matmul %3, %5, %cst {dimension_numbers = #tpu.dot_dimension_numbers<[1], [0], [0], [1], [0, 0, 1, 1], [], []>} : vector<64x32xf32>, vector<32x512xf32>, vector<64x512xf32> -> vector<64x512xf32>
    %c0_5 = arith.constant 0 : index
    %c0_6 = arith.constant 0 : index
    %c0_7 = arith.constant 0 : index
    %7 = vector.load %arg5[%c0_5, %c0_6, %c0_7] : memref<2x1x512xf32, #tpu.memory_space<vmem>>, vector<1x1x512xf32>
    %8 = vector.shape_cast %7 : vector<1x1x512xf32> to vector<1x512xf32>
    %9 = vector.broadcast %8 : vector<1x512xf32> to vector<64x512xf32>
    %10 = arith.addf %6, %9 : vector<64x512xf32>
    %c0_8 = arith.constant 0 : index
    %c0_9 = arith.constant 0 : index
    %11 = vector.load %arg10[%c0_8, %c0_9] : memref<64x512xf32, #tpu.memory_space<vmem>>, vector<64x512xf32>
    tpu.vector_store %arg10[%c0_8, %c0_9], %10 {strides = array<i32>} : memref<64x512xf32, #tpu.memory_space<vmem>>, vector<64x512xf32>,
    %c0_10 = arith.constant 0 : index
    %c0_11 = arith.constant 0 : index
    %12 = vector.load %arg2[%c0_10, %c0_11] : memref<64x32xf32, #tpu.memory_space<vmem>>, vector<64x32xf32>
    %c1 = arith.constant 1 : index
    %c0_12 = arith.constant 0 : index
    %c0_13 = arith.constant 0 : index
    %13 = vector.load %arg3[%c1, %c0_12, %c0_13] : memref<2x32x512xf32, #tpu.memory_space<vmem>>, vector<1x32x512xf32>
    %14 = vector.shape_cast %13 : vector<1x32x512xf32> to vector<32x512xf32>
    %cst_14 = arith.constant dense<0.000000e+00> : vector<64x512xf32>
    %15 = tpu.matmul %12, %14, %cst_14 {dimension_numbers = #tpu.dot_dimension_numbers<[1], [0], [0], [1], [0, 0, 1, 1], [], []>} : vector<64x32xf32>, vector<32x512xf32>, vector<64x512xf32> -> vector<64x512xf32>
    %c1_15 = arith.constant 1 : index
    %c0_16 = arith.constant 0 : index
    %c0_17 = arith.constant 0 : index
    %16 = vector.load %arg5[%c1_15, %c0_16, %c0_17] : memref<2x1x512xf32, #tpu.memory_space<vmem>>, vector<1x1x512xf32>
    %17 = vector.shape_cast %16 : vector<1x1x512xf32> to vector<1x512xf32>
    %18 = vector.broadcast %17 : vector<1x512xf32> to vector<64x512xf32>
    %19 = arith.addf %15, %18 : vector<64x512xf32>
    %c0_18 = arith.constant 0 : index
    %c0_19 = arith.constant 0 : index
    %20 = vector.load %arg11[%c0_18, %c0_19] : memref<64x512xf32, #tpu.memory_space<vmem>>, vector<64x512xf32>
    tpu.vector_store %arg11[%c0_18, %c0_19], %19 {strides = array<i32>} : memref<64x512xf32, #tpu.memory_space<vmem>>, vector<64x512xf32>,
    %c0_20 = arith.constant 0 : index
    %c0_21 = arith.constant 0 : index
    %c0_22 = arith.constant 0 : index
    %21 = vector.load %arg4[%c0_20, %c0_21, %c0_22] : memref<2x128x512xf32, #tpu.memory_space<vmem>>, vector<1x128x512xf32>
    %22 = vector.shape_cast %21 : vector<1x128x512xf32> to vector<128x512xf32>
    %c1_23 = arith.constant 1 : index
    %c0_24 = arith.constant 0 : index
    %c0_25 = arith.constant 0 : index
    %23 = vector.load %arg4[%c1_23, %c0_24, %c0_25] : memref<2x128x512xf32, #tpu.memory_space<vmem>>, vector<1x128x512xf32>
    %24 = vector.shape_cast %23 : vector<1x128x512xf32> to vector<128x512xf32>
    %c0_26 = arith.constant 0 : index
    %c0_27 = arith.constant 0 : index
    %c0_28 = arith.constant 0 : index
    %25 = vector.load %arg8[%c0_26, %c0_27, %c0_28] : memref<2x8x128xf32, #tpu.memory_space<vmem>>, vector<1x8x128xf32>
    %26 = vector.shape_cast %25 : vector<1x8x128xf32> to vector<8x128xf32>
    %c0_29 = arith.constant 0 : index
    %c0_30 = arith.constant 0 : index
    %c0_31 = arith.constant 0 : index
    %27 = vector.load %arg9[%c0_29, %c0_30, %c0_31] : memref<2x8x128xf32, #tpu.memory_space<vmem>>, vector<1x8x128xf32>
    %28 = vector.shape_cast %27 : vector<1x8x128xf32> to vector<8x128xf32>
    %c1_32 = arith.constant 1 : index
    %c0_33 = arith.constant 0 : index
    %c0_34 = arith.constant 0 : index
    %29 = vector.load %arg8[%c1_32, %c0_33, %c0_34] : memref<2x8x128xf32, #tpu.memory_space<vmem>>, vector<1x8x128xf32>
    %30 = vector.shape_cast %29 : vector<1x8x128xf32> to vector<8x128xf32>
    %c1_35 = arith.constant 1 : index
    %c0_36 = arith.constant 0 : index
    %c0_37 = arith.constant 0 : index
    %31 = vector.load %arg9[%c1_35, %c0_36, %c0_37] : memref<2x8x128xf32, #tpu.memory_space<vmem>>, vector<1x8x128xf32>
    %32 = vector.shape_cast %31 : vector<1x8x128xf32> to vector<8x128xf32>
    %c0_i32_38 = arith.constant 0 : i32
    %c8_i32 = arith.constant 8 : i32
    %33 = arith.muli %c0_i32_38, %c8_i32 : i32
    %34 = tpu.assume_multiple %33, 8 : i32
    %35 = arith.index_cast %34 : i32 to index
    %c0_39 = arith.constant 0 : index
    %36 = vector.load %arg10[%35, %c0_39] : memref<64x512xf32, #tpu.memory_space<vmem>>, vector<8x512xf32>
    %cst_40 = arith.constant dense<0.000000e+00> : vector<8x512xf32>
    %37 = tpu.matmul %26, %22, %cst_40 {dimension_numbers = #tpu.dot_dimension_numbers<[1], [0], [0], [1], [0, 0, 1, 1], [], []>} : vector<8x128xf32>, vector<128x512xf32>, vector<8x512xf32> -> vector<8x512xf32>
    %38 = arith.addf %36, %37 : vector<8x512xf32>
    %c7_i32 = arith.constant 7 : i32
    %39 = arith.subi %c7_i32, %c0_i32_38 : i32
    %c8_i32_41 = arith.constant 8 : i32
    %40 = arith.muli %39, %c8_i32_41 : i32
    %41 = tpu.assume_multiple %40, 8 : i32
    %42 = arith.index_cast %41 : i32 to index
    %c0_42 = arith.constant 0 : index
    %43 = vector.load %arg11[%42, %c0_42] : memref<64x512xf32, #tpu.memory_space<vmem>>, vector<8x512xf32>
    %cst_43 = arith.constant dense<0.000000e+00> : vector<8x512xf32>
    %44 = tpu.matmul %30, %24, %cst_43 {dimension_numbers = #tpu.dot_dimension_numbers<[1], [0], [0], [1], [0, 0, 1, 1], [], []>} : vector<8x128xf32>, vector<128x512xf32>, vector<8x512xf32> -> vector<8x512xf32>
    %45 = arith.addf %43, %44 : vector<8x512xf32>
    %46 = vector.extract_strided_slice %38 {offsets = [0, 0], sizes = [8, 384], strides = [1, 1]} : vector<8x512xf32> to vector<8x384xf32>
    %47 = arith.negf %46 : vector<8x384xf32>
    %48 = math.exp %47 : vector<8x384xf32>
    %cst_44 = arith.constant 1.000000e+00 : f32
    %49 = vector.broadcast %cst_44 : f32 to vector<8x384xf32>
    %50 = arith.addf %49, %48 : vector<8x384xf32>
    %51 = arith.divf %49, %50 : vector<8x384xf32>
    %52 = vector.extract_strided_slice %51 {offsets = [0, 0], sizes = [8, 128], strides = [1, 1]} : vector<8x384xf32> to vector<8x128xf32>
    %53 = vector.extract_strided_slice %51 {offsets = [0, 128], sizes = [8, 128], strides = [1, 1]} : vector<8x384xf32> to vector<8x128xf32>
    %54 = vector.extract_strided_slice %51 {offsets = [0, 256], sizes = [8, 128], strides = [1, 1]} : vector<8x384xf32> to vector<8x128xf32>
    %55 = vector.extract_strided_slice %38 {offsets = [0, 384], sizes = [8, 128], strides = [1, 1]} : vector<8x512xf32> to vector<8x128xf32>
    %56 = math.tanh %55 : vector<8x128xf32>
    %57 = arith.mulf %53, %28 : vector<8x128xf32>
    %58 = arith.mulf %52, %56 : vector<8x128xf32>
    %59 = arith.addf %57, %58 : vector<8x128xf32>
    %60 = math.tanh %59 : vector<8x128xf32>
    %61 = arith.mulf %54, %60 : vector<8x128xf32>
    %62 = vector.extract_strided_slice %45 {offsets = [0, 0], sizes = [8, 384], strides = [1, 1]} : vector<8x512xf32> to vector<8x384xf32>
    %63 = arith.negf %62 : vector<8x384xf32>
    %64 = math.exp %63 : vector<8x384xf32>
    %cst_45 = arith.constant 1.000000e+00 : f32
    %65 = vector.broadcast %cst_45 : f32 to vector<8x384xf32>
    %66 = arith.addf %65, %64 : vector<8x384xf32>
    %67 = arith.divf %65, %66 : vector<8x384xf32>
    %68 = vector.extract_strided_slice %67 {offsets = [0, 0], sizes = [8, 128], strides = [1, 1]} : vector<8x384xf32> to vector<8x128xf32>
    %69 = vector.extract_strided_slice %67 {offsets = [0, 128], sizes = [8, 128], strides = [1, 1]} : vector<8x384xf32> to vector<8x128xf32>
    %70 = vector.extract_strided_slice %67 {offsets = [0, 256], sizes = [8, 128], strides = [1, 1]} : vector<8x384xf32> to vector<8x128xf32>
    %71 = vector.extract_strided_slice %45 {offsets = [0, 384], sizes = [8, 128], strides = [1, 1]} : vector<8x512xf32> to vector<8x128xf32>
    %72 = math.tanh %71 : vector<8x128xf32>
    %73 = arith.mulf %69, %32 : vector<8x128xf32>
    %74 = arith.mulf %68, %72 : vector<8x128xf32>
    %75 = arith.addf %73, %74 : vector<8x128xf32>
    %76 = math.tanh %75 : vector<8x128xf32>
    %77 = arith.mulf %70, %76 : vector<8x128xf32>
    %78 = arith.index_cast %34 : i32 to index
    %c0_46 = arith.constant 0 : index
    %79 = vector.load %arg6[%78, %c0_46] : memref<64x128xf32, #tpu.memory_space<vmem>>, vector<8x128xf32>
    tpu.vector_store %arg6[%78, %c0_46], %61 {strides = array<i32>} : memref<64x128xf32, #tpu.memory_space<vmem>>, vector<8x128xf32>,
    %80 = arith.index_cast %41 : i32 to index
    %c0_47 = arith.constant 0 : index
    %81 = vector.load %arg7[%80, %c0_47] : memref<64x128xf32, #tpu.memory_space<vmem>>, vector<8x128xf32>
    tpu.vector_store %arg7[%80, %c0_47], %77 {strides = array<i32>} : memref<64x128xf32, #tpu.memory_space<vmem>>, vector<8x128xf32>,
    %c1_i32 = arith.constant 1 : i32
    %c8_i32_48 = arith.constant 8 : i32
    %82 = arith.muli %c1_i32, %c8_i32_48 : i32
    %83 = tpu.assume_multiple %82, 8 : i32
    %84 = arith.index_cast %83 : i32 to index
    %c0_49 = arith.constant 0 : index
    %85 = vector.load %arg10[%84, %c0_49] : memref<64x512xf32, #tpu.memory_space<vmem>>, vector<8x512xf32>
    %cst_50 = arith.constant dense<0.000000e+00> : vector<8x512xf32>
    %86 = tpu.matmul %61, %22, %cst_50 {dimension_numbers = #tpu.dot_dimension_numbers<[1], [0], [0], [1], [0, 0, 1, 1], [], []>} : vector<8x128xf32>, vector<128x512xf32>, vector<8x512xf32> -> vector<8x512xf32>
    %87 = arith.addf %85, %86 : vector<8x512xf32>
    %c7_i32_51 = arith.constant 7 : i32
    %88 = arith.subi %c7_i32_51, %c1_i32 : i32
    %c8_i32_52 = arith.constant 8 : i32
    %89 = arith.muli %88, %c8_i32_52 : i32
    %90 = tpu.assume_multiple %89, 8 : i32
    %91 = arith.index_cast %90 : i32 to index
    %c0_53 = arith.constant 0 : index
    %92 = vector.load %arg11[%91, %c0_53] : memref<64x512xf32, #tpu.memory_space<vmem>>, vector<8x512xf32>
    %cst_54 = arith.constant dense<0.000000e+00> : vector<8x512xf32>
    %93 = tpu.matmul %77, %24, %cst_54 {dimension_numbers = #tpu.dot_dimension_numbers<[1], [0], [0], [1], [0, 0, 1, 1], [], []>} : vector<8x128xf32>, vector<128x512xf32>, vector<8x512xf32> -> vector<8x512xf32>
    %94 = arith.addf %92, %93 : vector<8x512xf32>
    %95 = vector.extract_strided_slice %87 {offsets = [0, 0], sizes = [8, 384], strides = [1, 1]} : vector<8x512xf32> to vector<8x384xf32>
    %96 = arith.negf %95 : vector<8x384xf32>
    %97 = math.exp %96 : vector<8x384xf32>
    %cst_55 = arith.constant 1.000000e+00 : f32
    %98 = vector.broadcast %cst_55 : f32 to vector<8x384xf32>
    %99 = arith.addf %98, %97 : vector<8x384xf32>
    %100 = arith.divf %98, %99 : vector<8x384xf32>
    %101 = vector.extract_strided_slice %100 {offsets = [0, 0], sizes = [8, 128], strides = [1, 1]} : vector<8x384xf32> to vector<8x128xf32>
    %102 = vector.extract_strided_slice %100 {offsets = [0, 128], sizes = [8, 128], strides = [1, 1]} : vector<8x384xf32> to vector<8x128xf32>
    %103 = vector.extract_strided_slice %100 {offsets = [0, 256], sizes = [8, 128], strides = [1, 1]} : vector<8x384xf32> to vector<8x128xf32>
    %104 = vector.extract_strided_slice %87 {offsets = [0, 384], sizes = [8, 128], strides = [1, 1]} : vector<8x512xf32> to vector<8x128xf32>
    %105 = math.tanh %104 : vector<8x128xf32>
    %106 = arith.mulf %102, %59 : vector<8x128xf32>
    %107 = arith.mulf %101, %105 : vector<8x128xf32>
    %108 = arith.addf %106, %107 : vector<8x128xf32>
    %109 = math.tanh %108 : vector<8x128xf32>
    %110 = arith.mulf %103, %109 : vector<8x128xf32>
    %111 = vector.extract_strided_slice %94 {offsets = [0, 0], sizes = [8, 384], strides = [1, 1]} : vector<8x512xf32> to vector<8x384xf32>
    %112 = arith.negf %111 : vector<8x384xf32>
    %113 = math.exp %112 : vector<8x384xf32>
    %cst_56 = arith.constant 1.000000e+00 : f32
    %114 = vector.broadcast %cst_56 : f32 to vector<8x384xf32>
    %115 = arith.addf %114, %113 : vector<8x384xf32>
    %116 = arith.divf %114, %115 : vector<8x384xf32>
    %117 = vector.extract_strided_slice %116 {offsets = [0, 0], sizes = [8, 128], strides = [1, 1]} : vector<8x384xf32> to vector<8x128xf32>
    %118 = vector.extract_strided_slice %116 {offsets = [0, 128], sizes = [8, 128], strides = [1, 1]} : vector<8x384xf32> to vector<8x128xf32>
    %119 = vector.extract_strided_slice %116 {offsets = [0, 256], sizes = [8, 128], strides = [1, 1]} : vector<8x384xf32> to vector<8x128xf32>
    %120 = vector.extract_strided_slice %94 {offsets = [0, 384], sizes = [8, 128], strides = [1, 1]} : vector<8x512xf32> to vector<8x128xf32>
    %121 = math.tanh %120 : vector<8x128xf32>
    %122 = arith.mulf %118, %75 : vector<8x128xf32>
    %123 = arith.mulf %117, %121 : vector<8x128xf32>
    %124 = arith.addf %122, %123 : vector<8x128xf32>
    %125 = math.tanh %124 : vector<8x128xf32>
    %126 = arith.mulf %119, %125 : vector<8x128xf32>
    %127 = arith.index_cast %83 : i32 to index
    %c0_57 = arith.constant 0 : index
    %128 = vector.load %arg6[%127, %c0_57] : memref<64x128xf32, #tpu.memory_space<vmem>>, vector<8x128xf32>
    tpu.vector_store %arg6[%127, %c0_57], %110 {strides = array<i32>} : memref<64x128xf32, #tpu.memory_space<vmem>>, vector<8x128xf32>,
    %129 = arith.index_cast %90 : i32 to index
    %c0_58 = arith.constant 0 : index
    %130 = vector.load %arg7[%129, %c0_58] : memref<64x128xf32, #tpu.memory_space<vmem>>, vector<8x128xf32>
    tpu.vector_store %arg7[%129, %c0_58], %126 {strides = array<i32>} : memref<64x128xf32, #tpu.memory_space<vmem>>, vector<8x128xf32>,
    %c2_i32 = arith.constant 2 : i32
    %c8_i32_59 = arith.constant 8 : i32
    %131 = arith.muli %c2_i32, %c8_i32_59 : i32
    %132 = tpu.assume_multiple %131, 8 : i32
    %133 = arith.index_cast %132 : i32 to index
    %c0_60 = arith.constant 0 : index
    %134 = vector.load %arg10[%133, %c0_60] : memref<64x512xf32, #tpu.memory_space<vmem>>, vector<8x512xf32>
    %cst_61 = arith.constant dense<0.000000e+00> : vector<8x512xf32>
    %135 = tpu.matmul %110, %22, %cst_61 {dimension_numbers = #tpu.dot_dimension_numbers<[1], [0], [0], [1], [0, 0, 1, 1], [], []>} : vector<8x128xf32>, vector<128x512xf32>, vector<8x512xf32> -> vector<8x512xf32>
    %136 = arith.addf %134, %135 : vector<8x512xf32>
    %c7_i32_62 = arith.constant 7 : i32
    %137 = arith.subi %c7_i32_62, %c2_i32 : i32
    %c8_i32_63 = arith.constant 8 : i32
    %138 = arith.muli %137, %c8_i32_63 : i32
    %139 = tpu.assume_multiple %138, 8 : i32
    %140 = arith.index_cast %139 : i32 to index
    %c0_64 = arith.constant 0 : index
    %141 = vector.load %arg11[%140, %c0_64] : memref<64x512xf32, #tpu.memory_space<vmem>>, vector<8x512xf32>
    %cst_65 = arith.constant dense<0.000000e+00> : vector<8x512xf32>
    %142 = tpu.matmul %126, %24, %cst_65 {dimension_numbers = #tpu.dot_dimension_numbers<[1], [0], [0], [1], [0, 0, 1, 1], [], []>} : vector<8x128xf32>, vector<128x512xf32>, vector<8x512xf32> -> vector<8x512xf32>
    %143 = arith.addf %141, %142 : vector<8x512xf32>
    %144 = vector.extract_strided_slice %136 {offsets = [0, 0], sizes = [8, 384], strides = [1, 1]} : vector<8x512xf32> to vector<8x384xf32>
    %145 = arith.negf %144 : vector<8x384xf32>
    %146 = math.exp %145 : vector<8x384xf32>
    %cst_66 = arith.constant 1.000000e+00 : f32
    %147 = vector.broadcast %cst_66 : f32 to vector<8x384xf32>
    %148 = arith.addf %147, %146 : vector<8x384xf32>
    %149 = arith.divf %147, %148 : vector<8x384xf32>
    %150 = vector.extract_strided_slice %149 {offsets = [0, 0], sizes = [8, 128], strides = [1, 1]} : vector<8x384xf32> to vector<8x128xf32>
    %151 = vector.extract_strided_slice %149 {offsets = [0, 128], sizes = [8, 128], strides = [1, 1]} : vector<8x384xf32> to vector<8x128xf32>
    %152 = vector.extract_strided_slice %149 {offsets = [0, 256], sizes = [8, 128], strides = [1, 1]} : vector<8x384xf32> to vector<8x128xf32>
    %153 = vector.extract_strided_slice %136 {offsets = [0, 384], sizes = [8, 128], strides = [1, 1]} : vector<8x512xf32> to vector<8x128xf32>
    %154 = math.tanh %153 : vector<8x128xf32>
    %155 = arith.mulf %151, %108 : vector<8x128xf32>
    %156 = arith.mulf %150, %154 : vector<8x128xf32>
    %157 = arith.addf %155, %156 : vector<8x128xf32>
    %158 = math.tanh %157 : vector<8x128xf32>
    %159 = arith.mulf %152, %158 : vector<8x128xf32>
    %160 = vector.extract_strided_slice %143 {offsets = [0, 0], sizes = [8, 384], strides = [1, 1]} : vector<8x512xf32> to vector<8x384xf32>
    %161 = arith.negf %160 : vector<8x384xf32>
    %162 = math.exp %161 : vector<8x384xf32>
    %cst_67 = arith.constant 1.000000e+00 : f32
    %163 = vector.broadcast %cst_67 : f32 to vector<8x384xf32>
    %164 = arith.addf %163, %162 : vector<8x384xf32>
    %165 = arith.divf %163, %164 : vector<8x384xf32>
    %166 = vector.extract_strided_slice %165 {offsets = [0, 0], sizes = [8, 128], strides = [1, 1]} : vector<8x384xf32> to vector<8x128xf32>
    %167 = vector.extract_strided_slice %165 {offsets = [0, 128], sizes = [8, 128], strides = [1, 1]} : vector<8x384xf32> to vector<8x128xf32>
    %168 = vector.extract_strided_slice %165 {offsets = [0, 256], sizes = [8, 128], strides = [1, 1]} : vector<8x384xf32> to vector<8x128xf32>
    %169 = vector.extract_strided_slice %143 {offsets = [0, 384], sizes = [8, 128], strides = [1, 1]} : vector<8x512xf32> to vector<8x128xf32>
    %170 = math.tanh %169 : vector<8x128xf32>
    %171 = arith.mulf %167, %124 : vector<8x128xf32>
    %172 = arith.mulf %166, %170 : vector<8x128xf32>
    %173 = arith.addf %171, %172 : vector<8x128xf32>
    %174 = math.tanh %173 : vector<8x128xf32>
    %175 = arith.mulf %168, %174 : vector<8x128xf32>
    %176 = arith.index_cast %132 : i32 to index
    %c0_68 = arith.constant 0 : index
    %177 = vector.load %arg6[%176, %c0_68] : memref<64x128xf32, #tpu.memory_space<vmem>>, vector<8x128xf32>
    tpu.vector_store %arg6[%176, %c0_68], %159 {strides = array<i32>} : memref<64x128xf32, #tpu.memory_space<vmem>>, vector<8x128xf32>,
    %178 = arith.index_cast %139 : i32 to index
    %c0_69 = arith.constant 0 : index
    %179 = vector.load %arg7[%178, %c0_69] : memref<64x128xf32, #tpu.memory_space<vmem>>, vector<8x128xf32>
    tpu.vector_store %arg7[%178, %c0_69], %175 {strides = array<i32>} : memref<64x128xf32, #tpu.memory_space<vmem>>, vector<8x128xf32>,
    %c3_i32 = arith.constant 3 : i32
    %c8_i32_70 = arith.constant 8 : i32
    %180 = arith.muli %c3_i32, %c8_i32_70 : i32
    %181 = tpu.assume_multiple %180, 8 : i32
    %182 = arith.index_cast %181 : i32 to index
    %c0_71 = arith.constant 0 : index
    %183 = vector.load %arg10[%182, %c0_71] : memref<64x512xf32, #tpu.memory_space<vmem>>, vector<8x512xf32>
    %cst_72 = arith.constant dense<0.000000e+00> : vector<8x512xf32>
    %184 = tpu.matmul %159, %22, %cst_72 {dimension_numbers = #tpu.dot_dimension_numbers<[1], [0], [0], [1], [0, 0, 1, 1], [], []>} : vector<8x128xf32>, vector<128x512xf32>, vector<8x512xf32> -> vector<8x512xf32>
    %185 = arith.addf %183, %184 : vector<8x512xf32>
    %c7_i32_73 = arith.constant 7 : i32
    %186 = arith.subi %c7_i32_73, %c3_i32 : i32
    %c8_i32_74 = arith.constant 8 : i32
    %187 = arith.muli %186, %c8_i32_74 : i32
    %188 = tpu.assume_multiple %187, 8 : i32
    %189 = arith.index_cast %188 : i32 to index
    %c0_75 = arith.constant 0 : index
    %190 = vector.load %arg11[%189, %c0_75] : memref<64x512xf32, #tpu.memory_space<vmem>>, vector<8x512xf32>
    %cst_76 = arith.constant dense<0.000000e+00> : vector<8x512xf32>
    %191 = tpu.matmul %175, %24, %cst_76 {dimension_numbers = #tpu.dot_dimension_numbers<[1], [0], [0], [1], [0, 0, 1, 1], [], []>} : vector<8x128xf32>, vector<128x512xf32>, vector<8x512xf32> -> vector<8x512xf32>
    %192 = arith.addf %190, %191 : vector<8x512xf32>
    %193 = vector.extract_strided_slice %185 {offsets = [0, 0], sizes = [8, 384], strides = [1, 1]} : vector<8x512xf32> to vector<8x384xf32>
    %194 = arith.negf %193 : vector<8x384xf32>
    %195 = math.exp %194 : vector<8x384xf32>
    %cst_77 = arith.constant 1.000000e+00 : f32
    %196 = vector.broadcast %cst_77 : f32 to vector<8x384xf32>
    %197 = arith.addf %196, %195 : vector<8x384xf32>
    %198 = arith.divf %196, %197 : vector<8x384xf32>
    %199 = vector.extract_strided_slice %198 {offsets = [0, 0], sizes = [8, 128], strides = [1, 1]} : vector<8x384xf32> to vector<8x128xf32>
    %200 = vector.extract_strided_slice %198 {offsets = [0, 128], sizes = [8, 128], strides = [1, 1]} : vector<8x384xf32> to vector<8x128xf32>
    %201 = vector.extract_strided_slice %198 {offsets = [0, 256], sizes = [8, 128], strides = [1, 1]} : vector<8x384xf32> to vector<8x128xf32>
    %202 = vector.extract_strided_slice %185 {offsets = [0, 384], sizes = [8, 128], strides = [1, 1]} : vector<8x512xf32> to vector<8x128xf32>
    %203 = math.tanh %202 : vector<8x128xf32>
    %204 = arith.mulf %200, %157 : vector<8x128xf32>
    %205 = arith.mulf %199, %203 : vector<8x128xf32>
    %206 = arith.addf %204, %205 : vector<8x128xf32>
    %207 = math.tanh %206 : vector<8x128xf32>
    %208 = arith.mulf %201, %207 : vector<8x128xf32>
    %209 = vector.extract_strided_slice %192 {offsets = [0, 0], sizes = [8, 384], strides = [1, 1]} : vector<8x512xf32> to vector<8x384xf32>
    %210 = arith.negf %209 : vector<8x384xf32>
    %211 = math.exp %210 : vector<8x384xf32>
    %cst_78 = arith.constant 1.000000e+00 : f32
    %212 = vector.broadcast %cst_78 : f32 to vector<8x384xf32>
    %213 = arith.addf %212, %211 : vector<8x384xf32>
    %214 = arith.divf %212, %213 : vector<8x384xf32>
    %215 = vector.extract_strided_slice %214 {offsets = [0, 0], sizes = [8, 128], strides = [1, 1]} : vector<8x384xf32> to vector<8x128xf32>
    %216 = vector.extract_strided_slice %214 {offsets = [0, 128], sizes = [8, 128], strides = [1, 1]} : vector<8x384xf32> to vector<8x128xf32>
    %217 = vector.extract_strided_slice %214 {offsets = [0, 256], sizes = [8, 128], strides = [1, 1]} : vector<8x384xf32> to vector<8x128xf32>
    %218 = vector.extract_strided_slice %192 {offsets = [0, 384], sizes = [8, 128], strides = [1, 1]} : vector<8x512xf32> to vector<8x128xf32>
    %219 = math.tanh %218 : vector<8x128xf32>
    %220 = arith.mulf %216, %173 : vector<8x128xf32>
    %221 = arith.mulf %215, %219 : vector<8x128xf32>
    %222 = arith.addf %220, %221 : vector<8x128xf32>
    %223 = math.tanh %222 : vector<8x128xf32>
    %224 = arith.mulf %217, %223 : vector<8x128xf32>
    %225 = arith.index_cast %181 : i32 to index
    %c0_79 = arith.constant 0 : index
    %226 = vector.load %arg6[%225, %c0_79] : memref<64x128xf32, #tpu.memory_space<vmem>>, vector<8x128xf32>
    tpu.vector_store %arg6[%225, %c0_79], %208 {strides = array<i32>} : memref<64x128xf32, #tpu.memory_space<vmem>>, vector<8x128xf32>,
    %227 = arith.index_cast %188 : i32 to index
    %c0_80 = arith.constant 0 : index
    %228 = vector.load %arg7[%227, %c0_80] : memref<64x128xf32, #tpu.memory_space<vmem>>, vector<8x128xf32>
    tpu.vector_store %arg7[%227, %c0_80], %224 {strides = array<i32>} : memref<64x128xf32, #tpu.memory_space<vmem>>, vector<8x128xf32>,
    %c4_i32 = arith.constant 4 : i32
    %c8_i32_81 = arith.constant 8 : i32
    %229 = arith.muli %c4_i32, %c8_i32_81 : i32
    %230 = tpu.assume_multiple %229, 8 : i32
    %231 = arith.index_cast %230 : i32 to index
    %c0_82 = arith.constant 0 : index
    %232 = vector.load %arg10[%231, %c0_82] : memref<64x512xf32, #tpu.memory_space<vmem>>, vector<8x512xf32>
    %cst_83 = arith.constant dense<0.000000e+00> : vector<8x512xf32>
    %233 = tpu.matmul %208, %22, %cst_83 {dimension_numbers = #tpu.dot_dimension_numbers<[1], [0], [0], [1], [0, 0, 1, 1], [], []>} : vector<8x128xf32>, vector<128x512xf32>, vector<8x512xf32> -> vector<8x512xf32>
    %234 = arith.addf %232, %233 : vector<8x512xf32>
    %c7_i32_84 = arith.constant 7 : i32
    %235 = arith.subi %c7_i32_84, %c4_i32 : i32
    %c8_i32_85 = arith.constant 8 : i32
    %236 = arith.muli %235, %c8_i32_85 : i32
    %237 = tpu.assume_multiple %236, 8 : i32
    %238 = arith.index_cast %237 : i32 to index
    %c0_86 = arith.constant 0 : index
    %239 = vector.load %arg11[%238, %c0_86] : memref<64x512xf32, #tpu.memory_space<vmem>>, vector<8x512xf32>
    %cst_87 = arith.constant dense<0.000000e+00> : vector<8x512xf32>
    %240 = tpu.matmul %224, %24, %cst_87 {dimension_numbers = #tpu.dot_dimension_numbers<[1], [0], [0], [1], [0, 0, 1, 1], [], []>} : vector<8x128xf32>, vector<128x512xf32>, vector<8x512xf32> -> vector<8x512xf32>
    %241 = arith.addf %239, %240 : vector<8x512xf32>
    %242 = vector.extract_strided_slice %234 {offsets = [0, 0], sizes = [8, 384], strides = [1, 1]} : vector<8x512xf32> to vector<8x384xf32>
    %243 = arith.negf %242 : vector<8x384xf32>
    %244 = math.exp %243 : vector<8x384xf32>
    %cst_88 = arith.constant 1.000000e+00 : f32
    %245 = vector.broadcast %cst_88 : f32 to vector<8x384xf32>
    %246 = arith.addf %245, %244 : vector<8x384xf32>
    %247 = arith.divf %245, %246 : vector<8x384xf32>
    %248 = vector.extract_strided_slice %247 {offsets = [0, 0], sizes = [8, 128], strides = [1, 1]} : vector<8x384xf32> to vector<8x128xf32>
    %249 = vector.extract_strided_slice %247 {offsets = [0, 128], sizes = [8, 128], strides = [1, 1]} : vector<8x384xf32> to vector<8x128xf32>
    %250 = vector.extract_strided_slice %247 {offsets = [0, 256], sizes = [8, 128], strides = [1, 1]} : vector<8x384xf32> to vector<8x128xf32>
    %251 = vector.extract_strided_slice %234 {offsets = [0, 384], sizes = [8, 128], strides = [1, 1]} : vector<8x512xf32> to vector<8x128xf32>
    %252 = math.tanh %251 : vector<8x128xf32>
    %253 = arith.mulf %249, %206 : vector<8x128xf32>
    %254 = arith.mulf %248, %252 : vector<8x128xf32>
    %255 = arith.addf %253, %254 : vector<8x128xf32>
    %256 = math.tanh %255 : vector<8x128xf32>
    %257 = arith.mulf %250, %256 : vector<8x128xf32>
    %258 = vector.extract_strided_slice %241 {offsets = [0, 0], sizes = [8, 384], strides = [1, 1]} : vector<8x512xf32> to vector<8x384xf32>
    %259 = arith.negf %258 : vector<8x384xf32>
    %260 = math.exp %259 : vector<8x384xf32>
    %cst_89 = arith.constant 1.000000e+00 : f32
    %261 = vector.broadcast %cst_89 : f32 to vector<8x384xf32>
    %262 = arith.addf %261, %260 : vector<8x384xf32>
    %263 = arith.divf %261, %262 : vector<8x384xf32>
    %264 = vector.extract_strided_slice %263 {offsets = [0, 0], sizes = [8, 128], strides = [1, 1]} : vector<8x384xf32> to vector<8x128xf32>
    %265 = vector.extract_strided_slice %263 {offsets = [0, 128], sizes = [8, 128], strides = [1, 1]} : vector<8x384xf32> to vector<8x128xf32>
    %266 = vector.extract_strided_slice %263 {offsets = [0, 256], sizes = [8, 128], strides = [1, 1]} : vector<8x384xf32> to vector<8x128xf32>
    %267 = vector.extract_strided_slice %241 {offsets = [0, 384], sizes = [8, 128], strides = [1, 1]} : vector<8x512xf32> to vector<8x128xf32>
    %268 = math.tanh %267 : vector<8x128xf32>
    %269 = arith.mulf %265, %222 : vector<8x128xf32>
    %270 = arith.mulf %264, %268 : vector<8x128xf32>
    %271 = arith.addf %269, %270 : vector<8x128xf32>
    %272 = math.tanh %271 : vector<8x128xf32>
    %273 = arith.mulf %266, %272 : vector<8x128xf32>
    %274 = arith.index_cast %230 : i32 to index
    %c0_90 = arith.constant 0 : index
    %275 = vector.load %arg6[%274, %c0_90] : memref<64x128xf32, #tpu.memory_space<vmem>>, vector<8x128xf32>
    tpu.vector_store %arg6[%274, %c0_90], %257 {strides = array<i32>} : memref<64x128xf32, #tpu.memory_space<vmem>>, vector<8x128xf32>,
    %276 = arith.index_cast %237 : i32 to index
    %c0_91 = arith.constant 0 : index
    %277 = vector.load %arg7[%276, %c0_91] : memref<64x128xf32, #tpu.memory_space<vmem>>, vector<8x128xf32>
    tpu.vector_store %arg7[%276, %c0_91], %273 {strides = array<i32>} : memref<64x128xf32, #tpu.memory_space<vmem>>, vector<8x128xf32>,
    %c5_i32 = arith.constant 5 : i32
    %c8_i32_92 = arith.constant 8 : i32
    %278 = arith.muli %c5_i32, %c8_i32_92 : i32
    %279 = tpu.assume_multiple %278, 8 : i32
    %280 = arith.index_cast %279 : i32 to index
    %c0_93 = arith.constant 0 : index
    %281 = vector.load %arg10[%280, %c0_93] : memref<64x512xf32, #tpu.memory_space<vmem>>, vector<8x512xf32>
    %cst_94 = arith.constant dense<0.000000e+00> : vector<8x512xf32>
    %282 = tpu.matmul %257, %22, %cst_94 {dimension_numbers = #tpu.dot_dimension_numbers<[1], [0], [0], [1], [0, 0, 1, 1], [], []>} : vector<8x128xf32>, vector<128x512xf32>, vector<8x512xf32> -> vector<8x512xf32>
    %283 = arith.addf %281, %282 : vector<8x512xf32>
    %c7_i32_95 = arith.constant 7 : i32
    %284 = arith.subi %c7_i32_95, %c5_i32 : i32
    %c8_i32_96 = arith.constant 8 : i32
    %285 = arith.muli %284, %c8_i32_96 : i32
    %286 = tpu.assume_multiple %285, 8 : i32
    %287 = arith.index_cast %286 : i32 to index
    %c0_97 = arith.constant 0 : index
    %288 = vector.load %arg11[%287, %c0_97] : memref<64x512xf32, #tpu.memory_space<vmem>>, vector<8x512xf32>
    %cst_98 = arith.constant dense<0.000000e+00> : vector<8x512xf32>
    %289 = tpu.matmul %273, %24, %cst_98 {dimension_numbers = #tpu.dot_dimension_numbers<[1], [0], [0], [1], [0, 0, 1, 1], [], []>} : vector<8x128xf32>, vector<128x512xf32>, vector<8x512xf32> -> vector<8x512xf32>
    %290 = arith.addf %288, %289 : vector<8x512xf32>
    %291 = vector.extract_strided_slice %283 {offsets = [0, 0], sizes = [8, 384], strides = [1, 1]} : vector<8x512xf32> to vector<8x384xf32>
    %292 = arith.negf %291 : vector<8x384xf32>
    %293 = math.exp %292 : vector<8x384xf32>
    %cst_99 = arith.constant 1.000000e+00 : f32
    %294 = vector.broadcast %cst_99 : f32 to vector<8x384xf32>
    %295 = arith.addf %294, %293 : vector<8x384xf32>
    %296 = arith.divf %294, %295 : vector<8x384xf32>
    %297 = vector.extract_strided_slice %296 {offsets = [0, 0], sizes = [8, 128], strides = [1, 1]} : vector<8x384xf32> to vector<8x128xf32>
    %298 = vector.extract_strided_slice %296 {offsets = [0, 128], sizes = [8, 128], strides = [1, 1]} : vector<8x384xf32> to vector<8x128xf32>
    %299 = vector.extract_strided_slice %296 {offsets = [0, 256], sizes = [8, 128], strides = [1, 1]} : vector<8x384xf32> to vector<8x128xf32>
    %300 = vector.extract_strided_slice %283 {offsets = [0, 384], sizes = [8, 128], strides = [1, 1]} : vector<8x512xf32> to vector<8x128xf32>
    %301 = math.tanh %300 : vector<8x128xf32>
    %302 = arith.mulf %298, %255 : vector<8x128xf32>
    %303 = arith.mulf %297, %301 : vector<8x128xf32>
    %304 = arith.addf %302, %303 : vector<8x128xf32>
    %305 = math.tanh %304 : vector<8x128xf32>
    %306 = arith.mulf %299, %305 : vector<8x128xf32>
    %307 = vector.extract_strided_slice %290 {offsets = [0, 0], sizes = [8, 384], strides = [1, 1]} : vector<8x512xf32> to vector<8x384xf32>
    %308 = arith.negf %307 : vector<8x384xf32>
    %309 = math.exp %308 : vector<8x384xf32>
    %cst_100 = arith.constant 1.000000e+00 : f32
    %310 = vector.broadcast %cst_100 : f32 to vector<8x384xf32>
    %311 = arith.addf %310, %309 : vector<8x384xf32>
    %312 = arith.divf %310, %311 : vector<8x384xf32>
    %313 = vector.extract_strided_slice %312 {offsets = [0, 0], sizes = [8, 128], strides = [1, 1]} : vector<8x384xf32> to vector<8x128xf32>
    %314 = vector.extract_strided_slice %312 {offsets = [0, 128], sizes = [8, 128], strides = [1, 1]} : vector<8x384xf32> to vector<8x128xf32>
    %315 = vector.extract_strided_slice %312 {offsets = [0, 256], sizes = [8, 128], strides = [1, 1]} : vector<8x384xf32> to vector<8x128xf32>
    %316 = vector.extract_strided_slice %290 {offsets = [0, 384], sizes = [8, 128], strides = [1, 1]} : vector<8x512xf32> to vector<8x128xf32>
    %317 = math.tanh %316 : vector<8x128xf32>
    %318 = arith.mulf %314, %271 : vector<8x128xf32>
    %319 = arith.mulf %313, %317 : vector<8x128xf32>
    %320 = arith.addf %318, %319 : vector<8x128xf32>
    %321 = math.tanh %320 : vector<8x128xf32>
    %322 = arith.mulf %315, %321 : vector<8x128xf32>
    %323 = arith.index_cast %279 : i32 to index
    %c0_101 = arith.constant 0 : index
    %324 = vector.load %arg6[%323, %c0_101] : memref<64x128xf32, #tpu.memory_space<vmem>>, vector<8x128xf32>
    tpu.vector_store %arg6[%323, %c0_101], %306 {strides = array<i32>} : memref<64x128xf32, #tpu.memory_space<vmem>>, vector<8x128xf32>,
    %325 = arith.index_cast %286 : i32 to index
    %c0_102 = arith.constant 0 : index
    %326 = vector.load %arg7[%325, %c0_102] : memref<64x128xf32, #tpu.memory_space<vmem>>, vector<8x128xf32>
    tpu.vector_store %arg7[%325, %c0_102], %322 {strides = array<i32>} : memref<64x128xf32, #tpu.memory_space<vmem>>, vector<8x128xf32>,
    %c6_i32 = arith.constant 6 : i32
    %c8_i32_103 = arith.constant 8 : i32
    %327 = arith.muli %c6_i32, %c8_i32_103 : i32
    %328 = tpu.assume_multiple %327, 8 : i32
    %329 = arith.index_cast %328 : i32 to index
    %c0_104 = arith.constant 0 : index
    %330 = vector.load %arg10[%329, %c0_104] : memref<64x512xf32, #tpu.memory_space<vmem>>, vector<8x512xf32>
    %cst_105 = arith.constant dense<0.000000e+00> : vector<8x512xf32>
    %331 = tpu.matmul %306, %22, %cst_105 {dimension_numbers = #tpu.dot_dimension_numbers<[1], [0], [0], [1], [0, 0, 1, 1], [], []>} : vector<8x128xf32>, vector<128x512xf32>, vector<8x512xf32> -> vector<8x512xf32>
    %332 = arith.addf %330, %331 : vector<8x512xf32>
    %c7_i32_106 = arith.constant 7 : i32
    %333 = arith.subi %c7_i32_106, %c6_i32 : i32
    %c8_i32_107 = arith.constant 8 : i32
    %334 = arith.muli %333, %c8_i32_107 : i32
    %335 = tpu.assume_multiple %334, 8 : i32
    %336 = arith.index_cast %335 : i32 to index
    %c0_108 = arith.constant 0 : index
    %337 = vector.load %arg11[%336, %c0_108] : memref<64x512xf32, #tpu.memory_space<vmem>>, vector<8x512xf32>
    %cst_109 = arith.constant dense<0.000000e+00> : vector<8x512xf32>
    %338 = tpu.matmul %322, %24, %cst_109 {dimension_numbers = #tpu.dot_dimension_numbers<[1], [0], [0], [1], [0, 0, 1, 1], [], []>} : vector<8x128xf32>, vector<128x512xf32>, vector<8x512xf32> -> vector<8x512xf32>
    %339 = arith.addf %337, %338 : vector<8x512xf32>
    %340 = vector.extract_strided_slice %332 {offsets = [0, 0], sizes = [8, 384], strides = [1, 1]} : vector<8x512xf32> to vector<8x384xf32>
    %341 = arith.negf %340 : vector<8x384xf32>
    %342 = math.exp %341 : vector<8x384xf32>
    %cst_110 = arith.constant 1.000000e+00 : f32
    %343 = vector.broadcast %cst_110 : f32 to vector<8x384xf32>
    %344 = arith.addf %343, %342 : vector<8x384xf32>
    %345 = arith.divf %343, %344 : vector<8x384xf32>
    %346 = vector.extract_strided_slice %345 {offsets = [0, 0], sizes = [8, 128], strides = [1, 1]} : vector<8x384xf32> to vector<8x128xf32>
    %347 = vector.extract_strided_slice %345 {offsets = [0, 128], sizes = [8, 128], strides = [1, 1]} : vector<8x384xf32> to vector<8x128xf32>
    %348 = vector.extract_strided_slice %345 {offsets = [0, 256], sizes = [8, 128], strides = [1, 1]} : vector<8x384xf32> to vector<8x128xf32>
    %349 = vector.extract_strided_slice %332 {offsets = [0, 384], sizes = [8, 128], strides = [1, 1]} : vector<8x512xf32> to vector<8x128xf32>
    %350 = math.tanh %349 : vector<8x128xf32>
    %351 = arith.mulf %347, %304 : vector<8x128xf32>
    %352 = arith.mulf %346, %350 : vector<8x128xf32>
    %353 = arith.addf %351, %352 : vector<8x128xf32>
    %354 = math.tanh %353 : vector<8x128xf32>
    %355 = arith.mulf %348, %354 : vector<8x128xf32>
    %356 = vector.extract_strided_slice %339 {offsets = [0, 0], sizes = [8, 384], strides = [1, 1]} : vector<8x512xf32> to vector<8x384xf32>
    %357 = arith.negf %356 : vector<8x384xf32>
    %358 = math.exp %357 : vector<8x384xf32>
    %cst_111 = arith.constant 1.000000e+00 : f32
    %359 = vector.broadcast %cst_111 : f32 to vector<8x384xf32>
    %360 = arith.addf %359, %358 : vector<8x384xf32>
    %361 = arith.divf %359, %360 : vector<8x384xf32>
    %362 = vector.extract_strided_slice %361 {offsets = [0, 0], sizes = [8, 128], strides = [1, 1]} : vector<8x384xf32> to vector<8x128xf32>
    %363 = vector.extract_strided_slice %361 {offsets = [0, 128], sizes = [8, 128], strides = [1, 1]} : vector<8x384xf32> to vector<8x128xf32>
    %364 = vector.extract_strided_slice %361 {offsets = [0, 256], sizes = [8, 128], strides = [1, 1]} : vector<8x384xf32> to vector<8x128xf32>
    %365 = vector.extract_strided_slice %339 {offsets = [0, 384], sizes = [8, 128], strides = [1, 1]} : vector<8x512xf32> to vector<8x128xf32>
    %366 = math.tanh %365 : vector<8x128xf32>
    %367 = arith.mulf %363, %320 : vector<8x128xf32>
    %368 = arith.mulf %362, %366 : vector<8x128xf32>
    %369 = arith.addf %367, %368 : vector<8x128xf32>
    %370 = math.tanh %369 : vector<8x128xf32>
    %371 = arith.mulf %364, %370 : vector<8x128xf32>
    %372 = arith.index_cast %328 : i32 to index
    %c0_112 = arith.constant 0 : index
    %373 = vector.load %arg6[%372, %c0_112] : memref<64x128xf32, #tpu.memory_space<vmem>>, vector<8x128xf32>
    tpu.vector_store %arg6[%372, %c0_112], %355 {strides = array<i32>} : memref<64x128xf32, #tpu.memory_space<vmem>>, vector<8x128xf32>,
    %374 = arith.index_cast %335 : i32 to index
    %c0_113 = arith.constant 0 : index
    %375 = vector.load %arg7[%374, %c0_113] : memref<64x128xf32, #tpu.memory_space<vmem>>, vector<8x128xf32>
    tpu.vector_store %arg7[%374, %c0_113], %371 {strides = array<i32>} : memref<64x128xf32, #tpu.memory_space<vmem>>, vector<8x128xf32>,
    %c7_i32_114 = arith.constant 7 : i32
    %c8_i32_115 = arith.constant 8 : i32
    %376 = arith.muli %c7_i32_114, %c8_i32_115 : i32
    %377 = tpu.assume_multiple %376, 8 : i32
    %378 = arith.index_cast %377 : i32 to index
    %c0_116 = arith.constant 0 : index
    %379 = vector.load %arg10[%378, %c0_116] : memref<64x512xf32, #tpu.memory_space<vmem>>, vector<8x512xf32>
    %cst_117 = arith.constant dense<0.000000e+00> : vector<8x512xf32>
    %380 = tpu.matmul %355, %22, %cst_117 {dimension_numbers = #tpu.dot_dimension_numbers<[1], [0], [0], [1], [0, 0, 1, 1], [], []>} : vector<8x128xf32>, vector<128x512xf32>, vector<8x512xf32> -> vector<8x512xf32>
    %381 = arith.addf %379, %380 : vector<8x512xf32>
    %c7_i32_118 = arith.constant 7 : i32
    %382 = arith.subi %c7_i32_118, %c7_i32_114 : i32
    %c8_i32_119 = arith.constant 8 : i32
    %383 = arith.muli %382, %c8_i32_119 : i32
    %384 = tpu.assume_multiple %383, 8 : i32
    %385 = arith.index_cast %384 : i32 to index
    %c0_120 = arith.constant 0 : index
    %386 = vector.load %arg11[%385, %c0_120] : memref<64x512xf32, #tpu.memory_space<vmem>>, vector<8x512xf32>
    %cst_121 = arith.constant dense<0.000000e+00> : vector<8x512xf32>
    %387 = tpu.matmul %371, %24, %cst_121 {dimension_numbers = #tpu.dot_dimension_numbers<[1], [0], [0], [1], [0, 0, 1, 1], [], []>} : vector<8x128xf32>, vector<128x512xf32>, vector<8x512xf32> -> vector<8x512xf32>
    %388 = arith.addf %386, %387 : vector<8x512xf32>
    %389 = vector.extract_strided_slice %381 {offsets = [0, 0], sizes = [8, 384], strides = [1, 1]} : vector<8x512xf32> to vector<8x384xf32>
    %390 = arith.negf %389 : vector<8x384xf32>
    %391 = math.exp %390 : vector<8x384xf32>
    %cst_122 = arith.constant 1.000000e+00 : f32
    %392 = vector.broadcast %cst_122 : f32 to vector<8x384xf32>
    %393 = arith.addf %392, %391 : vector<8x384xf32>
    %394 = arith.divf %392, %393 : vector<8x384xf32>
    %395 = vector.extract_strided_slice %394 {offsets = [0, 0], sizes = [8, 128], strides = [1, 1]} : vector<8x384xf32> to vector<8x128xf32>
    %396 = vector.extract_strided_slice %394 {offsets = [0, 128], sizes = [8, 128], strides = [1, 1]} : vector<8x384xf32> to vector<8x128xf32>
    %397 = vector.extract_strided_slice %394 {offsets = [0, 256], sizes = [8, 128], strides = [1, 1]} : vector<8x384xf32> to vector<8x128xf32>
    %398 = vector.extract_strided_slice %381 {offsets = [0, 384], sizes = [8, 128], strides = [1, 1]} : vector<8x512xf32> to vector<8x128xf32>
    %399 = math.tanh %398 : vector<8x128xf32>
    %400 = arith.mulf %396, %353 : vector<8x128xf32>
    %401 = arith.mulf %395, %399 : vector<8x128xf32>
    %402 = arith.addf %400, %401 : vector<8x128xf32>
    %403 = math.tanh %402 : vector<8x128xf32>
    %404 = arith.mulf %397, %403 : vector<8x128xf32>
    %405 = vector.extract_strided_slice %388 {offsets = [0, 0], sizes = [8, 384], strides = [1, 1]} : vector<8x512xf32> to vector<8x384xf32>
    %406 = arith.negf %405 : vector<8x384xf32>
    %407 = math.exp %406 : vector<8x384xf32>
    %cst_123 = arith.constant 1.000000e+00 : f32
    %408 = vector.broadcast %cst_123 : f32 to vector<8x384xf32>
    %409 = arith.addf %408, %407 : vector<8x384xf32>
    %410 = arith.divf %408, %409 : vector<8x384xf32>
    %411 = vector.extract_strided_slice %410 {offsets = [0, 0], sizes = [8, 128], strides = [1, 1]} : vector<8x384xf32> to vector<8x128xf32>
    %412 = vector.extract_strided_slice %410 {offsets = [0, 128], sizes = [8, 128], strides = [1, 1]} : vector<8x384xf32> to vector<8x128xf32>
    %413 = vector.extract_strided_slice %410 {offsets = [0, 256], sizes = [8, 128], strides = [1, 1]} : vector<8x384xf32> to vector<8x128xf32>
    %414 = vector.extract_strided_slice %388 {offsets = [0, 384], sizes = [8, 128], strides = [1, 1]} : vector<8x512xf32> to vector<8x128xf32>
    %415 = math.tanh %414 : vector<8x128xf32>
    %416 = arith.mulf %412, %369 : vector<8x128xf32>
    %417 = arith.mulf %411, %415 : vector<8x128xf32>
    %418 = arith.addf %416, %417 : vector<8x128xf32>
    %419 = math.tanh %418 : vector<8x128xf32>
    %420 = arith.mulf %413, %419 : vector<8x128xf32>
    %421 = arith.index_cast %377 : i32 to index
    %c0_124 = arith.constant 0 : index
    %422 = vector.load %arg6[%421, %c0_124] : memref<64x128xf32, #tpu.memory_space<vmem>>, vector<8x128xf32>
    tpu.vector_store %arg6[%421, %c0_124], %404 {strides = array<i32>} : memref<64x128xf32, #tpu.memory_space<vmem>>, vector<8x128xf32>,
    %423 = arith.index_cast %384 : i32 to index
    %c0_125 = arith.constant 0 : index
    %424 = vector.load %arg7[%423, %c0_125] : memref<64x128xf32, #tpu.memory_space<vmem>>, vector<8x128xf32>
    tpu.vector_store %arg7[%423, %c0_125], %420 {strides = array<i32>} : memref<64x128xf32, #tpu.memory_space<vmem>>, vector<8x128xf32>,
    %c8_i32_126 = arith.constant 8 : i32
    %c0_127 = arith.constant 0 : index
    %c0_128 = arith.constant 0 : index
    %c0_129 = arith.constant 0 : index
    %425 = vector.load %arg8[%c0_127, %c0_128, %c0_129] : memref<2x8x128xf32, #tpu.memory_space<vmem>>, vector<1x8x128xf32>
    %426 = vector.shape_cast %425 : vector<1x8x128xf32> to vector<8x128xf32>
    %427 = vector.shape_cast %404 : vector<8x128xf32> to vector<1x8x128xf32>
    tpu.vector_store %arg8[%c0_127, %c0_128, %c0_129], %427 {strides = array<i32>} : memref<2x8x128xf32, #tpu.memory_space<vmem>>, vector<1x8x128xf32>,
    %c0_130 = arith.constant 0 : index
    %c0_131 = arith.constant 0 : index
    %c0_132 = arith.constant 0 : index
    %428 = vector.load %arg9[%c0_130, %c0_131, %c0_132] : memref<2x8x128xf32, #tpu.memory_space<vmem>>, vector<1x8x128xf32>
    %429 = vector.shape_cast %428 : vector<1x8x128xf32> to vector<8x128xf32>
    %430 = vector.shape_cast %402 : vector<8x128xf32> to vector<1x8x128xf32>
    tpu.vector_store %arg9[%c0_130, %c0_131, %c0_132], %430 {strides = array<i32>} : memref<2x8x128xf32, #tpu.memory_space<vmem>>, vector<1x8x128xf32>,
    %c1_133 = arith.constant 1 : index
    %c0_134 = arith.constant 0 : index
    %c0_135 = arith.constant 0 : index
    %431 = vector.load %arg8[%c1_133, %c0_134, %c0_135] : memref<2x8x128xf32, #tpu.memory_space<vmem>>, vector<1x8x128xf32>
    %432 = vector.shape_cast %431 : vector<1x8x128xf32> to vector<8x128xf32>
    %433 = vector.shape_cast %420 : vector<8x128xf32> to vector<1x8x128xf32>
    tpu.vector_store %arg8[%c1_133, %c0_134, %c0_135], %433 {strides = array<i32>} : memref<2x8x128xf32, #tpu.memory_space<vmem>>, vector<1x8x128xf32>,
    %c1_136 = arith.constant 1 : index
    %c0_137 = arith.constant 0 : index
    %c0_138 = arith.constant 0 : index
    %434 = vector.load %arg9[%c1_136, %c0_137, %c0_138] : memref<2x8x128xf32, #tpu.memory_space<vmem>>, vector<1x8x128xf32>
    %435 = vector.shape_cast %434 : vector<1x8x128xf32> to vector<8x128xf32>
    %436 = vector.shape_cast %418 : vector<8x128xf32> to vector<1x8x128xf32>
    tpu.vector_store %arg9[%c1_136, %c0_137, %c0_138], %436 {strides = array<i32>} : memref<2x8x128xf32, #tpu.memory_space<vmem>>, vector<1x8x128xf32>,
    return
  }
  func.func @transform_0(%arg0: i32) -> (i32, i32) {
    %c0_i32 = arith.constant 0 : i32
    %c0_i32_0 = arith.constant 0 : i32
    return %arg0, %c0_i32 : i32, i32
  }
  func.func @transform_1(%arg0: i32) -> (i32, i32) {
    %c0_i32 = arith.constant 0 : i32
    %0 = arith.subi %c0_i32, %arg0 : i32
    %c0_i32_0 = arith.constant 0 : i32
    %c0_i32_1 = arith.constant 0 : i32
    return %0, %c0_i32_0 : i32, i32
  }
  func.func @transform_2(%arg0: i32) -> (i32, i32, i32) {
    %c0_i32 = arith.constant 0 : i32
    %c0_i32_0 = arith.constant 0 : i32
    %c0_i32_1 = arith.constant 0 : i32
    %c0_i32_2 = arith.constant 0 : i32
    return %c0_i32, %c0_i32_0, %c0_i32_1 : i32, i32, i32
  }
  func.func @transform_3(%arg0: i32) -> (i32, i32, i32) {
    %c0_i32 = arith.constant 0 : i32
    %c0_i32_0 = arith.constant 0 : i32
    %c0_i32_1 = arith.constant 0 : i32
    %c0_i32_2 = arith.constant 0 : i32
    return %c0_i32, %c0_i32_0, %c0_i32_1 : i32, i32, i32
  }
  func.func @transform_4(%arg0: i32) -> (i32, i32, i32) {
    %c0_i32 = arith.constant 0 : i32
    %c0_i32_0 = arith.constant 0 : i32
    %c0_i32_1 = arith.constant 0 : i32
    %c0_i32_2 = arith.constant 0 : i32
    return %c0_i32, %c0_i32_0, %c0_i32_1 : i32, i32, i32
  }
  func.func @transform_5(%arg0: i32) -> (i32, i32) {
    %c0_i32 = arith.constant 0 : i32
    %c0_i32_0 = arith.constant 0 : i32
    return %arg0, %c0_i32 : i32, i32
  }
  func.func @transform_6(%arg0: i32) -> (i32, i32) {
    %c0_i32 = arith.constant 0 : i32
    %0 = arith.subi %c0_i32, %arg0 : i32
    %c0_i32_0 = arith.constant 0 : i32
    %c0_i32_1 = arith.constant 0 : i32
    return %0, %c0_i32_0 : i32, i32
  }
  func.func @transform_7(%arg0: i32) -> (i32, i32, i32) {
    %c0_i32 = arith.constant 0 : i32
    %c0_i32_0 = arith.constant 0 : i32
    %c0_i32_1 = arith.constant 0 : i32
    %c0_i32_2 = arith.constant 0 : i32
    return %c0_i32, %c0_i32_0, %c0_i32_1 : i32, i32, i32
  }
  func.func @transform_8(%arg0: i32) -> (i32, i32, i32) {
    %c0_i32 = arith.constant 0 : i32
    %c0_i32_0 = arith.constant 0 : i32
    %c0_i32_1 = arith.constant 0 : i32
    %c0_i32_2 = arith.constant 0 : i32
    return %c0_i32, %c0_i32_0, %c0_i32_1 : i32, i32, i32
  }
}

</mosaic_0001>

<llo_original>
// kernel: tpu_custom_call.1
$region0: #{tpu_custom_call.1}
  #allocation0 [shape = 'u32[]', space=smem, size = 0x4, offset = 0x4, fixed_abs, tag = 'smem constant byte address 0x4 - core index']
  #allocation1 [shape = 'u32[144,128]{1,0:T(1,128)}', space=vmem, size = 0x12000, scoped, tag = 'internal scratch']
  #allocation2 [shape = 'f32[64,512]{1,0:T(8,128)}', space=vmem, size = 0x20000, scoped, tag = 'scratch operand']
  #allocation3 [shape = 'f32[64,512]{1,0:T(8,128)}', space=vmem, size = 0x20000, scoped, tag = 'scratch operand']
  %s0 = inlined_call_operand.vmem [shape: f32[64,32], index: 0, kind: input, shape index: {}]
  %s1 = inlined_call_operand.vmem [shape: f32[64,32], index: 1, kind: input, shape index: {}]
  %s2 = inlined_call_operand.hbm [shape: f32[2,32,512], index: 2, kind: input, shape index: {}]
  %s3 = inlined_call_operand.hbm [shape: f32[2,128,512], index: 3, kind: input, shape index: {}]
  %s4 = inlined_call_operand.vmem [shape: f32[2,1,512], index: 4, kind: input, shape index: {}]
  %s5 = inlined_call_operand.hbm [shape: f32[64,128], index: 5, kind: output, shape index: {0}]
  %s6 = inlined_call_operand.hbm [shape: f32[64,128], index: 6, kind: output, shape index: {1}]
  %s7 = inlined_call_operand.hbm [shape: f32[2,8,128], index: 7, kind: output, shape index: {2}]
  %s8 = inlined_call_operand.hbm [shape: f32[2,8,128], index: 8, kind: output, shape index: {3}]
  %9 = xla_tuple %s5, %s6, %s7, %s8
  %s10 = sld [smem:[#allocation0]]
  $region66: #{tpu_custom_call.1} parent=0
    _
  %s12 = ssub.s32 1, %s10
  %s13 = scalar_select 0, %s12, %s10
  $region1: #{tpu_custom_call.1} parent=0
    #allocation4 [shape = 'u8[131072]{0}', space=vmem, size = 0x20000, scoped, tag = 'input window, operand 2, single buffered']
    #allocation5 [shape = 's32[1]{0}', space=sflag, size = 0x4, scoped, tag = 'scoped memory for tpu_custom_call.1']
    #allocation6 [shape = 's32[1]{0}', space=sflag, size = 0x4, scoped, tag = 'scoped memory for tpu_custom_call.1']
    #allocation7 [shape = 'u8[524288]{0}', space=vmem, size = 0x80000, scoped, tag = 'input window, operand 3, single buffered']
    #allocation8 [shape = 's32[1]{0}', space=sflag, size = 0x4, scoped, tag = 'scoped memory for tpu_custom_call.1']
    #allocation9 [shape = 'u8[32768]{0}', space=vmem, size = 0x8000, scoped, tag = 'output window, operand 0, single buffered']
    #allocation10 [shape = 'u8[32768]{0}', space=vmem, size = 0x8000, scoped, tag = 'output window, operand 1, single buffered']
    #allocation11 [shape = 's32[1]{0}', space=sflag, size = 0x4, scoped, tag = 'scoped memory for tpu_custom_call.1']
    #allocation12 [shape = 'u8[8192]{0}', space=vmem, size = 0x2000, scoped, tag = 'output window, operand 2, single buffered']
    #allocation13 [shape = 'u8[8192]{0}', space=vmem, size = 0x2000, scoped, tag = 'output window, operand 3, single buffered']
    #allocation14 [shape = 's32[1]{0}', space=sflag, size = 0x4, scoped, tag = 'scoped memory for tpu_custom_call.1']
    %14 = vsyncpa [#allocation5], 0
    %15 = vsyncpa [#allocation8], 0
    %16 = vsyncpa [#allocation6], 0
    %17 = vsyncpa [#allocation11], 0
    %18 = vsyncpa [#allocation14], 0
    // Predicated region
    $region2: #{tpu_custom_call.1} parent=1 // pred_check
      _
    $region3: #{tpu_custom_call.1} parent=1 // pred_check_branch
      %20 = sbr.rel (0) target = $region5
    $region4: #{tpu_custom_call.1} parent=1 // pred_region
      _
    $region5: #{tpu_custom_call.1} parent=1 // pred_fallthru
      _
    // Predicated region
    $region6: #{tpu_custom_call.1} parent=1 // pred_check
      _
    $region7: #{tpu_custom_call.1} parent=1 // pred_check_branch
      %22 = sbr.rel (0) target = $region9
    $region8: #{tpu_custom_call.1} parent=1 // pred_region
      %s23 = ssub.s32 0, 0
      %s24 = smul.u32 8, %s23
      %p25 = scmp.lt.s32.totalorder %s24, 7
      %s26 = scalar_select %p25, %s24, 7
      %s27 = smul.addr %s26, 8
      %s28 = scalar_lea.vmem %s1, %s27
      %s29 = ssub.s32 0, 0
      %s30 = smul.u32 8, %s29
    $region9: #{tpu_custom_call.1} parent=1 // pred_fallthru
      _
    // Predicated region
    $region10: #{tpu_custom_call.1} parent=1 // pred_check
      _
    $region11: #{tpu_custom_call.1} parent=1 // pred_check_branch
      %32 = sbr.rel (0) target = $region13
    $region12: #{tpu_custom_call.1} parent=1 // pred_region
      %s34 = ssub.s32 4096, 4096
      %35 = vsyncadd [#allocation5], %s34
      %s36 = sshll.u32 [#allocation4], 4
      %s37 = int_to_ptr.vmem [resolvable:$true] %s36
      %42 = dma.hbm_to_vmem [thread:$0]  %s2, 4096, %s37, [#allocation5], 512, 512, 32
    $region13: #{tpu_custom_call.1} parent=1 // pred_fallthru
      _
    // Predicated region
    $region14: #{tpu_custom_call.1} parent=1 // pred_check
      _
    $region15: #{tpu_custom_call.1} parent=1 // pred_check_branch
      %44 = sbr.rel (0) target = $region17
    $region16: #{tpu_custom_call.1} parent=1 // pred_region
      %s46 = ssub.s32 16384, 16384
      %47 = vsyncadd [#allocation8], %s46
      %s48 = sshll.u32 [#allocation7], 4
      %s49 = int_to_ptr.vmem [resolvable:$true] %s48
      %54 = dma.hbm_to_vmem [thread:$0]  %s3, 16384, %s49, [#allocation8], 512, 512, 32
    $region17: #{tpu_custom_call.1} parent=1 // pred_fallthru
      _
    // Predicated region
    $region18: #{tpu_custom_call.1} parent=1 // pred_check
      _
    $region19: #{tpu_custom_call.1} parent=1 // pred_check_branch
      %56 = sbr.rel (0) target = $region21
    $region20: #{tpu_custom_call.1} parent=1 // pred_region
      _
    $region21: #{tpu_custom_call.1} parent=1 // pred_fallthru
      _
    // Predicated region
    $region22: #{tpu_custom_call.1} parent=1 // pred_check
      _
    $region23: #{tpu_custom_call.1} parent=1 // pred_check_branch
      %58 = sbr.rel (0) target = $region25
    $region24: #{tpu_custom_call.1} parent=1 // pred_region
      %59 = dma.done [#allocation5], 4096
    $region25: #{tpu_custom_call.1} parent=1 // pred_fallthru
      _
    // Predicated region
    $region26: #{tpu_custom_call.1} parent=1 // pred_check
      _
    $region27: #{tpu_custom_call.1} parent=1 // pred_check_branch
      %61 = sbr.rel (0) target = $region29
    $region28: #{tpu_custom_call.1} parent=1 // pred_region
      %62 = dma.done [#allocation8], 16384
    $region29: #{tpu_custom_call.1} parent=1 // pred_fallthru
      _
    %s63 = ssub.s32 0, 0
    %s64 = smul.u32 8, %s63
    %p65 = scmp.lt.s32.totalorder %s64, 7
    %s66 = scalar_select %p65, %s64, 7
    %s67 = smul.addr %s66, 8
    %s68 = scalar_lea.vmem %s1, %s67
    %s69 = ssub.s32 0, 0
    %s70 = smul.u32 8, %s69
    %p71 = scmp.lt.s32.totalorder %s70, 7
    %s72 = scalar_select %p71, %s70, 7
    %s73 = smul.addr %s72, 8
    %s74 = scalar_lea.vmem %s1, %s73
    %s75 = ssub.s32 0, 0
    %s76 = smul.u32 8, %s75
    %s77 = ssub.s32 0, 0
    %s78 = smul.u32 8, %s77
    %p79 = scmp.eq.s32.totalorder 0, 0
    // Predicated region
    $region30: #{tpu_custom_call.1} parent=1 // pred_check
      %p80 = pneg %p79
    $region31: #{tpu_custom_call.1} parent=1 // pred_check_branch
      %82 = sbr.rel (%p80) target = $region33
    $region32: #{tpu_custom_call.1} parent=1 // pred_region
      %83 = vst [vmem:[#allocation12] sm:$0xff] 0.0
      %84 = vst [vmem:[#allocation12 + $0x8] sm:$0xff] 0.0
      %85 = vst [vmem:[#allocation13] sm:$0xff] 0.0
      %86 = vst [vmem:[#allocation13 + $0x8] sm:$0xff] 0.0
    $region33: #{tpu_custom_call.1} parent=1 // pred_fallthru
      _
    %v87 = vld [vmem:[%s0] sm:$0xff]
    %v88 = vld [vmem:[%s0 + $0x8] sm:$0xff]
    %v89 = vld [vmem:[%s0 + $0x10] sm:$0xff]
    %v90 = vld [vmem:[%s0 + $0x18] sm:$0xff]
    %v91 = vld [vmem:[%s0 + $0x20] sm:$0xff]
    %v92 = vld [vmem:[%s0 + $0x28] sm:$0xff]
    %v93 = vld [vmem:[%s0 + $0x30] sm:$0xff]
    %v94 = vld [vmem:[%s0 + $0x38] sm:$0xff]
    %v95 = vld [vmem:[#allocation4] sm:$0xff]
    %v96 = vld [vmem:[#allocation4 + $0x8] sm:$0xff]
    %v97 = vld [vmem:[#allocation4 + $0x10] sm:$0xff]
    %v98 = vld [vmem:[#allocation4 + $0x18] sm:$0xff]
    %v99 = vld [vmem:[#allocation4 + $0x20] sm:$0xff]
    %v100 = vld [vmem:[#allocation4 + $0x28] sm:$0xff]
    %v101 = vld [vmem:[#allocation4 + $0x30] sm:$0xff]
    %v102 = vld [vmem:[#allocation4 + $0x38] sm:$0xff]
    %v103 = vld [vmem:[#allocation4 + $0x40] sm:$0xff]
    %v104 = vld [vmem:[#allocation4 + $0x48] sm:$0xff]
    %v105 = vld [vmem:[#allocation4 + $0x50] sm:$0xff]
    %v106 = vld [vmem:[#allocation4 + $0x58] sm:$0xff]
    %v107 = vld [vmem:[#allocation4 + $0x60] sm:$0xff]
    %v108 = vld [vmem:[#allocation4 + $0x68] sm:$0xff]
    %v109 = vld [vmem:[#allocation4 + $0x70] sm:$0xff]
    %v110 = vld [vmem:[#allocation4 + $0x78] sm:$0xff]
    %v111 = vld [vmem:[%s4] sm:$0xf]
    %v113 = vlaneseq
    %v114 = vshrl.u32 %v113, 7
    %v115 = vsub.s32 0, %v114
    %v116 = vrot.slane %v111, %v115
    %v117 = vlaneseq
    %v118 = vshrl.u32 %v117, 7
    %v119 = vsub.s32 1, %v118
    %v120 = vrot.slane %v111, %v119
    %v121 = vlaneseq
    %v122 = vshrl.u32 %v121, 7
    %v123 = vsub.s32 2, %v122
    %v124 = vrot.slane %v111, %v123
    %v125 = vlaneseq
    %v126 = vshrl.u32 %v125, 7
    %v127 = vsub.s32 3, %v126
    %v128 = vrot.slane %v111, %v127
    %vm133 = vcmask 261120
    %v135 = vsel %vm133, %v87, 0
    %v138 = vsel %vm133, %v88, 0
    %v141 = vsel %vm133, %v89, 0
    %v144 = vsel %vm133, %v90, 0
    %v147 = vsel %vm133, %v91, 0
    %v150 = vsel %vm133, %v92, 0
    %v153 = vsel %vm133, %v93, 0
    %v156 = vsel %vm133, %v94, 0
    %158 = vmatprep.subr.mxu0 %v96
    %159 = vmatpush1.msra.mxu0 %v95
    %160 = vmatprep.subr.mxu0 %v100
    %161 = vmatpush1.msra.mxu0 %v99
    %162 = vmatprep.subr.mxu0 %v104
    %163 = vmatpush1.msra.mxu0 %v103
    %164 = vmatprep.subr.mxu0 %v108
    %165 = vmatpush1.msra.mxu0 %v107
    %166 = vmatprep.subr.mxu0 0.0
    %167 = vmatpush1.msra.mxu0 0.0
    %168 = vmatprep.subr.mxu0 0.0
    %169 = vmatpush1.msra.mxu0 0.0
    %170 = vmatprep.subr.mxu0 0.0
    %171 = vmatpush1.msra.mxu0 0.0
    %172 = vmatprep.subr.mxu0 0.0
    %173 = vmatpush1.msra.mxu0 0.0
    %174 = vmatprep.subr.mxu0 0.0
    %175 = vmatpush1.msra.mxu0 0.0
    %176 = vmatprep.subr.mxu0 0.0
    %177 = vmatpush1.msra.mxu0 0.0
    %178 = vmatprep.subr.mxu0 0.0
    %179 = vmatpush1.msra.mxu0 0.0
    %180 = vmatprep.subr.mxu0 0.0
    %181 = vmatpush1.msra.mxu0 0.0
    %182 = vmatprep.subr.mxu0 0.0
    %183 = vmatpush1.msra.mxu0 0.0
    %184 = vmatprep.subr.mxu0 0.0
    %185 = vmatpush1.msra.mxu0 0.0
    %186 = vmatprep.subr.mxu0 0.0
    %187 = vmatpush1.msra.mxu0 0.0
    %188 = vmatprep.subr.mxu0 0.0
    %189 = vmatpush1.msra.mxu0 0.0
    %190 = vmatprep.subr.mxu0 0.0
    %191 = vmatpush1.msra.mxu0 0.0
    %192 = vmatprep.subr.mxu0 0.0
    %193 = vmatpush1.msra.mxu0 0.0
    %194 = vmatprep.subr.mxu0 0.0
    %195 = vmatpush1.msra.mxu0 0.0
    %196 = vmatprep.subr.mxu0 0.0
    %197 = vmatpush1.msra.mxu0 0.0
    %198 = vmatprep.subr.mxu0 0.0
    %199 = vmatpush1.msra.mxu0 0.0
    %200 = vmatprep.subr.mxu0 0.0
    %201 = vmatpush1.msra.mxu0 0.0
    %202 = vmatprep.subr.mxu0 0.0
    %203 = vmatpush1.msra.mxu0 0.0
    %204 = vmatprep.subr.mxu0 0.0
    %205 = vmatpush1.msra.mxu0 0.0
    %206 = vmatprep.subr.mxu0 0.0
    %207 = vmatpush1.msra.mxu0 0.0
    %208 = vmatprep.subr.mxu0 0.0
    %209 = vmatpush1.msra.mxu0 0.0
    %210 = vmatprep.subr.mxu0 0.0
    %211 = vmatpush1.msra.mxu0 0.0
    %212 = vmatprep.subr.mxu0 0.0
    %213 = vmatpush1.msra.mxu0 0.0
    %214 = vmatprep.subr.mxu0 0.0
    %215 = vmatpush1.msra.mxu0 0.0
    %216 = vmatprep.subr.mxu0 0.0
    %217 = vmatpush1.msra.mxu0 0.0
    %218 = vmatprep.subr.mxu0 0.0
    %219 = vmatpush1.msra.mxu0 0.0
    %220 = vmatprep.subr.mxu0 0.0
    %221 = vmatpush1.msra.mxu0 0.0
    %222 = vmatprep.mubr.f32.mxu0 0.0
    %223 = vmatmul.mubr.f32.gmra.mrb[0].mxu0 %v135
    %v224 = vpop.f32.mrb[0].mxu0
    %v225 = vadd.f32 %v116, %v224
    %v226 = vpop.f32.mrb[0].mxu0
    %v227 = vadd.f32 %v120, %v226
    %228 = vmatprep.mubr.f32.mxu0 0.0
    %229 = vmatmul.mubr.f32.gmra.mrb[0].mxu0 %v138
    %v230 = vpop.f32.mrb[0].mxu0
    %v231 = vadd.f32 %v116, %v230
    %v232 = vpop.f32.mrb[0].mxu0
    %v233 = vadd.f32 %v120, %v232
    %234 = vmatprep.mubr.f32.mxu0 0.0
    %235 = vmatmul.mubr.f32.gmra.mrb[0].mxu0 %v141
    %v236 = vpop.f32.mrb[0].mxu0
    %v237 = vadd.f32 %v116, %v236
    %v238 = vpop.f32.mrb[0].mxu0
    %v239 = vadd.f32 %v120, %v238
    %240 = vmatprep.mubr.f32.mxu0 0.0
    %241 = vmatmul.mubr.f32.gmra.mrb[0].mxu0 %v144
    %v242 = vpop.f32.mrb[0].mxu0
    %v243 = vadd.f32 %v116, %v242
    %v244 = vpop.f32.mrb[0].mxu0
    %v245 = vadd.f32 %v120, %v244
    %246 = vmatprep.mubr.f32.mxu0 0.0
    %247 = vmatmul.mubr.f32.gmra.mrb[0].mxu0 %v147
    %v248 = vpop.f32.mrb[0].mxu0
    %v249 = vadd.f32 %v116, %v248
    %v250 = vpop.f32.mrb[0].mxu0
    %v251 = vadd.f32 %v120, %v250
    %252 = vmatprep.mubr.f32.mxu0 0.0
    %253 = vmatmul.mubr.f32.gmra.mrb[0].mxu0 %v150
    %v254 = vpop.f32.mrb[0].mxu0
    %v255 = vadd.f32 %v116, %v254
    %v256 = vpop.f32.mrb[0].mxu0
    %v257 = vadd.f32 %v120, %v256
    %258 = vmatprep.mubr.f32.mxu0 0.0
    %259 = vmatmul.mubr.f32.gmra.mrb[0].mxu0 %v153
    %v260 = vpop.f32.mrb[0].mxu0
    %v261 = vadd.f32 %v116, %v260
    %v262 = vpop.f32.mrb[0].mxu0
    %v263 = vadd.f32 %v120, %v262
    %264 = vmatprep.mubr.f32.mxu0 0.0
    %265 = vmatmul.mubr.f32.gmra.mrb[0].mxu0 %v156
    %v266 = vpop.f32.mrb[0].mxu0
    %v267 = vadd.f32 %v116, %v266
    %v268 = vpop.f32.mrb[0].mxu0
    %v269 = vadd.f32 %v120, %v268
    %270 = vdwg.mxu0
    %271 = vmatprep.subr.mxu0 %v98
    %272 = vmatpush1.msra.mxu0 %v97
    %273 = vmatprep.subr.mxu0 %v102
    %274 = vmatpush1.msra.mxu0 %v101
    %275 = vmatprep.subr.mxu0 %v106
    %276 = vmatpush1.msra.mxu0 %v105
    %277 = vmatprep.subr.mxu0 %v110
    %278 = vmatpush1.msra.mxu0 %v109
    %279 = vmatprep.subr.mxu0 0.0
    %280 = vmatpush1.msra.mxu0 0.0
    %281 = vmatprep.subr.mxu0 0.0
    %282 = vmatpush1.msra.mxu0 0.0
    %283 = vmatprep.subr.mxu0 0.0
    %284 = vmatpush1.msra.mxu0 0.0
    %285 = vmatprep.subr.mxu0 0.0
    %286 = vmatpush1.msra.mxu0 0.0
    %287 = vmatprep.subr.mxu0 0.0
    %288 = vmatpush1.msra.mxu0 0.0
    %289 = vmatprep.subr.mxu0 0.0
    %290 = vmatpush1.msra.mxu0 0.0
    %291 = vmatprep.subr.mxu0 0.0
    %292 = vmatpush1.msra.mxu0 0.0
    %293 = vmatprep.subr.mxu0 0.0
    %294 = vmatpush1.msra.mxu0 0.0
    %295 = vmatprep.subr.mxu0 0.0
    %296 = vmatpush1.msra.mxu0 0.0
    %297 = vmatprep.subr.mxu0 0.0
    %298 = vmatpush1.msra.mxu0 0.0
    %299 = vmatprep.subr.mxu0 0.0
    %300 = vmatpush1.msra.mxu0 0.0
    %301 = vmatprep.subr.mxu0 0.0
    %302 = vmatpush1.msra.mxu0 0.0
    %303 = vmatprep.subr.mxu0 0.0
    %304 = vmatpush1.msra.mxu0 0.0
    %305 = vmatprep.subr.mxu0 0.0
    %306 = vmatpush1.msra.mxu0 0.0
    %307 = vmatprep.subr.mxu0 0.0
    %308 = vmatpush1.msra.mxu0 0.0
    %309 = vmatprep.subr.mxu0 0.0
    %310 = vmatpush1.msra.mxu0 0.0
    %311 = vmatprep.subr.mxu0 0.0
    %312 = vmatpush1.msra.mxu0 0.0
    %313 = vmatprep.subr.mxu0 0.0
    %314 = vmatpush1.msra.mxu0 0.0
    %315 = vmatprep.subr.mxu0 0.0
    %316 = vmatpush1.msra.mxu0 0.0
    %317 = vmatprep.subr.mxu0 0.0
    %318 = vmatpush1.msra.mxu0 0.0
    %319 = vmatprep.subr.mxu0 0.0
    %320 = vmatpush1.msra.mxu0 0.0
    %321 = vmatprep.subr.mxu0 0.0
    %322 = vmatpush1.msra.mxu0 0.0
    %323 = vmatprep.subr.mxu0 0.0
    %324 = vmatpush1.msra.mxu0 0.0
    %325 = vmatprep.subr.mxu0 0.0
    %326 = vmatpush1.msra.mxu0 0.0
    %327 = vmatprep.subr.mxu0 0.0
    %328 = vmatpush1.msra.mxu0 0.0
    %329 = vmatprep.subr.mxu0 0.0
    %330 = vmatpush1.msra.mxu0 0.0
    %331 = vmatprep.subr.mxu0 0.0
    %332 = vmatpush1.msra.mxu0 0.0
    %333 = vmatprep.subr.mxu0 0.0
    %334 = vmatpush1.msra.mxu0 0.0
    %335 = vmatprep.mubr.f32.mxu0 0.0
    %336 = vmatmul.mubr.f32.gmra.mrb[0].mxu0 %v135
    %v337 = vpop.f32.mrb[0].mxu0
    %v338 = vadd.f32 %v124, %v337
    %v339 = vpop.f32.mrb[0].mxu0
    %v340 = vadd.f32 %v128, %v339
    %341 = vmatprep.mubr.f32.mxu0 0.0
    %342 = vmatmul.mubr.f32.gmra.mrb[0].mxu0 %v138
    %v343 = vpop.f32.mrb[0].mxu0
    %v344 = vadd.f32 %v124, %v343
    %v345 = vpop.f32.mrb[0].mxu0
    %v346 = vadd.f32 %v128, %v345
    %347 = vmatprep.mubr.f32.mxu0 0.0
    %348 = vmatmul.mubr.f32.gmra.mrb[0].mxu0 %v141
    %v349 = vpop.f32.mrb[0].mxu0
    %v350 = vadd.f32 %v124, %v349
    %v351 = vpop.f32.mrb[0].mxu0
    %v352 = vadd.f32 %v128, %v351
    %353 = vmatprep.mubr.f32.mxu0 0.0
    %354 = vmatmul.mubr.f32.gmra.mrb[0].mxu0 %v144
    %v355 = vpop.f32.mrb[0].mxu0
    %v356 = vadd.f32 %v124, %v355
    %v357 = vpop.f32.mrb[0].mxu0
    %v358 = vadd.f32 %v128, %v357
    %359 = vmatprep.mubr.f32.mxu0 0.0
    %360 = vmatmul.mubr.f32.gmra.mrb[0].mxu0 %v147
    %v361 = vpop.f32.mrb[0].mxu0
    %v362 = vadd.f32 %v124, %v361
    %v363 = vpop.f32.mrb[0].mxu0
    %v364 = vadd.f32 %v128, %v363
    %365 = vmatprep.mubr.f32.mxu0 0.0
    %366 = vmatmul.mubr.f32.gmra.mrb[0].mxu0 %v150
    %v367 = vpop.f32.mrb[0].mxu0
    %v368 = vadd.f32 %v124, %v367
    %v369 = vpop.f32.mrb[0].mxu0
    %v370 = vadd.f32 %v128, %v369
    %371 = vmatprep.mubr.f32.mxu0 0.0
    %372 = vmatmul.mubr.f32.gmra.mrb[0].mxu0 %v153
    %v373 = vpop.f32.mrb[0].mxu0
    %v374 = vadd.f32 %v124, %v373
    %v375 = vpop.f32.mrb[0].mxu0
    %v376 = vadd.f32 %v128, %v375
    %377 = vmatprep.mubr.f32.mxu0 0.0
    %378 = vmatmul.mubr.f32.gmra.mrb[0].mxu0 %v156
    %v379 = vpop.f32.mrb[0].mxu0
    %v380 = vadd.f32 %v124, %v379
    %v381 = vpop.f32.mrb[0].mxu0
    %v382 = vadd.f32 %v128, %v381
    %383 = vdwg.mxu0
    %384 = vst [vmem:[#allocation2] sm:$0xff] %v225
    %385 = vst [vmem:[#allocation2 + $0x8] sm:$0xff] %v227
    %386 = vst [vmem:[#allocation2 + $0x10] sm:$0xff] %v338
    %387 = vst [vmem:[#allocation2 + $0x18] sm:$0xff] %v340
    %388 = vst [vmem:[#allocation2 + $0x20] sm:$0xff] %v231
    %389 = vst [vmem:[#allocation2 + $0x28] sm:$0xff] %v233
    %390 = vst [vmem:[#allocation2 + $0x30] sm:$0xff] %v344
    %391 = vst [vmem:[#allocation2 + $0x38] sm:$0xff] %v346
    %392 = vst [vmem:[#allocation2 + $0x40] sm:$0xff] %v237
    %393 = vst [vmem:[#allocation2 + $0x48] sm:$0xff] %v239
    %394 = vst [vmem:[#allocation2 + $0x50] sm:$0xff] %v350
    %395 = vst [vmem:[#allocation2 + $0x58] sm:$0xff] %v352
    %396 = vst [vmem:[#allocation2 + $0x60] sm:$0xff] %v243
    %397 = vst [vmem:[#allocation2 + $0x68] sm:$0xff] %v245
    %398 = vst [vmem:[#allocation2 + $0x70] sm:$0xff] %v356
    %399 = vst [vmem:[#allocation2 + $0x78] sm:$0xff] %v358
    %400 = vst [vmem:[#allocation2 + $0x80] sm:$0xff] %v249
    %401 = vst [vmem:[#allocation2 + $0x88] sm:$0xff] %v251
    %402 = vst [vmem:[#allocation2 + $0x90] sm:$0xff] %v362
    %403 = vst [vmem:[#allocation2 + $0x98] sm:$0xff] %v364
    %404 = vst [vmem:[#allocation2 + $0xa0] sm:$0xff] %v255
    %405 = vst [vmem:[#allocation2 + $0xa8] sm:$0xff] %v257
    %406 = vst [vmem:[#allocation2 + $0xb0] sm:$0xff] %v368
    %407 = vst [vmem:[#allocation2 + $0xb8] sm:$0xff] %v370
    %408 = vst [vmem:[#allocation2 + $0xc0] sm:$0xff] %v261
    %409 = vst [vmem:[#allocation2 + $0xc8] sm:$0xff] %v263
    %410 = vst [vmem:[#allocation2 + $0xd0] sm:$0xff] %v374
    %411 = vst [vmem:[#allocation2 + $0xd8] sm:$0xff] %v376
    %412 = vst [vmem:[#allocation2 + $0xe0] sm:$0xff] %v267
    %413 = vst [vmem:[#allocation2 + $0xe8] sm:$0xff] %v269
    %414 = vst [vmem:[#allocation2 + $0xf0] sm:$0xff] %v380
    %415 = vst [vmem:[#allocation2 + $0xf8] sm:$0xff] %v382
    %v416 = vld [vmem:[%s74] sm:$0xff]
    %v417 = vld [vmem:[%s74 + $0x8] sm:$0xff]
    %v418 = vld [vmem:[%s74 + $0x10] sm:$0xff]
    %v419 = vld [vmem:[%s74 + $0x18] sm:$0xff]
    %v420 = vld [vmem:[%s74 + $0x20] sm:$0xff]
    %v421 = vld [vmem:[%s74 + $0x28] sm:$0xff]
    %v422 = vld [vmem:[%s74 + $0x30] sm:$0xff]
    %v423 = vld [vmem:[%s74 + $0x38] sm:$0xff]
    %s424 = scalar_lea.vmem [#allocation4], 128
    %v425 = vld [vmem:[%s424] sm:$0xff]
    %v426 = vld [vmem:[%s424 + $0x8] sm:$0xff]
    %v427 = vld [vmem:[%s424 + $0x10] sm:$0xff]
    %v428 = vld [vmem:[%s424 + $0x18] sm:$0xff]
    %v429 = vld [vmem:[%s424 + $0x20] sm:$0xff]
    %v430 = vld [vmem:[%s424 + $0x28] sm:$0xff]
    %v431 = vld [vmem:[%s424 + $0x30] sm:$0xff]
    %v432 = vld [vmem:[%s424 + $0x38] sm:$0xff]
    %v433 = vld [vmem:[%s424 + $0x40] sm:$0xff]
    %v434 = vld [vmem:[%s424 + $0x48] sm:$0xff]
    %v435 = vld [vmem:[%s424 + $0x50] sm:$0xff]
    %v436 = vld [vmem:[%s424 + $0x58] sm:$0xff]
    %v437 = vld [vmem:[%s424 + $0x60] sm:$0xff]
    %v438 = vld [vmem:[%s424 + $0x68] sm:$0xff]
    %v439 = vld [vmem:[%s424 + $0x70] sm:$0xff]
    %v440 = vld [vmem:[%s424 + $0x78] sm:$0xff]
    %s441 = scalar_lea.vmem %s4, 4
    %v442 = vld [vmem:[%s441] sm:$0xf]
    %v444 = vlaneseq
    %v445 = vshrl.u32 %v444, 7
    %v446 = vsub.s32 0, %v445
    %v447 = vrot.slane %v442, %v446
    %v448 = vlaneseq
    %v449 = vshrl.u32 %v448, 7
    %v450 = vsub.s32 1, %v449
    %v451 = vrot.slane %v442, %v450
    %v452 = vlaneseq
    %v453 = vshrl.u32 %v452, 7
    %v454 = vsub.s32 2, %v453
    %v455 = vrot.slane %v442, %v454
    %v456 = vlaneseq
    %v457 = vshrl.u32 %v456, 7
    %v458 = vsub.s32 3, %v457
    %v459 = vrot.slane %v442, %v458
    %v465 = vsel %vm133, %v416, 0
    %v468 = vsel %vm133, %v417, 0
    %v471 = vsel %vm133, %v418, 0
    %v474 = vsel %vm133, %v419, 0
    %v477 = vsel %vm133, %v420, 0
    %v480 = vsel %vm133, %v421, 0
    %v483 = vsel %vm133, %v422, 0
    %v486 = vsel %vm133, %v423, 0
    %488 = vmatprep.subr.mxu0 %v426
    %489 = vmatpush1.msra.mxu0 %v425
    %490 = vmatprep.subr.mxu0 %v430
    %491 = vmatpush1.msra.mxu0 %v429
    %492 = vmatprep.subr.mxu0 %v434
    %493 = vmatpush1.msra.mxu0 %v433
    %494 = vmatprep.subr.mxu0 %v438
    %495 = vmatpush1.msra.mxu0 %v437
    %496 = vmatprep.subr.mxu0 0.0
    %497 = vmatpush1.msra.mxu0 0.0
    %498 = vmatprep.subr.mxu0 0.0
    %499 = vmatpush1.msra.mxu0 0.0
    %500 = vmatprep.subr.mxu0 0.0
    %501 = vmatpush1.msra.mxu0 0.0
    %502 = vmatprep.subr.mxu0 0.0
    %503 = vmatpush1.msra.mxu0 0.0
    %504 = vmatprep.subr.mxu0 0.0
    %505 = vmatpush1.msra.mxu0 0.0
    %506 = vmatprep.subr.mxu0 0.0
    %507 = vmatpush1.msra.mxu0 0.0
    %508 = vmatprep.subr.mxu0 0.0
    %509 = vmatpush1.msra.mxu0 0.0
    %510 = vmatprep.subr.mxu0 0.0
    %511 = vmatpush1.msra.mxu0 0.0
    %512 = vmatprep.subr.mxu0 0.0
    %513 = vmatpush1.msra.mxu0 0.0
    %514 = vmatprep.subr.mxu0 0.0
    %515 = vmatpush1.msra.mxu0 0.0
    %516 = vmatprep.subr.mxu0 0.0
    %517 = vmatpush1.msra.mxu0 0.0
    %518 = vmatprep.subr.mxu0 0.0
    %519 = vmatpush1.msra.mxu0 0.0
    %520 = vmatprep.subr.mxu0 0.0
    %521 = vmatpush1.msra.mxu0 0.0
    %522 = vmatprep.subr.mxu0 0.0
    %523 = vmatpush1.msra.mxu0 0.0
    %524 = vmatprep.subr.mxu0 0.0
    %525 = vmatpush1.msra.mxu0 0.0
    %526 = vmatprep.subr.mxu0 0.0
    %527 = vmatpush1.msra.mxu0 0.0
    %528 = vmatprep.subr.mxu0 0.0
    %529 = vmatpush1.msra.mxu0 0.0
    %530 = vmatprep.subr.mxu0 0.0
    %531 = vmatpush1.msra.mxu0 0.0
    %532 = vmatprep.subr.mxu0 0.0
    %533 = vmatpush1.msra.mxu0 0.0
    %534 = vmatprep.subr.mxu0 0.0
    %535 = vmatpush1.msra.mxu0 0.0
    %536 = vmatprep.subr.mxu0 0.0
    %537 = vmatpush1.msra.mxu0 0.0
    %538 = vmatprep.subr.mxu0 0.0
    %539 = vmatpush1.msra.mxu0 0.0
    %540 = vmatprep.subr.mxu0 0.0
    %541 = vmatpush1.msra.mxu0 0.0
    %542 = vmatprep.subr.mxu0 0.0
    %543 = vmatpush1.msra.mxu0 0.0
    %544 = vmatprep.subr.mxu0 0.0
    %545 = vmatpush1.msra.mxu0 0.0
    %546 = vmatprep.subr.mxu0 0.0
    %547 = vmatpush1.msra.mxu0 0.0
    %548 = vmatprep.subr.mxu0 0.0
    %549 = vmatpush1.msra.mxu0 0.0
    %550 = vmatprep.subr.mxu0 0.0
    %551 = vmatpush1.msra.mxu0 0.0
    %552 = vmatprep.mubr.f32.mxu0 0.0
    %553 = vmatmul.mubr.f32.gmra.mrb[0].mxu0 %v465
    %v554 = vpop.f32.mrb[0].mxu0
    %v555 = vadd.f32 %v447, %v554
    %v556 = vpop.f32.mrb[0].mxu0
    %v557 = vadd.f32 %v451, %v556
    %558 = vmatprep.mubr.f32.mxu0 0.0
    %559 = vmatmul.mubr.f32.gmra.mrb[0].mxu0 %v468
    %v560 = vpop.f32.mrb[0].mxu0
    %v561 = vadd.f32 %v447, %v560
    %v562 = vpop.f32.mrb[0].mxu0
    %v563 = vadd.f32 %v451, %v562
    %564 = vmatprep.mubr.f32.mxu0 0.0
    %565 = vmatmul.mubr.f32.gmra.mrb[0].mxu0 %v471
    %v566 = vpop.f32.mrb[0].mxu0
    %v567 = vadd.f32 %v447, %v566
    %v568 = vpop.f32.mrb[0].mxu0
    %v569 = vadd.f32 %v451, %v568
    %570 = vmatprep.mubr.f32.mxu0 0.0
    %571 = vmatmul.mubr.f32.gmra.mrb[0].mxu0 %v474
    %v572 = vpop.f32.mrb[0].mxu0
    %v573 = vadd.f32 %v447, %v572
    %v574 = vpop.f32.mrb[0].mxu0
    %v575 = vadd.f32 %v451, %v574
    %576 = vmatprep.mubr.f32.mxu0 0.0
    %577 = vmatmul.mubr.f32.gmra.mrb[0].mxu0 %v477
    %v578 = vpop.f32.mrb[0].mxu0
    %v579 = vadd.f32 %v447, %v578
    %v580 = vpop.f32.mrb[0].mxu0
    %v581 = vadd.f32 %v451, %v580
    %582 = vmatprep.mubr.f32.mxu0 0.0
    %583 = vmatmul.mubr.f32.gmra.mrb[0].mxu0 %v480
    %v584 = vpop.f32.mrb[0].mxu0
    %v585 = vadd.f32 %v447, %v584
    %v586 = vpop.f32.mrb[0].mxu0
    %v587 = vadd.f32 %v451, %v586
    %588 = vmatprep.mubr.f32.mxu0 0.0
    %589 = vmatmul.mubr.f32.gmra.mrb[0].mxu0 %v483
    %v590 = vpop.f32.mrb[0].mxu0
    %v591 = vadd.f32 %v447, %v590
    %v592 = vpop.f32.mrb[0].mxu0
    %v593 = vadd.f32 %v451, %v592
    %594 = vmatprep.mubr.f32.mxu0 0.0
    %595 = vmatmul.mubr.f32.gmra.mrb[0].mxu0 %v486
    %v596 = vpop.f32.mrb[0].mxu0
    %v597 = vadd.f32 %v447, %v596
    %v598 = vpop.f32.mrb[0].mxu0
    %v599 = vadd.f32 %v451, %v598
    %600 = vdwg.mxu0
    %601 = vmatprep.subr.mxu0 %v428
    %602 = vmatpush1.msra.mxu0 %v427
    %603 = vmatprep.subr.mxu0 %v432
    %604 = vmatpush1.msra.mxu0 %v431
    %605 = vmatprep.subr.mxu0 %v436
    %606 = vmatpush1.msra.mxu0 %v435
    %607 = vmatprep.subr.mxu0 %v440
    %608 = vmatpush1.msra.mxu0 %v439
    %609 = vmatprep.subr.mxu0 0.0
    %610 = vmatpush1.msra.mxu0 0.0
    %611 = vmatprep.subr.mxu0 0.0
    %612 = vmatpush1.msra.mxu0 0.0
    %613 = vmatprep.subr.mxu0 0.0
    %614 = vmatpush1.msra.mxu0 0.0
    %615 = vmatprep.subr.mxu0 0.0
    %616 = vmatpush1.msra.mxu0 0.0
    %617 = vmatprep.subr.mxu0 0.0
    %618 = vmatpush1.msra.mxu0 0.0
    %619 = vmatprep.subr.mxu0 0.0
    %620 = vmatpush1.msra.mxu0 0.0
    %621 = vmatprep.subr.mxu0 0.0
    %622 = vmatpush1.msra.mxu0 0.0
    %623 = vmatprep.subr.mxu0 0.0
    %624 = vmatpush1.msra.mxu0 0.0
    %625 = vmatprep.subr.mxu0 0.0
    %626 = vmatpush1.msra.mxu0 0.0
    %627 = vmatprep.subr.mxu0 0.0
    %628 = vmatpush1.msra.mxu0 0.0
    %629 = vmatprep.subr.mxu0 0.0
    %630 = vmatpush1.msra.mxu0 0.0
    %631 = vmatprep.subr.mxu0 0.0
    %632 = vmatpush1.msra.mxu0 0.0
    %633 = vmatprep.subr.mxu0 0.0
    %634 = vmatpush1.msra.mxu0 0.0
    %635 = vmatprep.subr.mxu0 0.0
    %636 = vmatpush1.msra.mxu0 0.0
    %637 = vmatprep.subr.mxu0 0.0
    %638 = vmatpush1.msra.mxu0 0.0
    %639 = vmatprep.subr.mxu0 0.0
    %640 = vmatpush1.msra.mxu0 0.0
    %641 = vmatprep.subr.mxu0 0.0
    %642 = vmatpush1.msra.mxu0 0.0
    %643 = vmatprep.subr.mxu0 0.0
    %644 = vmatpush1.msra.mxu0 0.0
    %645 = vmatprep.subr.mxu0 0.0
    %646 = vmatpush1.msra.mxu0 0.0
    %647 = vmatprep.subr.mxu0 0.0
    %648 = vmatpush1.msra.mxu0 0.0
    %649 = vmatprep.subr.mxu0 0.0
    %650 = vmatpush1.msra.mxu0 0.0
    %651 = vmatprep.subr.mxu0 0.0
    %652 = vmatpush1.msra.mxu0 0.0
    %653 = vmatprep.subr.mxu0 0.0
    %654 = vmatpush1.msra.mxu0 0.0
    %655 = vmatprep.subr.mxu0 0.0
    %656 = vmatpush1.msra.mxu0 0.0
    %657 = vmatprep.subr.mxu0 0.0
    %658 = vmatpush1.msra.mxu0 0.0
    %659 = vmatprep.subr.mxu0 0.0
    %660 = vmatpush1.msra.mxu0 0.0
    %661 = vmatprep.subr.mxu0 0.0
    %662 = vmatpush1.msra.mxu0 0.0
    %663 = vmatprep.subr.mxu0 0.0
    %664 = vmatpush1.msra.mxu0 0.0
    %665 = vmatprep.mubr.f32.mxu0 0.0
    %666 = vmatmul.mubr.f32.gmra.mrb[0].mxu0 %v465
    %v667 = vpop.f32.mrb[0].mxu0
    %v668 = vadd.f32 %v455, %v667
    %v669 = vpop.f32.mrb[0].mxu0
    %v670 = vadd.f32 %v459, %v669
    %671 = vmatprep.mubr.f32.mxu0 0.0
    %672 = vmatmul.mubr.f32.gmra.mrb[0].mxu0 %v468
    %v673 = vpop.f32.mrb[0].mxu0
    %v674 = vadd.f32 %v455, %v673
    %v675 = vpop.f32.mrb[0].mxu0
    %v676 = vadd.f32 %v459, %v675
    %677 = vmatprep.mubr.f32.mxu0 0.0
    %678 = vmatmul.mubr.f32.gmra.mrb[0].mxu0 %v471
    %v679 = vpop.f32.mrb[0].mxu0
    %v680 = vadd.f32 %v455, %v679
    %v681 = vpop.f32.mrb[0].mxu0
    %v682 = vadd.f32 %v459, %v681
    %683 = vmatprep.mubr.f32.mxu0 0.0
    %684 = vmatmul.mubr.f32.gmra.mrb[0].mxu0 %v474
    %v685 = vpop.f32.mrb[0].mxu0
    %v686 = vadd.f32 %v455, %v685
    %v687 = vpop.f32.mrb[0].mxu0
    %v688 = vadd.f32 %v459, %v687
    %689 = vmatprep.mubr.f32.mxu0 0.0
    %690 = vmatmul.mubr.f32.gmra.mrb[0].mxu0 %v477
    %v691 = vpop.f32.mrb[0].mxu0
    %v692 = vadd.f32 %v455, %v691
    %v693 = vpop.f32.mrb[0].mxu0
    %v694 = vadd.f32 %v459, %v693
    %695 = vmatprep.mubr.f32.mxu0 0.0
    %696 = vmatmul.mubr.f32.gmra.mrb[0].mxu0 %v480
    %v697 = vpop.f32.mrb[0].mxu0
    %v698 = vadd.f32 %v455, %v697
    %v699 = vpop.f32.mrb[0].mxu0
    %v700 = vadd.f32 %v459, %v699
    %701 = vmatprep.mubr.f32.mxu0 0.0
    %702 = vmatmul.mubr.f32.gmra.mrb[0].mxu0 %v483
    %v703 = vpop.f32.mrb[0].mxu0
    %v704 = vadd.f32 %v455, %v703
    %v705 = vpop.f32.mrb[0].mxu0
    %v706 = vadd.f32 %v459, %v705
    %707 = vmatprep.mubr.f32.mxu0 0.0
    %708 = vmatmul.mubr.f32.gmra.mrb[0].mxu0 %v486
    %v709 = vpop.f32.mrb[0].mxu0
    %v710 = vadd.f32 %v455, %v709
    %v711 = vpop.f32.mrb[0].mxu0
    %v712 = vadd.f32 %v459, %v711
    %713 = vdwg.mxu0
    %714 = vst [vmem:[#allocation3] sm:$0xff] %v555
    %715 = vst [vmem:[#allocation3 + $0x8] sm:$0xff] %v557
    %716 = vst [vmem:[#allocation3 + $0x10] sm:$0xff] %v668
    %717 = vst [vmem:[#allocation3 + $0x18] sm:$0xff] %v670
    %718 = vst [vmem:[#allocation3 + $0x20] sm:$0xff] %v561
    %719 = vst [vmem:[#allocation3 + $0x28] sm:$0xff] %v563
    %720 = vst [vmem:[#allocation3 + $0x30] sm:$0xff] %v674
    %721 = vst [vmem:[#allocation3 + $0x38] sm:$0xff] %v676
    %722 = vst [vmem:[#allocation3 + $0x40] sm:$0xff] %v567
    %723 = vst [vmem:[#allocation3 + $0x48] sm:$0xff] %v569
    %724 = vst [vmem:[#allocation3 + $0x50] sm:$0xff] %v680
    %725 = vst [vmem:[#allocation3 + $0x58] sm:$0xff] %v682
    %726 = vst [vmem:[#allocation3 + $0x60] sm:$0xff] %v573
    %727 = vst [vmem:[#allocation3 + $0x68] sm:$0xff] %v575
    %728 = vst [vmem:[#allocation3 + $0x70] sm:$0xff] %v686
    %729 = vst [vmem:[#allocation3 + $0x78] sm:$0xff] %v688
    %730 = vst [vmem:[#allocation3 + $0x80] sm:$0xff] %v579
    %731 = vst [vmem:[#allocation3 + $0x88] sm:$0xff] %v581
    %732 = vst [vmem:[#allocation3 + $0x90] sm:$0xff] %v692
    %733 = vst [vmem:[#allocation3 + $0x98] sm:$0xff] %v694
    %734 = vst [vmem:[#allocation3 + $0xa0] sm:$0xff] %v585
    %735 = vst [vmem:[#allocation3 + $0xa8] sm:$0xff] %v587
    %736 = vst [vmem:[#allocation3 + $0xb0] sm:$0xff] %v698
    %737 = vst [vmem:[#allocation3 + $0xb8] sm:$0xff] %v700
    %738 = vst [vmem:[#allocation3 + $0xc0] sm:$0xff] %v591
    %739 = vst [vmem:[#allocation3 + $0xc8] sm:$0xff] %v593
    %740 = vst [vmem:[#allocation3 + $0xd0] sm:$0xff] %v704
    %741 = vst [vmem:[#allocation3 + $0xd8] sm:$0xff] %v706
    %742 = vst [vmem:[#allocation3 + $0xe0] sm:$0xff] %v597
    %743 = vst [vmem:[#allocation3 + $0xe8] sm:$0xff] %v599
    %744 = vst [vmem:[#allocation3 + $0xf0] sm:$0xff] %v710
    %745 = vst [vmem:[#allocation3 + $0xf8] sm:$0xff] %v712
    %v746 = vld [vmem:[#allocation7] sm:$0xff]
    %v747 = vld [vmem:[#allocation7 + $0x8] sm:$0xff]
    %v748 = vld [vmem:[#allocation7 + $0x10] sm:$0xff]
    %v749 = vld [vmem:[#allocation7 + $0x18] sm:$0xff]
    %v750 = vld [vmem:[#allocation7 + $0x20] sm:$0xff]
    %v751 = vld [vmem:[#allocation7 + $0x28] sm:$0xff]
    %v752 = vld [vmem:[#allocation7 + $0x30] sm:$0xff]
    %v753 = vld [vmem:[#allocation7 + $0x38] sm:$0xff]
    %v754 = vld [vmem:[#allocation7 + $0x40] sm:$0xff]
    %v755 = vld [vmem:[#allocation7 + $0x48] sm:$0xff]
    %v756 = vld [vmem:[#allocation7 + $0x50] sm:$0xff]
    %v757 = vld [vmem:[#allocation7 + $0x58] sm:$0xff]
    %v758 = vld [vmem:[#allocation7 + $0x60] sm:$0xff]
    %v759 = vld [vmem:[#allocation7 + $0x68] sm:$0xff]
    %v760 = vld [vmem:[#allocation7 + $0x70] sm:$0xff]
    %v761 = vld [vmem:[#allocation7 + $0x78] sm:$0xff]
    %v762 = vld [vmem:[#allocation7 + $0x80] sm:$0xff]
    %v763 = vld [vmem:[#allocation7 + $0x88] sm:$0xff]
    %v764 = vld [vmem:[#allocation7 + $0x90] sm:$0xff]
    %v765 = vld [vmem:[#allocation7 + $0x98] sm:$0xff]
    %v766 = vld [vmem:[#allocation7 + $0xa0] sm:$0xff]
    %v767 = vld [vmem:[#allocation7 + $0xa8] sm:$0xff]
    %v768 = vld [vmem:[#allocation7 + $0xb0] sm:$0xff]
    %v769 = vld [vmem:[#allocation7 + $0xb8] sm:$0xff]
    %v770 = vld [vmem:[#allocation7 + $0xc0] sm:$0xff]
    %v771 = vld [vmem:[#allocation7 + $0xc8] sm:$0xff]
    %v772 = vld [vmem:[#allocation7 + $0xd0] sm:$0xff]
    %v773 = vld [vmem:[#allocation7 + $0xd8] sm:$0xff]
    %v774 = vld [vmem:[#allocation7 + $0xe0] sm:$0xff]
    %v775 = vld [vmem:[#allocation7 + $0xe8] sm:$0xff]
    %v776 = vld [vmem:[#allocation7 + $0xf0] sm:$0xff]
    %v777 = vld [vmem:[#allocation7 + $0xf8] sm:$0xff]
    %v778 = vld [vmem:[#allocation7 + $0x100] sm:$0xff]
    %v779 = vld [vmem:[#allocation7 + $0x108] sm:$0xff]
    %v780 = vld [vmem:[#allocation7 + $0x110] sm:$0xff]
    %v781 = vld [vmem:[#allocation7 + $0x118] sm:$0xff]
    %v782 = vld [vmem:[#allocation7 + $0x120] sm:$0xff]
    %v783 = vld [vmem:[#allocation7 + $0x128] sm:$0xff]
    %v784 = vld [vmem:[#allocation7 + $0x130] sm:$0xff]
    %v785 = vld [vmem:[#allocation7 + $0x138] sm:$0xff]
    %v786 = vld [vmem:[#allocation7 + $0x140] sm:$0xff]
    %v787 = vld [vmem:[#allocation7 + $0x148] sm:$0xff]
    %v788 = vld [vmem:[#allocation7 + $0x150] sm:$0xff]
    %v789 = vld [vmem:[#allocation7 + $0x158] sm:$0xff]
    %v790 = vld [vmem:[#allocation7 + $0x160] sm:$0xff]
    %v791 = vld [vmem:[#allocation7 + $0x168] sm:$0xff]
    %v792 = vld [vmem:[#allocation7 + $0x170] sm:$0xff]
    %v793 = vld [vmem:[#allocation7 + $0x178] sm:$0xff]
    %v794 = vld [vmem:[#allocation7 + $0x180] sm:$0xff]
    %v795 = vld [vmem:[#allocation7 + $0x188] sm:$0xff]
    %v796 = vld [vmem:[#allocation7 + $0x190] sm:$0xff]
    %v797 = vld [vmem:[#allocation7 + $0x198] sm:$0xff]
    %v798 = vld [vmem:[#allocation7 + $0x1a0] sm:$0xff]
    %v799 = vld [vmem:[#allocation7 + $0x1a8] sm:$0xff]
    %v800 = vld [vmem:[#allocation7 + $0x1b0] sm:$0xff]
    %v801 = vld [vmem:[#allocation7 + $0x1b8] sm:$0xff]
    %v802 = vld [vmem:[#allocation7 + $0x1c0] sm:$0xff]
    %v803 = vld [vmem:[#allocation7 + $0x1c8] sm:$0xff]
    %v804 = vld [vmem:[#allocation7 + $0x1d0] sm:$0xff]
    %v805 = vld [vmem:[#allocation7 + $0x1d8] sm:$0xff]
    %v806 = vld [vmem:[#allocation7 + $0x1e0] sm:$0xff]
    %v807 = vld [vmem:[#allocation7 + $0x1e8] sm:$0xff]
    %v808 = vld [vmem:[#allocation7 + $0x1f0] sm:$0xff]
    %v809 = vld [vmem:[#allocation7 + $0x1f8] sm:$0xff]
    %s810 = scalar_lea.vmem [#allocation7], 512
    %v811 = vld [vmem:[%s810] sm:$0xff]
    %v812 = vld [vmem:[%s810 + $0x8] sm:$0xff]
    %v813 = vld [vmem:[%s810 + $0x10] sm:$0xff]
    %v814 = vld [vmem:[%s810 + $0x18] sm:$0xff]
    %v815 = vld [vmem:[%s810 + $0x20] sm:$0xff]
    %v816 = vld [vmem:[%s810 + $0x28] sm:$0xff]
    %v817 = vld [vmem:[%s810 + $0x30] sm:$0xff]
    %v818 = vld [vmem:[%s810 + $0x38] sm:$0xff]
    %v819 = vld [vmem:[%s810 + $0x40] sm:$0xff]
    %v820 = vld [vmem:[%s810 + $0x48] sm:$0xff]
    %v821 = vld [vmem:[%s810 + $0x50] sm:$0xff]
    %v822 = vld [vmem:[%s810 + $0x58] sm:$0xff]
    %v823 = vld [vmem:[%s810 + $0x60] sm:$0xff]
    %v824 = vld [vmem:[%s810 + $0x68] sm:$0xff]
    %v825 = vld [vmem:[%s810 + $0x70] sm:$0xff]
    %v826 = vld [vmem:[%s810 + $0x78] sm:$0xff]
    %v827 = vld [vmem:[%s810 + $0x80] sm:$0xff]
    %v828 = vld [vmem:[%s810 + $0x88] sm:$0xff]
    %v829 = vld [vmem:[%s810 + $0x90] sm:$0xff]
    %v830 = vld [vmem:[%s810 + $0x98] sm:$0xff]
    %v831 = vld [vmem:[%s810 + $0xa0] sm:$0xff]
    %v832 = vld [vmem:[%s810 + $0xa8] sm:$0xff]
    %v833 = vld [vmem:[%s810 + $0xb0] sm:$0xff]
    %v834 = vld [vmem:[%s810 + $0xb8] sm:$0xff]
    %v835 = vld [vmem:[%s810 + $0xc0] sm:$0xff]
    %v836 = vld [vmem:[%s810 + $0xc8] sm:$0xff]
    %v837 = vld [vmem:[%s810 + $0xd0] sm:$0xff]
    %v838 = vld [vmem:[%s810 + $0xd8] sm:$0xff]
    %v839 = vld [vmem:[%s810 + $0xe0] sm:$0xff]
    %v840 = vld [vmem:[%s810 + $0xe8] sm:$0xff]
    %v841 = vld [vmem:[%s810 + $0xf0] sm:$0xff]
    %v842 = vld [vmem:[%s810 + $0xf8] sm:$0xff]
    %v843 = vld [vmem:[%s810 + $0x100] sm:$0xff]
    %v844 = vld [vmem:[%s810 + $0x108] sm:$0xff]
    %v845 = vld [vmem:[%s810 + $0x110] sm:$0xff]
    %v846 = vld [vmem:[%s810 + $0x118] sm:$0xff]
    %v847 = vld [vmem:[%s810 + $0x120] sm:$0xff]
    %v848 = vld [vmem:[%s810 + $0x128] sm:$0xff]
    %v849 = vld [vmem:[%s810 + $0x130] sm:$0xff]
    %v850 = vld [vmem:[%s810 + $0x138] sm:$0xff]
    %v851 = vld [vmem:[%s810 + $0x140] sm:$0xff]
    %v852 = vld [vmem:[%s810 + $0x148] sm:$0xff]
    %v853 = vld [vmem:[%s810 + $0x150] sm:$0xff]
    %v854 = vld [vmem:[%s810 + $0x158] sm:$0xff]
    %v855 = vld [vmem:[%s810 + $0x160] sm:$0xff]
    %v856 = vld [vmem:[%s810 + $0x168] sm:$0xff]
    %v857 = vld [vmem:[%s810 + $0x170] sm:$0xff]
    %v858 = vld [vmem:[%s810 + $0x178] sm:$0xff]
    %v859 = vld [vmem:[%s810 + $0x180] sm:$0xff]
    %v860 = vld [vmem:[%s810 + $0x188] sm:$0xff]
    %v861 = vld [vmem:[%s810 + $0x190] sm:$0xff]
    %v862 = vld [vmem:[%s810 + $0x198] sm:$0xff]
    %v863 = vld [vmem:[%s810 + $0x1a0] sm:$0xff]
    %v864 = vld [vmem:[%s810 + $0x1a8] sm:$0xff]
    %v865 = vld [vmem:[%s810 + $0x1b0] sm:$0xff]
    %v866 = vld [vmem:[%s810 + $0x1b8] sm:$0xff]
    %v867 = vld [vmem:[%s810 + $0x1c0] sm:$0xff]
    %v868 = vld [vmem:[%s810 + $0x1c8] sm:$0xff]
    %v869 = vld [vmem:[%s810 + $0x1d0] sm:$0xff]
    %v870 = vld [vmem:[%s810 + $0x1d8] sm:$0xff]
    %v871 = vld [vmem:[%s810 + $0x1e0] sm:$0xff]
    %v872 = vld [vmem:[%s810 + $0x1e8] sm:$0xff]
    %v873 = vld [vmem:[%s810 + $0x1f0] sm:$0xff]
    %v874 = vld [vmem:[%s810 + $0x1f8] sm:$0xff]
    %v875 = vld [vmem:[#allocation12] sm:$0xff]
    %v876 = vld [vmem:[#allocation13] sm:$0xff]
    %s877 = scalar_lea.vmem [#allocation12], 8
    %v878 = vld [vmem:[%s877] sm:$0xff]
    %s879 = scalar_lea.vmem [#allocation13], 8
    %v880 = vld [vmem:[%s879] sm:$0xff]
    %s881 = smul.u32 0, 4
    %s882 = smul.addr %s881, 8
    %s883 = scalar_lea.vmem [#allocation2], %s882
    %v884 = vld [vmem:[%s883] sm:$0xff]
    %v885 = vld [vmem:[%s883 + $0x8] sm:$0xff]
    %v886 = vld [vmem:[%s883 + $0x10] sm:$0xff]
    %v887 = vld [vmem:[%s883 + $0x18] sm:$0xff]
    %888 = vmatprep.subr.mxu0 %v747
    %889 = vmatpush1.msra.mxu0 %v746
    %890 = vmatprep.subr.mxu0 %v751
    %891 = vmatpush1.msra.mxu0 %v750
    %892 = vmatprep.subr.mxu0 %v755
    %893 = vmatpush1.msra.mxu0 %v754
    %894 = vmatprep.subr.mxu0 %v759
    %895 = vmatpush1.msra.mxu0 %v758
    %896 = vmatprep.subr.mxu0 %v763
    %897 = vmatpush1.msra.mxu0 %v762
    %898 = vmatprep.subr.mxu0 %v767
    %899 = vmatpush1.msra.mxu0 %v766
    %900 = vmatprep.subr.mxu0 %v771
    %901 = vmatpush1.msra.mxu0 %v770
    %902 = vmatprep.subr.mxu0 %v775
    %903 = vmatpush1.msra.mxu0 %v774
    %904 = vmatprep.subr.mxu0 %v779
    %905 = vmatpush1.msra.mxu0 %v778
    %906 = vmatprep.subr.mxu0 %v783
    %907 = vmatpush1.msra.mxu0 %v782
    %908 = vmatprep.subr.mxu0 %v787
    %909 = vmatpush1.msra.mxu0 %v786
    %910 = vmatprep.subr.mxu0 %v791
    %911 = vmatpush1.msra.mxu0 %v790
    %912 = vmatprep.subr.mxu0 %v795
    %913 = vmatpush1.msra.mxu0 %v794
    %914 = vmatprep.subr.mxu0 %v799
    %915 = vmatpush1.msra.mxu0 %v798
    %916 = vmatprep.subr.mxu0 %v803
    %917 = vmatpush1.msra.mxu0 %v802
    %918 = vmatprep.subr.mxu0 %v807
    %919 = vmatpush1.msra.mxu0 %v806
    %920 = vmatprep.subr.mxu0 0.0
    %921 = vmatpush1.msra.mxu0 0.0
    %922 = vmatprep.subr.mxu0 0.0
    %923 = vmatpush1.msra.mxu0 0.0
    %924 = vmatprep.subr.mxu0 0.0
    %925 = vmatpush1.msra.mxu0 0.0
    %926 = vmatprep.subr.mxu0 0.0
    %927 = vmatpush1.msra.mxu0 0.0
    %928 = vmatprep.subr.mxu0 0.0
    %929 = vmatpush1.msra.mxu0 0.0
    %930 = vmatprep.subr.mxu0 0.0
    %931 = vmatpush1.msra.mxu0 0.0
    %932 = vmatprep.subr.mxu0 0.0
    %933 = vmatpush1.msra.mxu0 0.0
    %934 = vmatprep.subr.mxu0 0.0
    %935 = vmatpush1.msra.mxu0 0.0
    %936 = vmatprep.subr.mxu0 0.0
    %937 = vmatpush1.msra.mxu0 0.0
    %938 = vmatprep.subr.mxu0 0.0
    %939 = vmatpush1.msra.mxu0 0.0
    %940 = vmatprep.subr.mxu0 0.0
    %941 = vmatpush1.msra.mxu0 0.0
    %942 = vmatprep.subr.mxu0 0.0
    %943 = vmatpush1.msra.mxu0 0.0
    %944 = vmatprep.subr.mxu0 0.0
    %945 = vmatpush1.msra.mxu0 0.0
    %946 = vmatprep.subr.mxu0 0.0
    %947 = vmatpush1.msra.mxu0 0.0
    %948 = vmatprep.subr.mxu0 0.0
    %949 = vmatpush1.msra.mxu0 0.0
    %950 = vmatprep.subr.mxu0 0.0
    %951 = vmatpush1.msra.mxu0 0.0
    %952 = vmatprep.mubr.f32.mxu0 0.0
    %953 = vmatmul.mubr.f32.gmra.mrb[0].mxu0 %v875
    %v954 = vpop.f32.mrb[0].mxu0
    %v955 = vadd.f32 0.0, %v954
    %v956 = vpop.f32.mrb[0].mxu0
    %v957 = vadd.f32 0.0, %v956
    %958 = vdwg.mxu0
    %959 = vmatprep.subr.mxu0 %v749
    %960 = vmatpush1.msra.mxu0 %v748
    %961 = vmatprep.subr.mxu0 %v753
    %962 = vmatpush1.msra.mxu0 %v752
    %963 = vmatprep.subr.mxu0 %v757
    %964 = vmatpush1.msra.mxu0 %v756
    %965 = vmatprep.subr.mxu0 %v761
    %966 = vmatpush1.msra.mxu0 %v760
    %967 = vmatprep.subr.mxu0 %v765
    %968 = vmatpush1.msra.mxu0 %v764
    %969 = vmatprep.subr.mxu0 %v769
    %970 = vmatpush1.msra.mxu0 %v768
    %971 = vmatprep.subr.mxu0 %v773
    %972 = vmatpush1.msra.mxu0 %v772
    %973 = vmatprep.subr.mxu0 %v777
    %974 = vmatpush1.msra.mxu0 %v776
    %975 = vmatprep.subr.mxu0 %v781
    %976 = vmatpush1.msra.mxu0 %v780
    %977 = vmatprep.subr.mxu0 %v785
    %978 = vmatpush1.msra.mxu0 %v784
    %979 = vmatprep.subr.mxu0 %v789
    %980 = vmatpush1.msra.mxu0 %v788
    %981 = vmatprep.subr.mxu0 %v793
    %982 = vmatpush1.msra.mxu0 %v792
    %983 = vmatprep.subr.mxu0 %v797
    %984 = vmatpush1.msra.mxu0 %v796
    %985 = vmatprep.subr.mxu0 %v801
    %986 = vmatpush1.msra.mxu0 %v800
    %987 = vmatprep.subr.mxu0 %v805
    %988 = vmatpush1.msra.mxu0 %v804
    %989 = vmatprep.subr.mxu0 %v809
    %990 = vmatpush1.msra.mxu0 %v808
    %991 = vmatprep.subr.mxu0 0.0
    %992 = vmatpush1.msra.mxu0 0.0
    %993 = vmatprep.subr.mxu0 0.0
    %994 = vmatpush1.msra.mxu0 0.0
    %995 = vmatprep.subr.mxu0 0.0
    %996 = vmatpush1.msra.mxu0 0.0
    %997 = vmatprep.subr.mxu0 0.0
    %998 = vmatpush1.msra.mxu0 0.0
    %999 = vmatprep.subr.mxu0 0.0
    %1000 = vmatpush1.msra.mxu0 0.0
    %1001 = vmatprep.subr.mxu0 0.0
    %1002 = vmatpush1.msra.mxu0 0.0
    %1003 = vmatprep.subr.mxu0 0.0
    %1004 = vmatpush1.msra.mxu0 0.0
    %1005 = vmatprep.subr.mxu0 0.0
    %1006 = vmatpush1.msra.mxu0 0.0
    %1007 = vmatprep.subr.mxu0 0.0
    %1008 = vmatpush1.msra.mxu0 0.0
    %1009 = vmatprep.subr.mxu0 0.0
    %1010 = vmatpush1.msra.mxu0 0.0
    %1011 = vmatprep.subr.mxu0 0.0
    %1012 = vmatpush1.msra.mxu0 0.0
    %1013 = vmatprep.subr.mxu0 0.0
    %1014 = vmatpush1.msra.mxu0 0.0
    %1015 = vmatprep.subr.mxu0 0.0
    %1016 = vmatpush1.msra.mxu0 0.0
    %1017 = vmatprep.subr.mxu0 0.0
    %1018 = vmatpush1.msra.mxu0 0.0
    %1019 = vmatprep.subr.mxu0 0.0
    %1020 = vmatpush1.msra.mxu0 0.0
    %1021 = vmatprep.subr.mxu0 0.0
    %1022 = vmatpush1.msra.mxu0 0.0
    %1023 = vmatprep.mubr.f32.mxu0 0.0
    %1024 = vmatmul.mubr.f32.gmra.mrb[0].mxu0 %v875
    %v1025 = vpop.f32.mrb[0].mxu0
    %v1026 = vadd.f32 0.0, %v1025
    %v1027 = vpop.f32.mrb[0].mxu0
    %v1028 = vadd.f32 0.0, %v1027
    %1029 = vdwg.mxu0
    %v1030 = vadd.f32 %v884, %v955
    %v1031 = vadd.f32 %v885, %v957
    %v1032 = vadd.f32 %v886, %v1026
    %v1033 = vadd.f32 %v887, %v1028
    %s1034 = smul.u32 7, 4
    %s1035 = smul.addr %s1034, 8
    %s1036 = scalar_lea.vmem [#allocation3], %s1035
    %v1037 = vld [vmem:[%s1036] sm:$0xff]
    %v1038 = vld [vmem:[%s1036 + $0x8] sm:$0xff]
    %v1039 = vld [vmem:[%s1036 + $0x10] sm:$0xff]
    %v1040 = vld [vmem:[%s1036 + $0x18] sm:$0xff]
    %1041 = vmatprep.subr.mxu0 %v812
    %1042 = vmatpush1.msra.mxu0 %v811
    %1043 = vmatprep.subr.mxu0 %v816
    %1044 = vmatpush1.msra.mxu0 %v815
    %1045 = vmatprep.subr.mxu0 %v820
    %1046 = vmatpush1.msra.mxu0 %v819
    %1047 = vmatprep.subr.mxu0 %v824
    %1048 = vmatpush1.msra.mxu0 %v823
    %1049 = vmatprep.subr.mxu0 %v828
    %1050 = vmatpush1.msra.mxu0 %v827
    %1051 = vmatprep.subr.mxu0 %v832
    %1052 = vmatpush1.msra.mxu0 %v831
    %1053 = vmatprep.subr.mxu0 %v836
    %1054 = vmatpush1.msra.mxu0 %v835
    %1055 = vmatprep.subr.mxu0 %v840
    %1056 = vmatpush1.msra.mxu0 %v839
    %1057 = vmatprep.subr.mxu0 %v844
    %1058 = vmatpush1.msra.mxu0 %v843
    %1059 = vmatprep.subr.mxu0 %v848
    %1060 = vmatpush1.msra.mxu0 %v847
    %1061 = vmatprep.subr.mxu0 %v852
    %1062 = vmatpush1.msra.mxu0 %v851
    %1063 = vmatprep.subr.mxu0 %v856
    %1064 = vmatpush1.msra.mxu0 %v855
    %1065 = vmatprep.subr.mxu0 %v860
    %1066 = vmatpush1.msra.mxu0 %v859
    %1067 = vmatprep.subr.mxu0 %v864
    %1068 = vmatpush1.msra.mxu0 %v863
    %1069 = vmatprep.subr.mxu0 %v868
    %1070 = vmatpush1.msra.mxu0 %v867
    %1071 = vmatprep.subr.mxu0 %v872
    %1072 = vmatpush1.msra.mxu0 %v871
    %1073 = vmatprep.subr.mxu0 0.0
    %1074 = vmatpush1.msra.mxu0 0.0
    %1075 = vmatprep.subr.mxu0 0.0
    %1076 = vmatpush1.msra.mxu0 0.0
    %1077 = vmatprep.subr.mxu0 0.0
    %1078 = vmatpush1.msra.mxu0 0.0
    %1079 = vmatprep.subr.mxu0 0.0
    %1080 = vmatpush1.msra.mxu0 0.0
    %1081 = vmatprep.subr.mxu0 0.0
    %1082 = vmatpush1.msra.mxu0 0.0
    %1083 = vmatprep.subr.mxu0 0.0
    %1084 = vmatpush1.msra.mxu0 0.0
    %1085 = vmatprep.subr.mxu0 0.0
    %1086 = vmatpush1.msra.mxu0 0.0
    %1087 = vmatprep.subr.mxu0 0.0
    %1088 = vmatpush1.msra.mxu0 0.0
    %1089 = vmatprep.subr.mxu0 0.0
    %1090 = vmatpush1.msra.mxu0 0.0
    %1091 = vmatprep.subr.mxu0 0.0
    %1092 = vmatpush1.msra.mxu0 0.0
    %1093 = vmatprep.subr.mxu0 0.0
    %1094 = vmatpush1.msra.mxu0 0.0
    %1095 = vmatprep.subr.mxu0 0.0
    %1096 = vmatpush1.msra.mxu0 0.0
    %1097 = vmatprep.subr.mxu0 0.0
    %1098 = vmatpush1.msra.mxu0 0.0
    %1099 = vmatprep.subr.mxu0 0.0
    %1100 = vmatpush1.msra.mxu0 0.0
    %1101 = vmatprep.subr.mxu0 0.0
    %1102 = vmatpush1.msra.mxu0 0.0
    %1103 = vmatprep.subr.mxu0 0.0
    %1104 = vmatpush1.msra.mxu0 0.0
    %1105 = vmatprep.mubr.f32.mxu0 0.0
    %1106 = vmatmul.mubr.f32.gmra.mrb[0].mxu0 %v878
    %v1107 = vpop.f32.mrb[0].mxu0
    %v1108 = vadd.f32 0.0, %v1107
    %v1109 = vpop.f32.mrb[0].mxu0
    %v1110 = vadd.f32 0.0, %v1109
    %1111 = vdwg.mxu0
    %1112 = vmatprep.subr.mxu0 %v814
    %1113 = vmatpush1.msra.mxu0 %v813
    %1114 = vmatprep.subr.mxu0 %v818
    %1115 = vmatpush1.msra.mxu0 %v817
    %1116 = vmatprep.subr.mxu0 %v822
    %1117 = vmatpush1.msra.mxu0 %v821
    %1118 = vmatprep.subr.mxu0 %v826
    %1119 = vmatpush1.msra.mxu0 %v825
    %1120 = vmatprep.subr.mxu0 %v830
    %1121 = vmatpush1.msra.mxu0 %v829
    %1122 = vmatprep.subr.mxu0 %v834
    %1123 = vmatpush1.msra.mxu0 %v833
    %1124 = vmatprep.subr.mxu0 %v838
    %1125 = vmatpush1.msra.mxu0 %v837
    %1126 = vmatprep.subr.mxu0 %v842
    %1127 = vmatpush1.msra.mxu0 %v841
    %1128 = vmatprep.subr.mxu0 %v846
    %1129 = vmatpush1.msra.mxu0 %v845
    %1130 = vmatprep.subr.mxu0 %v850
    %1131 = vmatpush1.msra.mxu0 %v849
    %1132 = vmatprep.subr.mxu0 %v854
    %1133 = vmatpush1.msra.mxu0 %v853
    %1134 = vmatprep.subr.mxu0 %v858
    %1135 = vmatpush1.msra.mxu0 %v857
    %1136 = vmatprep.subr.mxu0 %v862
    %1137 = vmatpush1.msra.mxu0 %v861
    %1138 = vmatprep.subr.mxu0 %v866
    %1139 = vmatpush1.msra.mxu0 %v865
    %1140 = vmatprep.subr.mxu0 %v870
    %1141 = vmatpush1.msra.mxu0 %v869
    %1142 = vmatprep.subr.mxu0 %v874
    %1143 = vmatpush1.msra.mxu0 %v873
    %1144 = vmatprep.subr.mxu0 0.0
    %1145 = vmatpush1.msra.mxu0 0.0
    %1146 = vmatprep.subr.mxu0 0.0
    %1147 = vmatpush1.msra.mxu0 0.0
    %1148 = vmatprep.subr.mxu0 0.0
    %1149 = vmatpush1.msra.mxu0 0.0
    %1150 = vmatprep.subr.mxu0 0.0
    %1151 = vmatpush1.msra.mxu0 0.0
    %1152 = vmatprep.subr.mxu0 0.0
    %1153 = vmatpush1.msra.mxu0 0.0
    %1154 = vmatprep.subr.mxu0 0.0
    %1155 = vmatpush1.msra.mxu0 0.0
    %1156 = vmatprep.subr.mxu0 0.0
    %1157 = vmatpush1.msra.mxu0 0.0
    %1158 = vmatprep.subr.mxu0 0.0
    %1159 = vmatpush1.msra.mxu0 0.0
    %1160 = vmatprep.subr.mxu0 0.0
    %1161 = vmatpush1.msra.mxu0 0.0
    %1162 = vmatprep.subr.mxu0 0.0
    %1163 = vmatpush1.msra.mxu0 0.0
    %1164 = vmatprep.subr.mxu0 0.0
    %1165 = vmatpush1.msra.mxu0 0.0
    %1166 = vmatprep.subr.mxu0 0.0
    %1167 = vmatpush1.msra.mxu0 0.0
    %1168 = vmatprep.subr.mxu0 0.0
    %1169 = vmatpush1.msra.mxu0 0.0
    %1170 = vmatprep.subr.mxu0 0.0
    %1171 = vmatpush1.msra.mxu0 0.0
    %1172 = vmatprep.subr.mxu0 0.0
    %1173 = vmatpush1.msra.mxu0 0.0
    %1174 = vmatprep.subr.mxu0 0.0
    %1175 = vmatpush1.msra.mxu0 0.0
    %1176 = vmatprep.mubr.f32.mxu0 0.0
    %1177 = vmatmul.mubr.f32.gmra.mrb[0].mxu0 %v878
    %v1178 = vpop.f32.mrb[0].mxu0
    %v1179 = vadd.f32 0.0, %v1178
    %v1180 = vpop.f32.mrb[0].mxu0
    %v1181 = vadd.f32 0.0, %v1180
    %1182 = vdwg.mxu0
    %v1183 = vadd.f32 %v1037, %v1108
    %v1184 = vadd.f32 %v1038, %v1110
    %v1185 = vadd.f32 %v1039, %v1179
    %v1186 = vadd.f32 %v1040, %v1181
    %v1187 = vxor.u32 %v1030, 2147483648
    %v1188 = vxor.u32 %v1031, 2147483648
    %v1189 = vxor.u32 %v1032, 2147483648
    %v1190 = vmul.f32 %v1187, 1.442695
    %v1191 = vpow.pop %v1190
    %v1192 = vmul.f32 %v1188, 1.442695
    %v1193 = vpow.pop %v1192
    %v1194 = vmul.f32 %v1189, 1.442695
    %v1195 = vpow.pop %v1194
    %v1196 = vadd.f32 %v1191, 1.0
    %v1197 = vadd.f32 %v1193, 1.0
    %v1198 = vadd.f32 %v1195, 1.0
    %v1199 = vrcp.pop %v1196
    %v1200 = vmul.f32 1.0, %v1199
    %v1201 = vrcp.pop %v1197
    %v1202 = vmul.f32 1.0, %v1201
    %v1203 = vrcp.pop %v1198
    %v1204 = vmul.f32 1.0, %v1203
    %v1205 = vtanh.pop %v1033
    %v1206 = vmul.f32 %v1202, %v876
    %v1207 = vmul.f32 %v1200, %v1205
    %v1208 = vadd.f32 %v1206, %v1207
    %v1209 = vtanh.pop %v1208
    %v1210 = vmul.f32 %v1204, %v1209
    %v1211 = vxor.u32 %v1183, 2147483648
    %v1212 = vxor.u32 %v1184, 2147483648
    %v1213 = vxor.u32 %v1185, 2147483648
    %v1214 = vmul.f32 %v1211, 1.442695
    %v1215 = vpow.pop %v1214
    %v1216 = vmul.f32 %v1212, 1.442695
    %v1217 = vpow.pop %v1216
    %v1218 = vmul.f32 %v1213, 1.442695
    %v1219 = vpow.pop %v1218
    %v1220 = vadd.f32 %v1215, 1.0
    %v1221 = vadd.f32 %v1217, 1.0
    %v1222 = vadd.f32 %v1219, 1.0
    %v1223 = vrcp.pop %v1220
    %v1224 = vmul.f32 1.0, %v1223
    %v1225 = vrcp.pop %v1221
    %v1226 = vmul.f32 1.0, %v1225
    %v1227 = vrcp.pop %v1222
    %v1228 = vmul.f32 1.0, %v1227
    %v1229 = vtanh.pop %v1186
    %v1230 = vmul.f32 %v1226, %v880
    %v1231 = vmul.f32 %v1224, %v1229
    %v1232 = vadd.f32 %v1230, %v1231
    %v1233 = vtanh.pop %v1232
    %v1234 = vmul.f32 %v1228, %v1233
    %1235 = vst [vmem:[#allocation9] sm:$0xff] %v1210
    %s1236 = scalar_lea.vmem [#allocation10], 56
    %1237 = vst [vmem:[%s1236] sm:$0xff] %v1234
    %s1238 = smul.u32 1, 4
    %s1239 = smul.addr %s1238, 8
    %s1240 = scalar_lea.vmem [#allocation2], %s1239
    %v1241 = vld [vmem:[%s1240] sm:$0xff]
    %v1242 = vld [vmem:[%s1240 + $0x8] sm:$0xff]
    %v1243 = vld [vmem:[%s1240 + $0x10] sm:$0xff]
    %v1244 = vld [vmem:[%s1240 + $0x18] sm:$0xff]
    %1245 = vmatprep.subr.mxu0 %v747
    %1246 = vmatpush1.msra.mxu0 %v746
    %1247 = vmatprep.subr.mxu0 %v751
    %1248 = vmatpush1.msra.mxu0 %v750
    %1249 = vmatprep.subr.mxu0 %v755
    %1250 = vmatpush1.msra.mxu0 %v754
    %1251 = vmatprep.subr.mxu0 %v759
    %1252 = vmatpush1.msra.mxu0 %v758
    %1253 = vmatprep.subr.mxu0 %v763
    %1254 = vmatpush1.msra.mxu0 %v762
    %1255 = vmatprep.subr.mxu0 %v767
    %1256 = vmatpush1.msra.mxu0 %v766
    %1257 = vmatprep.subr.mxu0 %v771
    %1258 = vmatpush1.msra.mxu0 %v770
    %1259 = vmatprep.subr.mxu0 %v775
    %1260 = vmatpush1.msra.mxu0 %v774
    %1261 = vmatprep.subr.mxu0 %v779
    %1262 = vmatpush1.msra.mxu0 %v778
    %1263 = vmatprep.subr.mxu0 %v783
    %1264 = vmatpush1.msra.mxu0 %v782
    %1265 = vmatprep.subr.mxu0 %v787
    %1266 = vmatpush1.msra.mxu0 %v786
    %1267 = vmatprep.subr.mxu0 %v791
    %1268 = vmatpush1.msra.mxu0 %v790
    %1269 = vmatprep.subr.mxu0 %v795
    %1270 = vmatpush1.msra.mxu0 %v794
    %1271 = vmatprep.subr.mxu0 %v799
    %1272 = vmatpush1.msra.mxu0 %v798
    %1273 = vmatprep.subr.mxu0 %v803
    %1274 = vmatpush1.msra.mxu0 %v802
    %1275 = vmatprep.subr.mxu0 %v807
    %1276 = vmatpush1.msra.mxu0 %v806
    %1277 = vmatprep.subr.mxu0 0.0
    %1278 = vmatpush1.msra.mxu0 0.0
    %1279 = vmatprep.subr.mxu0 0.0
    %1280 = vmatpush1.msra.mxu0 0.0
    %1281 = vmatprep.subr.mxu0 0.0
    %1282 = vmatpush1.msra.mxu0 0.0
    %1283 = vmatprep.subr.mxu0 0.0
    %1284 = vmatpush1.msra.mxu0 0.0
    %1285 = vmatprep.subr.mxu0 0.0
    %1286 = vmatpush1.msra.mxu0 0.0
    %1287 = vmatprep.subr.mxu0 0.0
    %1288 = vmatpush1.msra.mxu0 0.0
    %1289 = vmatprep.subr.mxu0 0.0
    %1290 = vmatpush1.msra.mxu0 0.0
    %1291 = vmatprep.subr.mxu0 0.0
    %1292 = vmatpush1.msra.mxu0 0.0
    %1293 = vmatprep.subr.mxu0 0.0
    %1294 = vmatpush1.msra.mxu0 0.0
    %1295 = vmatprep.subr.mxu0 0.0
    %1296 = vmatpush1.msra.mxu0 0.0
    %1297 = vmatprep.subr.mxu0 0.0
    %1298 = vmatpush1.msra.mxu0 0.0
    %1299 = vmatprep.subr.mxu0 0.0
    %1300 = vmatpush1.msra.mxu0 0.0
    %1301 = vmatprep.subr.mxu0 0.0
    %1302 = vmatpush1.msra.mxu0 0.0
    %1303 = vmatprep.subr.mxu0 0.0
    %1304 = vmatpush1.msra.mxu0 0.0
    %1305 = vmatprep.subr.mxu0 0.0
    %1306 = vmatpush1.msra.mxu0 0.0
    %1307 = vmatprep.subr.mxu0 0.0
    %1308 = vmatpush1.msra.mxu0 0.0
    %1309 = vmatprep.mubr.f32.mxu0 0.0
    %1310 = vmatmul.mubr.f32.gmra.mrb[0].mxu0 %v1210
    %v1311 = vpop.f32.mrb[0].mxu0
    %v1312 = vadd.f32 0.0, %v1311
    %v1313 = vpop.f32.mrb[0].mxu0
    %v1314 = vadd.f32 0.0, %v1313
    %1315 = vdwg.mxu0
    %1316 = vmatprep.subr.mxu0 %v749
    %1317 = vmatpush1.msra.mxu0 %v748
    %1318 = vmatprep.subr.mxu0 %v753
    %1319 = vmatpush1.msra.mxu0 %v752
    %1320 = vmatprep.subr.mxu0 %v757
    %1321 = vmatpush1.msra.mxu0 %v756
    %1322 = vmatprep.subr.mxu0 %v761
    %1323 = vmatpush1.msra.mxu0 %v760
    %1324 = vmatprep.subr.mxu0 %v765
    %1325 = vmatpush1.msra.mxu0 %v764
    %1326 = vmatprep.subr.mxu0 %v769
    %1327 = vmatpush1.msra.mxu0 %v768
    %1328 = vmatprep.subr.mxu0 %v773
    %1329 = vmatpush1.msra.mxu0 %v772
    %1330 = vmatprep.subr.mxu0 %v777
    %1331 = vmatpush1.msra.mxu0 %v776
    %1332 = vmatprep.subr.mxu0 %v781
    %1333 = vmatpush1.msra.mxu0 %v780
    %1334 = vmatprep.subr.mxu0 %v785
    %1335 = vmatpush1.msra.mxu0 %v784
    %1336 = vmatprep.subr.mxu0 %v789
    %1337 = vmatpush1.msra.mxu0 %v788
    %1338 = vmatprep.subr.mxu0 %v793
    %1339 = vmatpush1.msra.mxu0 %v792
    %1340 = vmatprep.subr.mxu0 %v797
    %1341 = vmatpush1.msra.mxu0 %v796
    %1342 = vmatprep.subr.mxu0 %v801
    %1343 = vmatpush1.msra.mxu0 %v800
    %1344 = vmatprep.subr.mxu0 %v805
    %1345 = vmatpush1.msra.mxu0 %v804
    %1346 = vmatprep.subr.mxu0 %v809
    %1347 = vmatpush1.msra.mxu0 %v808
    %1348 = vmatprep.subr.mxu0 0.0
    %1349 = vmatpush1.msra.mxu0 0.0
    %1350 = vmatprep.subr.mxu0 0.0
    %1351 = vmatpush1.msra.mxu0 0.0
    %1352 = vmatprep.subr.mxu0 0.0
    %1353 = vmatpush1.msra.mxu0 0.0
    %1354 = vmatprep.subr.mxu0 0.0
    %1355 = vmatpush1.msra.mxu0 0.0
    %1356 = vmatprep.subr.mxu0 0.0
    %1357 = vmatpush1.msra.mxu0 0.0
    %1358 = vmatprep.subr.mxu0 0.0
    %1359 = vmatpush1.msra.mxu0 0.0
    %1360 = vmatprep.subr.mxu0 0.0
    %1361 = vmatpush1.msra.mxu0 0.0
    %1362 = vmatprep.subr.mxu0 0.0
    %1363 = vmatpush1.msra.mxu0 0.0
    %1364 = vmatprep.subr.mxu0 0.0
    %1365 = vmatpush1.msra.mxu0 0.0
    %1366 = vmatprep.subr.mxu0 0.0
    %1367 = vmatpush1.msra.mxu0 0.0
    %1368 = vmatprep.subr.mxu0 0.0
    %1369 = vmatpush1.msra.mxu0 0.0
    %1370 = vmatprep.subr.mxu0 0.0
    %1371 = vmatpush1.msra.mxu0 0.0
    %1372 = vmatprep.subr.mxu0 0.0
    %1373 = vmatpush1.msra.mxu0 0.0
    %1374 = vmatprep.subr.mxu0 0.0
    %1375 = vmatpush1.msra.mxu0 0.0
    %1376 = vmatprep.subr.mxu0 0.0
    %1377 = vmatpush1.msra.mxu0 0.0
    %1378 = vmatprep.subr.mxu0 0.0
    %1379 = vmatpush1.msra.mxu0 0.0
    %1380 = vmatprep.mubr.f32.mxu0 0.0
    %1381 = vmatmul.mubr.f32.gmra.mrb[0].mxu0 %v1210
    %v1382 = vpop.f32.mrb[0].mxu0
    %v1383 = vadd.f32 0.0, %v1382
    %v1384 = vpop.f32.mrb[0].mxu0
    %v1385 = vadd.f32 0.0, %v1384
    %1386 = vdwg.mxu0
    %v1387 = vadd.f32 %v1241, %v1312
    %v1388 = vadd.f32 %v1242, %v1314
    %v1389 = vadd.f32 %v1243, %v1383
    %v1390 = vadd.f32 %v1244, %v1385
    %s1391 = smul.u32 6, 4
    %s1392 = smul.addr %s1391, 8
    %s1393 = scalar_lea.vmem [#allocation3], %s1392
    %v1394 = vld [vmem:[%s1393] sm:$0xff]
    %v1395 = vld [vmem:[%s1393 + $0x8] sm:$0xff]
    %v1396 = vld [vmem:[%s1393 + $0x10] sm:$0xff]
    %v1397 = vld [vmem:[%s1393 + $0x18] sm:$0xff]
    %1398 = vmatprep.subr.mxu0 %v812
    %1399 = vmatpush1.msra.mxu0 %v811
    %1400 = vmatprep.subr.mxu0 %v816
    %1401 = vmatpush1.msra.mxu0 %v815
    %1402 = vmatprep.subr.mxu0 %v820
    %1403 = vmatpush1.msra.mxu0 %v819
    %1404 = vmatprep.subr.mxu0 %v824
    %1405 = vmatpush1.msra.mxu0 %v823
    %1406 = vmatprep.subr.mxu0 %v828
    %1407 = vmatpush1.msra.mxu0 %v827
    %1408 = vmatprep.subr.mxu0 %v832
    %1409 = vmatpush1.msra.mxu0 %v831
    %1410 = vmatprep.subr.mxu0 %v836
    %1411 = vmatpush1.msra.mxu0 %v835
    %1412 = vmatprep.subr.mxu0 %v840
    %1413 = vmatpush1.msra.mxu0 %v839
    %1414 = vmatprep.subr.mxu0 %v844
    %1415 = vmatpush1.msra.mxu0 %v843
    %1416 = vmatprep.subr.mxu0 %v848
    %1417 = vmatpush1.msra.mxu0 %v847
    %1418 = vmatprep.subr.mxu0 %v852
    %1419 = vmatpush1.msra.mxu0 %v851
    %1420 = vmatprep.subr.mxu0 %v856
    %1421 = vmatpush1.msra.mxu0 %v855
    %1422 = vmatprep.subr.mxu0 %v860
    %1423 = vmatpush1.msra.mxu0 %v859
    %1424 = vmatprep.subr.mxu0 %v864
    %1425 = vmatpush1.msra.mxu0 %v863
    %1426 = vmatprep.subr.mxu0 %v868
    %1427 = vmatpush1.msra.mxu0 %v867
    %1428 = vmatprep.subr.mxu0 %v872
    %1429 = vmatpush1.msra.mxu0 %v871
    %1430 = vmatprep.subr.mxu0 0.0
    %1431 = vmatpush1.msra.mxu0 0.0
    %1432 = vmatprep.subr.mxu0 0.0
    %1433 = vmatpush1.msra.mxu0 0.0
    %1434 = vmatprep.subr.mxu0 0.0
    %1435 = vmatpush1.msra.mxu0 0.0
    %1436 = vmatprep.subr.mxu0 0.0
    %1437 = vmatpush1.msra.mxu0 0.0
    %1438 = vmatprep.subr.mxu0 0.0
    %1439 = vmatpush1.msra.mxu0 0.0
    %1440 = vmatprep.subr.mxu0 0.0
    %1441 = vmatpush1.msra.mxu0 0.0
    %1442 = vmatprep.subr.mxu0 0.0
    %1443 = vmatpush1.msra.mxu0 0.0
    %1444 = vmatprep.subr.mxu0 0.0
    %1445 = vmatpush1.msra.mxu0 0.0
    %1446 = vmatprep.subr.mxu0 0.0
    %1447 = vmatpush1.msra.mxu0 0.0
    %1448 = vmatprep.subr.mxu0 0.0
    %1449 = vmatpush1.msra.mxu0 0.0
    %1450 = vmatprep.subr.mxu0 0.0
    %1451 = vmatpush1.msra.mxu0 0.0
    %1452 = vmatprep.subr.mxu0 0.0
    %1453 = vmatpush1.msra.mxu0 0.0
    %1454 = vmatprep.subr.mxu0 0.0
    %1455 = vmatpush1.msra.mxu0 0.0
    %1456 = vmatprep.subr.mxu0 0.0
    %1457 = vmatpush1.msra.mxu0 0.0
    %1458 = vmatprep.subr.mxu0 0.0
    %1459 = vmatpush1.msra.mxu0 0.0
    %1460 = vmatprep.subr.mxu0 0.0
    %1461 = vmatpush1.msra.mxu0 0.0
    %1462 = vmatprep.mubr.f32.mxu0 0.0
    %1463 = vmatmul.mubr.f32.gmra.mrb[0].mxu0 %v1234
    %v1464 = vpop.f32.mrb[0].mxu0
    %v1465 = vadd.f32 0.0, %v1464
    %v1466 = vpop.f32.mrb[0].mxu0
    %v1467 = vadd.f32 0.0, %v1466
    %1468 = vdwg.mxu0
    %1469 = vmatprep.subr.mxu0 %v814
    %1470 = vmatpush1.msra.mxu0 %v813
    %1471 = vmatprep.subr.mxu0 %v818
    %1472 = vmatpush1.msra.mxu0 %v817
    %1473 = vmatprep.subr.mxu0 %v822
    %1474 = vmatpush1.msra.mxu0 %v821
    %1475 = vmatprep.subr.mxu0 %v826
    %1476 = vmatpush1.msra.mxu0 %v825
    %1477 = vmatprep.subr.mxu0 %v830
    %1478 = vmatpush1.msra.mxu0 %v829
    %1479 = vmatprep.subr.mxu0 %v834
    %1480 = vmatpush1.msra.mxu0 %v833
    %1481 = vmatprep.subr.mxu0 %v838
    %1482 = vmatpush1.msra.mxu0 %v837
    %1483 = vmatprep.subr.mxu0 %v842
    %1484 = vmatpush1.msra.mxu0 %v841
    %1485 = vmatprep.subr.mxu0 %v846
    %1486 = vmatpush1.msra.mxu0 %v845
    %1487 = vmatprep.subr.mxu0 %v850
    %1488 = vmatpush1.msra.mxu0 %v849
    %1489 = vmatprep.subr.mxu0 %v854
    %1490 = vmatpush1.msra.mxu0 %v853
    %1491 = vmatprep.subr.mxu0 %v858
    %1492 = vmatpush1.msra.mxu0 %v857
    %1493 = vmatprep.subr.mxu0 %v862
    %1494 = vmatpush1.msra.mxu0 %v861
    %1495 = vmatprep.subr.mxu0 %v866
    %1496 = vmatpush1.msra.mxu0 %v865
    %1497 = vmatprep.subr.mxu0 %v870
    %1498 = vmatpush1.msra.mxu0 %v869
    %1499 = vmatprep.subr.mxu0 %v874
    %1500 = vmatpush1.msra.mxu0 %v873
    %1501 = vmatprep.subr.mxu0 0.0
    %1502 = vmatpush1.msra.mxu0 0.0
    %1503 = vmatprep.subr.mxu0 0.0
    %1504 = vmatpush1.msra.mxu0 0.0
    %1505 = vmatprep.subr.mxu0 0.0
    %1506 = vmatpush1.msra.mxu0 0.0
    %1507 = vmatprep.subr.mxu0 0.0
    %1508 = vmatpush1.msra.mxu0 0.0
    %1509 = vmatprep.subr.mxu0 0.0
    %1510 = vmatpush1.msra.mxu0 0.0
    %1511 = vmatprep.subr.mxu0 0.0
    %1512 = vmatpush1.msra.mxu0 0.0
    %1513 = vmatprep.subr.mxu0 0.0
    %1514 = vmatpush1.msra.mxu0 0.0
    %1515 = vmatprep.subr.mxu0 0.0
    %1516 = vmatpush1.msra.mxu0 0.0
    %1517 = vmatprep.subr.mxu0 0.0
    %1518 = vmatpush1.msra.mxu0 0.0
    %1519 = vmatprep.subr.mxu0 0.0
    %1520 = vmatpush1.msra.mxu0 0.0
    %1521 = vmatprep.subr.mxu0 0.0
    %1522 = vmatpush1.msra.mxu0 0.0
    %1523 = vmatprep.subr.mxu0 0.0
    %1524 = vmatpush1.msra.mxu0 0.0
    %1525 = vmatprep.subr.mxu0 0.0
    %1526 = vmatpush1.msra.mxu0 0.0
    %1527 = vmatprep.subr.mxu0 0.0
    %1528 = vmatpush1.msra.mxu0 0.0
    %1529 = vmatprep.subr.mxu0 0.0
    %1530 = vmatpush1.msra.mxu0 0.0
    %1531 = vmatprep.subr.mxu0 0.0
    %1532 = vmatpush1.msra.mxu0 0.0
    %1533 = vmatprep.mubr.f32.mxu0 0.0
    %1534 = vmatmul.mubr.f32.gmra.mrb[0].mxu0 %v1234
    %v1535 = vpop.f32.mrb[0].mxu0
    %v1536 = vadd.f32 0.0, %v1535
    %v1537 = vpop.f32.mrb[0].mxu0
    %v1538 = vadd.f32 0.0, %v1537
    %1539 = vdwg.mxu0
    %v1540 = vadd.f32 %v1394, %v1465
    %v1541 = vadd.f32 %v1395, %v1467
    %v1542 = vadd.f32 %v1396, %v1536
    %v1543 = vadd.f32 %v1397, %v1538
    %v1544 = vxor.u32 %v1387, 2147483648
    %v1545 = vxor.u32 %v1388, 2147483648
    %v1546 = vxor.u32 %v1389, 2147483648
    %v1547 = vmul.f32 %v1544, 1.442695
    %v1548 = vpow.pop %v1547
    %v1549 = vmul.f32 %v1545, 1.442695
    %v1550 = vpow.pop %v1549
    %v1551 = vmul.f32 %v1546, 1.442695
    %v1552 = vpow.pop %v1551
    %v1553 = vadd.f32 %v1548, 1.0
    %v1554 = vadd.f32 %v1550, 1.0
    %v1555 = vadd.f32 %v1552, 1.0
    %v1556 = vrcp.pop %v1553
    %v1557 = vmul.f32 1.0, %v1556
    %v1558 = vrcp.pop %v1554
    %v1559 = vmul.f32 1.0, %v1558
    %v1560 = vrcp.pop %v1555
    %v1561 = vmul.f32 1.0, %v1560
    %v1562 = vtanh.pop %v1390
    %v1563 = vmul.f32 %v1559, %v1208
    %v1564 = vmul.f32 %v1557, %v1562
    %v1565 = vadd.f32 %v1563, %v1564
    %v1566 = vtanh.pop %v1565
    %v1567 = vmul.f32 %v1561, %v1566
    %v1568 = vxor.u32 %v1540, 2147483648
    %v1569 = vxor.u32 %v1541, 2147483648
    %v1570 = vxor.u32 %v1542, 2147483648
    %v1571 = vmul.f32 %v1568, 1.442695
    %v1572 = vpow.pop %v1571
    %v1573 = vmul.f32 %v1569, 1.442695
    %v1574 = vpow.pop %v1573
    %v1575 = vmul.f32 %v1570, 1.442695
    %v1576 = vpow.pop %v1575
    %v1577 = vadd.f32 %v1572, 1.0
    %v1578 = vadd.f32 %v1574, 1.0
    %v1579 = vadd.f32 %v1576, 1.0
    %v1580 = vrcp.pop %v1577
    %v1581 = vmul.f32 1.0, %v1580
    %v1582 = vrcp.pop %v1578
    %v1583 = vmul.f32 1.0, %v1582
    %v1584 = vrcp.pop %v1579
    %v1585 = vmul.f32 1.0, %v1584
    %v1586 = vtanh.pop %v1543
    %v1587 = vmul.f32 %v1583, %v1232
    %v1588 = vmul.f32 %v1581, %v1586
    %v1589 = vadd.f32 %v1587, %v1588
    %v1590 = vtanh.pop %v1589
    %v1591 = vmul.f32 %v1585, %v1590
    %s1592 = scalar_lea.vmem [#allocation9], 8
    %1593 = vst [vmem:[%s1592] sm:$0xff] %v1567
    %s1594 = scalar_lea.vmem [#allocation10], 48
    %1595 = vst [vmem:[%s1594] sm:$0xff] %v1591
    %s1596 = smul.u32 2, 4
    %s1597 = smul.addr %s1596, 8
    %s1598 = scalar_lea.vmem [#allocation2], %s1597
    %v1599 = vld [vmem:[%s1598] sm:$0xff]
    %v1600 = vld [vmem:[%s1598 + $0x8] sm:$0xff]
    %v1601 = vld [vmem:[%s1598 + $0x10] sm:$0xff]
    %v1602 = vld [vmem:[%s1598 + $0x18] sm:$0xff]
    %1603 = vmatprep.subr.mxu0 %v747
    %1604 = vmatpush1.msra.mxu0 %v746
    %1605 = vmatprep.subr.mxu0 %v751
    %1606 = vmatpush1.msra.mxu0 %v750
    %1607 = vmatprep.subr.mxu0 %v755
    %1608 = vmatpush1.msra.mxu0 %v754
    %1609 = vmatprep.subr.mxu0 %v759
    %1610 = vmatpush1.msra.mxu0 %v758
    %1611 = vmatprep.subr.mxu0 %v763
    %1612 = vmatpush1.msra.mxu0 %v762
    %1613 = vmatprep.subr.mxu0 %v767
    %1614 = vmatpush1.msra.mxu0 %v766
    %1615 = vmatprep.subr.mxu0 %v771
    %1616 = vmatpush1.msra.mxu0 %v770
    %1617 = vmatprep.subr.mxu0 %v775
    %1618 = vmatpush1.msra.mxu0 %v774
    %1619 = vmatprep.subr.mxu0 %v779
    %1620 = vmatpush1.msra.mxu0 %v778
    %1621 = vmatprep.subr.mxu0 %v783
    %1622 = vmatpush1.msra.mxu0 %v782
    %1623 = vmatprep.subr.mxu0 %v787
    %1624 = vmatpush1.msra.mxu0 %v786
    %1625 = vmatprep.subr.mxu0 %v791
    %1626 = vmatpush1.msra.mxu0 %v790
    %1627 = vmatprep.subr.mxu0 %v795
    %1628 = vmatpush1.msra.mxu0 %v794
    %1629 = vmatprep.subr.mxu0 %v799
    %1630 = vmatpush1.msra.mxu0 %v798
    %1631 = vmatprep.subr.mxu0 %v803
    %1632 = vmatpush1.msra.mxu0 %v802
    %1633 = vmatprep.subr.mxu0 %v807
    %1634 = vmatpush1.msra.mxu0 %v806
    %1635 = vmatprep.subr.mxu0 0.0
    %1636 = vmatpush1.msra.mxu0 0.0
    %1637 = vmatprep.subr.mxu0 0.0
    %1638 = vmatpush1.msra.mxu0 0.0
    %1639 = vmatprep.subr.mxu0 0.0
    %1640 = vmatpush1.msra.mxu0 0.0
    %1641 = vmatprep.subr.mxu0 0.0
    %1642 = vmatpush1.msra.mxu0 0.0
    %1643 = vmatprep.subr.mxu0 0.0
    %1644 = vmatpush1.msra.mxu0 0.0
    %1645 = vmatprep.subr.mxu0 0.0
    %1646 = vmatpush1.msra.mxu0 0.0
    %1647 = vmatprep.subr.mxu0 0.0
    %1648 = vmatpush1.msra.mxu0 0.0
    %1649 = vmatprep.subr.mxu0 0.0
    %1650 = vmatpush1.msra.mxu0 0.0
    %1651 = vmatprep.subr.mxu0 0.0
    %1652 = vmatpush1.msra.mxu0 0.0
    %1653 = vmatprep.subr.mxu0 0.0
    %1654 = vmatpush1.msra.mxu0 0.0
    %1655 = vmatprep.subr.mxu0 0.0
    %1656 = vmatpush1.msra.mxu0 0.0
    %1657 = vmatprep.subr.mxu0 0.0
    %1658 = vmatpush1.msra.mxu0 0.0
    %1659 = vmatprep.subr.mxu0 0.0
    %1660 = vmatpush1.msra.mxu0 0.0
    %1661 = vmatprep.subr.mxu0 0.0
    %1662 = vmatpush1.msra.mxu0 0.0
    %1663 = vmatprep.subr.mxu0 0.0
    %1664 = vmatpush1.msra.mxu0 0.0
    %1665 = vmatprep.subr.mxu0 0.0
    %1666 = vmatpush1.msra.mxu0 0.0
    %1667 = vmatprep.mubr.f32.mxu0 0.0
    %1668 = vmatmul.mubr.f32.gmra.mrb[0].mxu0 %v1567
    %v1669 = vpop.f32.mrb[0].mxu0
    %v1670 = vadd.f32 0.0, %v1669
    %v1671 = vpop.f32.mrb[0].mxu0
    %v1672 = vadd.f32 0.0, %v1671
    %1673 = vdwg.mxu0
    %1674 = vmatprep.subr.mxu0 %v749
    %1675 = vmatpush1.msra.mxu0 %v748
    %1676 = vmatprep.subr.mxu0 %v753
    %1677 = vmatpush1.msra.mxu0 %v752
    %1678 = vmatprep.subr.mxu0 %v757
    %1679 = vmatpush1.msra.mxu0 %v756
    %1680 = vmatprep.subr.mxu0 %v761
    %1681 = vmatpush1.msra.mxu0 %v760
    %1682 = vmatprep.subr.mxu0 %v765
    %1683 = vmatpush1.msra.mxu0 %v764
    %1684 = vmatprep.subr.mxu0 %v769
    %1685 = vmatpush1.msra.mxu0 %v768
    %1686 = vmatprep.subr.mxu0 %v773
    %1687 = vmatpush1.msra.mxu0 %v772
    %1688 = vmatprep.subr.mxu0 %v777
    %1689 = vmatpush1.msra.mxu0 %v776
    %1690 = vmatprep.subr.mxu0 %v781
    %1691 = vmatpush1.msra.mxu0 %v780
    %1692 = vmatprep.subr.mxu0 %v785
    %1693 = vmatpush1.msra.mxu0 %v784
    %1694 = vmatprep.subr.mxu0 %v789
    %1695 = vmatpush1.msra.mxu0 %v788
    %1696 = vmatprep.subr.mxu0 %v793
    %1697 = vmatpush1.msra.mxu0 %v792
    %1698 = vmatprep.subr.mxu0 %v797
    %1699 = vmatpush1.msra.mxu0 %v796
    %1700 = vmatprep.subr.mxu0 %v801
    %1701 = vmatpush1.msra.mxu0 %v800
    %1702 = vmatprep.subr.mxu0 %v805
    %1703 = vmatpush1.msra.mxu0 %v804
    %1704 = vmatprep.subr.mxu0 %v809
    %1705 = vmatpush1.msra.mxu0 %v808
    %1706 = vmatprep.subr.mxu0 0.0
    %1707 = vmatpush1.msra.mxu0 0.0
    %1708 = vmatprep.subr.mxu0 0.0
    %1709 = vmatpush1.msra.mxu0 0.0
    %1710 = vmatprep.subr.mxu0 0.0
    %1711 = vmatpush1.msra.mxu0 0.0
    %1712 = vmatprep.subr.mxu0 0.0
    %1713 = vmatpush1.msra.mxu0 0.0
    %1714 = vmatprep.subr.mxu0 0.0
    %1715 = vmatpush1.msra.mxu0 0.0
    %1716 = vmatprep.subr.mxu0 0.0
    %1717 = vmatpush1.msra.mxu0 0.0
    %1718 = vmatprep.subr.mxu0 0.0
    %1719 = vmatpush1.msra.mxu0 0.0
    %1720 = vmatprep.subr.mxu0 0.0
    %1721 = vmatpush1.msra.mxu0 0.0
    %1722 = vmatprep.subr.mxu0 0.0
    %1723 = vmatpush1.msra.mxu0 0.0
    %1724 = vmatprep.subr.mxu0 0.0
    %1725 = vmatpush1.msra.mxu0 0.0
    %1726 = vmatprep.subr.mxu0 0.0
    %1727 = vmatpush1.msra.mxu0 0.0
    %1728 = vmatprep.subr.mxu0 0.0
    %1729 = vmatpush1.msra.mxu0 0.0
    %1730 = vmatprep.subr.mxu0 0.0
    %1731 = vmatpush1.msra.mxu0 0.0
    %1732 = vmatprep.subr.mxu0 0.0
    %1733 = vmatpush1.msra.mxu0 0.0
    %1734 = vmatprep.subr.mxu0 0.0
    %1735 = vmatpush1.msra.mxu0 0.0
    %1736 = vmatprep.subr.mxu0 0.0
    %1737 = vmatpush1.msra.mxu0 0.0
    %1738 = vmatprep.mubr.f32.mxu0 0.0
    %1739 = vmatmul.mubr.f32.gmra.mrb[0].mxu0 %v1567
    %v1740 = vpop.f32.mrb[0].mxu0
    %v1741 = vadd.f32 0.0, %v1740
    %v1742 = vpop.f32.mrb[0].mxu0
    %v1743 = vadd.f32 0.0, %v1742
    %1744 = vdwg.mxu0
    %v1745 = vadd.f32 %v1599, %v1670
    %v1746 = vadd.f32 %v1600, %v1672
    %v1747 = vadd.f32 %v1601, %v1741
    %v1748 = vadd.f32 %v1602, %v1743
    %s1749 = smul.u32 5, 4
    %s1750 = smul.addr %s1749, 8
    %s1751 = scalar_lea.vmem [#allocation3], %s1750
    %v1752 = vld [vmem:[%s1751] sm:$0xff]
    %v1753 = vld [vmem:[%s1751 + $0x8] sm:$0xff]
    %v1754 = vld [vmem:[%s1751 + $0x10] sm:$0xff]
    %v1755 = vld [vmem:[%s1751 + $0x18] sm:$0xff]
    %1756 = vmatprep.subr.mxu0 %v812
    %1757 = vmatpush1.msra.mxu0 %v811
    %1758 = vmatprep.subr.mxu0 %v816
    %1759 = vmatpush1.msra.mxu0 %v815
    %1760 = vmatprep.subr.mxu0 %v820
    %1761 = vmatpush1.msra.mxu0 %v819
    %1762 = vmatprep.subr.mxu0 %v824
    %1763 = vmatpush1.msra.mxu0 %v823
    %1764 = vmatprep.subr.mxu0 %v828
    %1765 = vmatpush1.msra.mxu0 %v827
    %1766 = vmatprep.subr.mxu0 %v832
    %1767 = vmatpush1.msra.mxu0 %v831
    %1768 = vmatprep.subr.mxu0 %v836
    %1769 = vmatpush1.msra.mxu0 %v835
    %1770 = vmatprep.subr.mxu0 %v840
    %1771 = vmatpush1.msra.mxu0 %v839
    %1772 = vmatprep.subr.mxu0 %v844
    %1773 = vmatpush1.msra.mxu0 %v843
    %1774 = vmatprep.subr.mxu0 %v848
    %1775 = vmatpush1.msra.mxu0 %v847
    %1776 = vmatprep.subr.mxu0 %v852
    %1777 = vmatpush1.msra.mxu0 %v851
    %1778 = vmatprep.subr.mxu0 %v856
    %1779 = vmatpush1.msra.mxu0 %v855
    %1780 = vmatprep.subr.mxu0 %v860
    %1781 = vmatpush1.msra.mxu0 %v859
    %1782 = vmatprep.subr.mxu0 %v864
    %1783 = vmatpush1.msra.mxu0 %v863
    %1784 = vmatprep.subr.mxu0 %v868
    %1785 = vmatpush1.msra.mxu0 %v867
    %1786 = vmatprep.subr.mxu0 %v872
    %1787 = vmatpush1.msra.mxu0 %v871
    %1788 = vmatprep.subr.mxu0 0.0
    %1789 = vmatpush1.msra.mxu0 0.0
    %1790 = vmatprep.subr.mxu0 0.0
    %1791 = vmatpush1.msra.mxu0 0.0
    %1792 = vmatprep.subr.mxu0 0.0
    %1793 = vmatpush1.msra.mxu0 0.0
    %1794 = vmatprep.subr.mxu0 0.0
    %1795 = vmatpush1.msra.mxu0 0.0
    %1796 = vmatprep.subr.mxu0 0.0
    %1797 = vmatpush1.msra.mxu0 0.0
    %1798 = vmatprep.subr.mxu0 0.0
    %1799 = vmatpush1.msra.mxu0 0.0
    %1800 = vmatprep.subr.mxu0 0.0
    %1801 = vmatpush1.msra.mxu0 0.0
    %1802 = vmatprep.subr.mxu0 0.0
    %1803 = vmatpush1.msra.mxu0 0.0
    %1804 = vmatprep.subr.mxu0 0.0
    %1805 = vmatpush1.msra.mxu0 0.0
    %1806 = vmatprep.subr.mxu0 0.0
    %1807 = vmatpush1.msra.mxu0 0.0
    %1808 = vmatprep.subr.mxu0 0.0
    %1809 = vmatpush1.msra.mxu0 0.0
    %1810 = vmatprep.subr.mxu0 0.0
    %1811 = vmatpush1.msra.mxu0 0.0
    %1812 = vmatprep.subr.mxu0 0.0
    %1813 = vmatpush1.msra.mxu0 0.0
    %1814 = vmatprep.subr.mxu0 0.0
    %1815 = vmatpush1.msra.mxu0 0.0
    %1816 = vmatprep.subr.mxu0 0.0
    %1817 = vmatpush1.msra.mxu0 0.0
    %1818 = vmatprep.subr.mxu0 0.0
    %1819 = vmatpush1.msra.mxu0 0.0
    %1820 = vmatprep.mubr.f32.mxu0 0.0
    %1821 = vmatmul.mubr.f32.gmra.mrb[0].mxu0 %v1591
    %v1822 = vpop.f32.mrb[0].mxu0
    %v1823 = vadd.f32 0.0, %v1822
    %v1824 = vpop.f32.mrb[0].mxu0
    %v1825 = vadd.f32 0.0, %v1824
    %1826 = vdwg.mxu0
    %1827 = vmatprep.subr.mxu0 %v814
    %1828 = vmatpush1.msra.mxu0 %v813
    %1829 = vmatprep.subr.mxu0 %v818
    %1830 = vmatpush1.msra.mxu0 %v817
    %1831 = vmatprep.subr.mxu0 %v822
    %1832 = vmatpush1.msra.mxu0 %v821
    %1833 = vmatprep.subr.mxu0 %v826
    %1834 = vmatpush1.msra.mxu0 %v825
    %1835 = vmatprep.subr.mxu0 %v830
    %1836 = vmatpush1.msra.mxu0 %v829
    %1837 = vmatprep.subr.mxu0 %v834
    %1838 = vmatpush1.msra.mxu0 %v833
    %1839 = vmatprep.subr.mxu0 %v838
    %1840 = vmatpush1.msra.mxu0 %v837
    %1841 = vmatprep.subr.mxu0 %v842
    %1842 = vmatpush1.msra.mxu0 %v841
    %1843 = vmatprep.subr.mxu0 %v846
    %1844 = vmatpush1.msra.mxu0 %v845
    %1845 = vmatprep.subr.mxu0 %v850
    %1846 = vmatpush1.msra.mxu0 %v849
    %1847 = vmatprep.subr.mxu0 %v854
    %1848 = vmatpush1.msra.mxu0 %v853
    %1849 = vmatprep.subr.mxu0 %v858
    %1850 = vmatpush1.msra.mxu0 %v857
    %1851 = vmatprep.subr.mxu0 %v862
    %1852 = vmatpush1.msra.mxu0 %v861
    %1853 = vmatprep.subr.mxu0 %v866
    %1854 = vmatpush1.msra.mxu0 %v865
    %1855 = vmatprep.subr.mxu0 %v870
    %1856 = vmatpush1.msra.mxu0 %v869
    %1857 = vmatprep.subr.mxu0 %v874
    %1858 = vmatpush1.msra.mxu0 %v873
    %1859 = vmatprep.subr.mxu0 0.0
    %1860 = vmatpush1.msra.mxu0 0.0
    %1861 = vmatprep.subr.mxu0 0.0
    %1862 = vmatpush1.msra.mxu0 0.0
    %1863 = vmatprep.subr.mxu0 0.0
    %1864 = vmatpush1.msra.mxu0 0.0
    %1865 = vmatprep.subr.mxu0 0.0
    %1866 = vmatpush1.msra.mxu0 0.0
    %1867 = vmatprep.subr.mxu0 0.0
    %1868 = vmatpush1.msra.mxu0 0.0
    %1869 = vmatprep.subr.mxu0 0.0
    %1870 = vmatpush1.msra.mxu0 0.0
    %1871 = vmatprep.subr.mxu0 0.0
    %1872 = vmatpush1.msra.mxu0 0.0
    %1873 = vmatprep.subr.mxu0 0.0
    %1874 = vmatpush1.msra.mxu0 0.0
    %1875 = vmatprep.subr.mxu0 0.0
    %1876 = vmatpush1.msra.mxu0 0.0
    %1877 = vmatprep.subr.mxu0 0.0
    %1878 = vmatpush1.msra.mxu0 0.0
    %1879 = vmatprep.subr.mxu0 0.0
    %1880 = vmatpush1.msra.mxu0 0.0
    %1881 = vmatprep.subr.mxu0 0.0
    %1882 = vmatpush1.msra.mxu0 0.0
    %1883 = vmatprep.subr.mxu0 0.0
    %1884 = vmatpush1.msra.mxu0 0.0
    %1885 = vmatprep.subr.mxu0 0.0
    %1886 = vmatpush1.msra.mxu0 0.0
    %1887 = vmatprep.subr.mxu0 0.0
    %1888 = vmatpush1.msra.mxu0 0.0
    %1889 = vmatprep.subr.mxu0 0.0
    %1890 = vmatpush1.msra.mxu0 0.0
    %1891 = vmatprep.mubr.f32.mxu0 0.0
    %1892 = vmatmul.mubr.f32.gmra.mrb[0].mxu0 %v1591
    %v1893 = vpop.f32.mrb[0].mxu0
    %v1894 = vadd.f32 0.0, %v1893
    %v1895 = vpop.f32.mrb[0].mxu0
    %v1896 = vadd.f32 0.0, %v1895
    %1897 = vdwg.mxu0
    %v1898 = vadd.f32 %v1752, %v1823
    %v1899 = vadd.f32 %v1753, %v1825
    %v1900 = vadd.f32 %v1754, %v1894
    %v1901 = vadd.f32 %v1755, %v1896
    %v1902 = vxor.u32 %v1745, 2147483648
    %v1903 = vxor.u32 %v1746, 2147483648
    %v1904 = vxor.u32 %v1747, 2147483648
    %v1905 = vmul.f32 %v1902, 1.442695
    %v1906 = vpow.pop %v1905
    %v1907 = vmul.f32 %v1903, 1.442695
    %v1908 = vpow.pop %v1907
    %v1909 = vmul.f32 %v1904, 1.442695
    %v1910 = vpow.pop %v1909
    %v1911 = vadd.f32 %v1906, 1.0
    %v1912 = vadd.f32 %v1908, 1.0
    %v1913 = vadd.f32 %v1910, 1.0
    %v1914 = vrcp.pop %v1911
    %v1915 = vmul.f32 1.0, %v1914
    %v1916 = vrcp.pop %v1912
    %v1917 = vmul.f32 1.0, %v1916
    %v1918 = vrcp.pop %v1913
    %v1919 = vmul.f32 1.0, %v1918
    %v1920 = vtanh.pop %v1748
    %v1921 = vmul.f32 %v1917, %v1565
    %v1922 = vmul.f32 %v1915, %v1920
    %v1923 = vadd.f32 %v1921, %v1922
    %v1924 = vtanh.pop %v1923
    %v1925 = vmul.f32 %v1919, %v1924
    %v1926 = vxor.u32 %v1898, 2147483648
    %v1927 = vxor.u32 %v1899, 2147483648
    %v1928 = vxor.u32 %v1900, 2147483648
    %v1929 = vmul.f32 %v1926, 1.442695
    %v1930 = vpow.pop %v1929
    %v1931 = vmul.f32 %v1927, 1.442695
    %v1932 = vpow.pop %v1931
    %v1933 = vmul.f32 %v1928, 1.442695
    %v1934 = vpow.pop %v1933
    %v1935 = vadd.f32 %v1930, 1.0
    %v1936 = vadd.f32 %v1932, 1.0
    %v1937 = vadd.f32 %v1934, 1.0
    %v1938 = vrcp.pop %v1935
    %v1939 = vmul.f32 1.0, %v1938
    %v1940 = vrcp.pop %v1936
    %v1941 = vmul.f32 1.0, %v1940
    %v1942 = vrcp.pop %v1937
    %v1943 = vmul.f32 1.0, %v1942
    %v1944 = vtanh.pop %v1901
    %v1945 = vmul.f32 %v1941, %v1589
    %v1946 = vmul.f32 %v1939, %v1944
    %v1947 = vadd.f32 %v1945, %v1946
    %v1948 = vtanh.pop %v1947
    %v1949 = vmul.f32 %v1943, %v1948
    %s1950 = scalar_lea.vmem [#allocation9], 16
    %1951 = vst [vmem:[%s1950] sm:$0xff] %v1925
    %s1952 = scalar_lea.vmem [#allocation10], 40
    %1953 = vst [vmem:[%s1952] sm:$0xff] %v1949
    %s1954 = smul.u32 3, 4
    %s1955 = smul.addr %s1954, 8
    %s1956 = scalar_lea.vmem [#allocation2], %s1955
    %v1957 = vld [vmem:[%s1956] sm:$0xff]
    %v1958 = vld [vmem:[%s1956 + $0x8] sm:$0xff]
    %v1959 = vld [vmem:[%s1956 + $0x10] sm:$0xff]
    %v1960 = vld [vmem:[%s1956 + $0x18] sm:$0xff]
    %1961 = vmatprep.subr.mxu0 %v747
    %1962 = vmatpush1.msra.mxu0 %v746
    %1963 = vmatprep.subr.mxu0 %v751
    %1964 = vmatpush1.msra.mxu0 %v750
    %1965 = vmatprep.subr.mxu0 %v755
    %1966 = vmatpush1.msra.mxu0 %v754
    %1967 = vmatprep.subr.mxu0 %v759
    %1968 = vmatpush1.msra.mxu0 %v758
    %1969 = vmatprep.subr.mxu0 %v763
    %1970 = vmatpush1.msra.mxu0 %v762
    %1971 = vmatprep.subr.mxu0 %v767
    %1972 = vmatpush1.msra.mxu0 %v766
    %1973 = vmatprep.subr.mxu0 %v771
    %1974 = vmatpush1.msra.mxu0 %v770
    %1975 = vmatprep.subr.mxu0 %v775
    %1976 = vmatpush1.msra.mxu0 %v774
    %1977 = vmatprep.subr.mxu0 %v779
    %1978 = vmatpush1.msra.mxu0 %v778
    %1979 = vmatprep.subr.mxu0 %v783
    %1980 = vmatpush1.msra.mxu0 %v782
    %1981 = vmatprep.subr.mxu0 %v787
    %1982 = vmatpush1.msra.mxu0 %v786
    %1983 = vmatprep.subr.mxu0 %v791
    %1984 = vmatpush1.msra.mxu0 %v790
    %1985 = vmatprep.subr.mxu0 %v795
    %1986 = vmatpush1.msra.mxu0 %v794
    %1987 = vmatprep.subr.mxu0 %v799
    %1988 = vmatpush1.msra.mxu0 %v798
    %1989 = vmatprep.subr.mxu0 %v803
    %1990 = vmatpush1.msra.mxu0 %v802
    %1991 = vmatprep.subr.mxu0 %v807
    %1992 = vmatpush1.msra.mxu0 %v806
    %1993 = vmatprep.subr.mxu0 0.0
    %1994 = vmatpush1.msra.mxu0 0.0
    %1995 = vmatprep.subr.mxu0 0.0
    %1996 = vmatpush1.msra.mxu0 0.0
    %1997 = vmatprep.subr.mxu0 0.0
    %1998 = vmatpush1.msra.mxu0 0.0
    %1999 = vmatprep.subr.mxu0 0.0
    %2000 = vmatpush1.msra.mxu0 0.0
    %2001 = vmatprep.subr.mxu0 0.0
    %2002 = vmatpush1.msra.mxu0 0.0
    %2003 = vmatprep.subr.mxu0 0.0
    %2004 = vmatpush1.msra.mxu0 0.0
    %2005 = vmatprep.subr.mxu0 0.0
    %2006 = vmatpush1.msra.mxu0 0.0
    %2007 = vmatprep.subr.mxu0 0.0
    %2008 = vmatpush1.msra.mxu0 0.0
    %2009 = vmatprep.subr.mxu0 0.0
    %2010 = vmatpush1.msra.mxu0 0.0
    %2011 = vmatprep.subr.mxu0 0.0
    %2012 = vmatpush1.msra.mxu0 0.0
    %2013 = vmatprep.subr.mxu0 0.0
    %2014 = vmatpush1.msra.mxu0 0.0
    %2015 = vmatprep.subr.mxu0 0.0
    %2016 = vmatpush1.msra.mxu0 0.0
    %2017 = vmatprep.subr.mxu0 0.0
    %2018 = vmatpush1.msra.mxu0 0.0
    %2019 = vmatprep.subr.mxu0 0.0
    %2020 = vmatpush1.msra.mxu0 0.0
    %2021 = vmatprep.subr.mxu0 0.0
    %2022 = vmatpush1.msra.mxu0 0.0
    %2023 = vmatprep.subr.mxu0 0.0
    %2024 = vmatpush1.msra.mxu0 0.0
    %2025 = vmatprep.mubr.f32.mxu0 0.0
    %2026 = vmatmul.mubr.f32.gmra.mrb[0].mxu0 %v1925
    %v2027 = vpop.f32.mrb[0].mxu0
    %v2028 = vadd.f32 0.0, %v2027
    %v2029 = vpop.f32.mrb[0].mxu0
    %v2030 = vadd.f32 0.0, %v2029
    %2031 = vdwg.mxu0
    %2032 = vmatprep.subr.mxu0 %v749
    %2033 = vmatpush1.msra.mxu0 %v748
    %2034 = vmatprep.subr.mxu0 %v753
    %2035 = vmatpush1.msra.mxu0 %v752
    %2036 = vmatprep.subr.mxu0 %v757
    %2037 = vmatpush1.msra.mxu0 %v756
    %2038 = vmatprep.subr.mxu0 %v761
    %2039 = vmatpush1.msra.mxu0 %v760
    %2040 = vmatprep.subr.mxu0 %v765
    %2041 = vmatpush1.msra.mxu0 %v764
    %2042 = vmatprep.subr.mxu0 %v769
    %2043 = vmatpush1.msra.mxu0 %v768
    %2044 = vmatprep.subr.mxu0 %v773
    %2045 = vmatpush1.msra.mxu0 %v772
    %2046 = vmatprep.subr.mxu0 %v777
    %2047 = vmatpush1.msra.mxu0 %v776
    %2048 = vmatprep.subr.mxu0 %v781
    %2049 = vmatpush1.msra.mxu0 %v780
    %2050 = vmatprep.subr.mxu0 %v785
    %2051 = vmatpush1.msra.mxu0 %v784
    %2052 = vmatprep.subr.mxu0 %v789
    %2053 = vmatpush1.msra.mxu0 %v788
    %2054 = vmatprep.subr.mxu0 %v793
    %2055 = vmatpush1.msra.mxu0 %v792
    %2056 = vmatprep.subr.mxu0 %v797
    %2057 = vmatpush1.msra.mxu0 %v796
    %2058 = vmatprep.subr.mxu0 %v801
    %2059 = vmatpush1.msra.mxu0 %v800
    %2060 = vmatprep.subr.mxu0 %v805
    %2061 = vmatpush1.msra.mxu0 %v804
    %2062 = vmatprep.subr.mxu0 %v809
    %2063 = vmatpush1.msra.mxu0 %v808
    %2064 = vmatprep.subr.mxu0 0.0
    %2065 = vmatpush1.msra.mxu0 0.0
    %2066 = vmatprep.subr.mxu0 0.0
    %2067 = vmatpush1.msra.mxu0 0.0
    %2068 = vmatprep.subr.mxu0 0.0
    %2069 = vmatpush1.msra.mxu0 0.0
    %2070 = vmatprep.subr.mxu0 0.0
    %2071 = vmatpush1.msra.mxu0 0.0
    %2072 = vmatprep.subr.mxu0 0.0
    %2073 = vmatpush1.msra.mxu0 0.0
    %2074 = vmatprep.subr.mxu0 0.0
    %2075 = vmatpush1.msra.mxu0 0.0
    %2076 = vmatprep.subr.mxu0 0.0
    %2077 = vmatpush1.msra.mxu0 0.0
    %2078 = vmatprep.subr.mxu0 0.0
    %2079 = vmatpush1.msra.mxu0 0.0
    %2080 = vmatprep.subr.mxu0 0.0
    %2081 = vmatpush1.msra.mxu0 0.0
    %2082 = vmatprep.subr.mxu0 0.0
    %2083 = vmatpush1.msra.mxu0 0.0
    %2084 = vmatprep.subr.mxu0 0.0
    %2085 = vmatpush1.msra.mxu0 0.0
    %2086 = vmatprep.subr.mxu0 0.0
    %2087 = vmatpush1.msra.mxu0 0.0
    %2088 = vmatprep.subr.mxu0 0.0
    %2089 = vmatpush1.msra.mxu0 0.0
    %2090 = vmatprep.subr.mxu0 0.0
    %2091 = vmatpush1.msra.mxu0 0.0
    %2092 = vmatprep.subr.mxu0 0.0
    %2093 = vmatpush1.msra.mxu0 0.0
    %2094 = vmatprep.subr.mxu0 0.0
    %2095 = vmatpush1.msra.mxu0 0.0
    %2096 = vmatprep.mubr.f32.mxu0 0.0
    %2097 = vmatmul.mubr.f32.gmra.mrb[0].mxu0 %v1925
    %v2098 = vpop.f32.mrb[0].mxu0
    %v2099 = vadd.f32 0.0, %v2098
    %v2100 = vpop.f32.mrb[0].mxu0
    %v2101 = vadd.f32 0.0, %v2100
    %2102 = vdwg.mxu0
    %v2103 = vadd.f32 %v1957, %v2028
    %v2104 = vadd.f32 %v1958, %v2030
    %v2105 = vadd.f32 %v1959, %v2099
    %v2106 = vadd.f32 %v1960, %v2101
    %s2107 = smul.u32 4, 4
    %s2108 = smul.addr %s2107, 8
    %s2109 = scalar_lea.vmem [#allocation3], %s2108
    %v2110 = vld [vmem:[%s2109] sm:$0xff]
    %v2111 = vld [vmem:[%s2109 + $0x8] sm:$0xff]
    %v2112 = vld [vmem:[%s2109 + $0x10] sm:$0xff]
    %v2113 = vld [vmem:[%s2109 + $0x18] sm:$0xff]
    %2114 = vmatprep.subr.mxu0 %v812
    %2115 = vmatpush1.msra.mxu0 %v811
    %2116 = vmatprep.subr.mxu0 %v816
    %2117 = vmatpush1.msra.mxu0 %v815
    %2118 = vmatprep.subr.mxu0 %v820
    %2119 = vmatpush1.msra.mxu0 %v819
    %2120 = vmatprep.subr.mxu0 %v824
    %2121 = vmatpush1.msra.mxu0 %v823
    %2122 = vmatprep.subr.mxu0 %v828
    %2123 = vmatpush1.msra.mxu0 %v827
    %2124 = vmatprep.subr.mxu0 %v832
    %2125 = vmatpush1.msra.mxu0 %v831
    %2126 = vmatprep.subr.mxu0 %v836
    %2127 = vmatpush1.msra.mxu0 %v835
    %2128 = vmatprep.subr.mxu0 %v840
    %2129 = vmatpush1.msra.mxu0 %v839
    %2130 = vmatprep.subr.mxu0 %v844
    %2131 = vmatpush1.msra.mxu0 %v843
    %2132 = vmatprep.subr.mxu0 %v848
    %2133 = vmatpush1.msra.mxu0 %v847
    %2134 = vmatprep.subr.mxu0 %v852
    %2135 = vmatpush1.msra.mxu0 %v851
    %2136 = vmatprep.subr.mxu0 %v856
    %2137 = vmatpush1.msra.mxu0 %v855
    %2138 = vmatprep.subr.mxu0 %v860
    %2139 = vmatpush1.msra.mxu0 %v859
    %2140 = vmatprep.subr.mxu0 %v864
    %2141 = vmatpush1.msra.mxu0 %v863
    %2142 = vmatprep.subr.mxu0 %v868
    %2143 = vmatpush1.msra.mxu0 %v867
    %2144 = vmatprep.subr.mxu0 %v872
    %2145 = vmatpush1.msra.mxu0 %v871
    %2146 = vmatprep.subr.mxu0 0.0
    %2147 = vmatpush1.msra.mxu0 0.0
    %2148 = vmatprep.subr.mxu0 0.0
    %2149 = vmatpush1.msra.mxu0 0.0
    %2150 = vmatprep.subr.mxu0 0.0
    %2151 = vmatpush1.msra.mxu0 0.0
    %2152 = vmatprep.subr.mxu0 0.0
    %2153 = vmatpush1.msra.mxu0 0.0
    %2154 = vmatprep.subr.mxu0 0.0
    %2155 = vmatpush1.msra.mxu0 0.0
    %2156 = vmatprep.subr.mxu0 0.0
    %2157 = vmatpush1.msra.mxu0 0.0
    %2158 = vmatprep.subr.mxu0 0.0
    %2159 = vmatpush1.msra.mxu0 0.0
    %2160 = vmatprep.subr.mxu0 0.0
    %2161 = vmatpush1.msra.mxu0 0.0
    %2162 = vmatprep.subr.mxu0 0.0
    %2163 = vmatpush1.msra.mxu0 0.0
    %2164 = vmatprep.subr.mxu0 0.0
    %2165 = vmatpush1.msra.mxu0 0.0
    %2166 = vmatprep.subr.mxu0 0.0
    %2167 = vmatpush1.msra.mxu0 0.0
    %2168 = vmatprep.subr.mxu0 0.0
    %2169 = vmatpush1.msra.mxu0 0.0
    %2170 = vmatprep.subr.mxu0 0.0
    %2171 = vmatpush1.msra.mxu0 0.0
    %2172 = vmatprep.subr.mxu0 0.0
    %2173 = vmatpush1.msra.mxu0 0.0
    %2174 = vmatprep.subr.mxu0 0.0
    %2175 = vmatpush1.msra.mxu0 0.0
    %2176 = vmatprep.subr.mxu0 0.0
    %2177 = vmatpush1.msra.mxu0 0.0
    %2178 = vmatprep.mubr.f32.mxu0 0.0
    %2179 = vmatmul.mubr.f32.gmra.mrb[0].mxu0 %v1949
    %v2180 = vpop.f32.mrb[0].mxu0
    %v2181 = vadd.f32 0.0, %v2180
    %v2182 = vpop.f32.mrb[0].mxu0
    %v2183 = vadd.f32 0.0, %v2182
    %2184 = vdwg.mxu0
    %2185 = vmatprep.subr.mxu0 %v814
    %2186 = vmatpush1.msra.mxu0 %v813
    %2187 = vmatprep.subr.mxu0 %v818
    %2188 = vmatpush1.msra.mxu0 %v817
    %2189 = vmatprep.subr.mxu0 %v822
    %2190 = vmatpush1.msra.mxu0 %v821
    %2191 = vmatprep.subr.mxu0 %v826
    %2192 = vmatpush1.msra.mxu0 %v825
    %2193 = vmatprep.subr.mxu0 %v830
    %2194 = vmatpush1.msra.mxu0 %v829
    %2195 = vmatprep.subr.mxu0 %v834
    %2196 = vmatpush1.msra.mxu0 %v833
    %2197 = vmatprep.subr.mxu0 %v838
    %2198 = vmatpush1.msra.mxu0 %v837
    %2199 = vmatprep.subr.mxu0 %v842
    %2200 = vmatpush1.msra.mxu0 %v841
    %2201 = vmatprep.subr.mxu0 %v846
    %2202 = vmatpush1.msra.mxu0 %v845
    %2203 = vmatprep.subr.mxu0 %v850
    %2204 = vmatpush1.msra.mxu0 %v849
    %2205 = vmatprep.subr.mxu0 %v854
    %2206 = vmatpush1.msra.mxu0 %v853
    %2207 = vmatprep.subr.mxu0 %v858
    %2208 = vmatpush1.msra.mxu0 %v857
    %2209 = vmatprep.subr.mxu0 %v862
    %2210 = vmatpush1.msra.mxu0 %v861
    %2211 = vmatprep.subr.mxu0 %v866
    %2212 = vmatpush1.msra.mxu0 %v865
    %2213 = vmatprep.subr.mxu0 %v870
    %2214 = vmatpush1.msra.mxu0 %v869
    %2215 = vmatprep.subr.mxu0 %v874
    %2216 = vmatpush1.msra.mxu0 %v873
    %2217 = vmatprep.subr.mxu0 0.0
    %2218 = vmatpush1.msra.mxu0 0.0
    %2219 = vmatprep.subr.mxu0 0.0
    %2220 = vmatpush1.msra.mxu0 0.0
    %2221 = vmatprep.subr.mxu0 0.0
    %2222 = vmatpush1.msra.mxu0 0.0
    %2223 = vmatprep.subr.mxu0 0.0
    %2224 = vmatpush1.msra.mxu0 0.0
    %2225 = vmatprep.subr.mxu0 0.0
    %2226 = vmatpush1.msra.mxu0 0.0
    %2227 = vmatprep.subr.mxu0 0.0
    %2228 = vmatpush1.msra.mxu0 0.0
    %2229 = vmatprep.subr.mxu0 0.0
    %2230 = vmatpush1.msra.mxu0 0.0
    %2231 = vmatprep.subr.mxu0 0.0
    %2232 = vmatpush1.msra.mxu0 0.0
    %2233 = vmatprep.subr.mxu0 0.0
    %2234 = vmatpush1.msra.mxu0 0.0
    %2235 = vmatprep.subr.mxu0 0.0
    %2236 = vmatpush1.msra.mxu0 0.0
    %2237 = vmatprep.subr.mxu0 0.0
    %2238 = vmatpush1.msra.mxu0 0.0
    %2239 = vmatprep.subr.mxu0 0.0
    %2240 = vmatpush1.msra.mxu0 0.0
    %2241 = vmatprep.subr.mxu0 0.0
    %2242 = vmatpush1.msra.mxu0 0.0
    %2243 = vmatprep.subr.mxu0 0.0
    %2244 = vmatpush1.msra.mxu0 0.0
    %2245 = vmatprep.subr.mxu0 0.0
    %2246 = vmatpush1.msra.mxu0 0.0
    %2247 = vmatprep.subr.mxu0 0.0
    %2248 = vmatpush1.msra.mxu0 0.0
    %2249 = vmatprep.mubr.f32.mxu0 0.0
    %2250 = vmatmul.mubr.f32.gmra.mrb[0].mxu0 %v1949
    %v2251 = vpop.f32.mrb[0].mxu0
    %v2252 = vadd.f32 0.0, %v2251
    %v2253 = vpop.f32.mrb[0].mxu0
    %v2254 = vadd.f32 0.0, %v2253
    %2255 = vdwg.mxu0
    %v2256 = vadd.f32 %v2110, %v2181
    %v2257 = vadd.f32 %v2111, %v2183
    %v2258 = vadd.f32 %v2112, %v2252
    %v2259 = vadd.f32 %v2113, %v2254
    %v2260 = vxor.u32 %v2103, 2147483648
    %v2261 = vxor.u32 %v2104, 2147483648
    %v2262 = vxor.u32 %v2105, 2147483648
    %v2263 = vmul.f32 %v2260, 1.442695
    %v2264 = vpow.pop %v2263
    %v2265 = vmul.f32 %v2261, 1.442695
    %v2266 = vpow.pop %v2265
    %v2267 = vmul.f32 %v2262, 1.442695
    %v2268 = vpow.pop %v2267
    %v2269 = vadd.f32 %v2264, 1.0
    %v2270 = vadd.f32 %v2266, 1.0
    %v2271 = vadd.f32 %v2268, 1.0
    %v2272 = vrcp.pop %v2269
    %v2273 = vmul.f32 1.0, %v2272
    %v2274 = vrcp.pop %v2270
    %v2275 = vmul.f32 1.0, %v2274
    %v2276 = vrcp.pop %v2271
    %v2277 = vmul.f32 1.0, %v2276
    %v2278 = vtanh.pop %v2106
    %v2279 = vmul.f32 %v2275, %v1923
    %v2280 = vmul.f32 %v2273, %v2278
    %v2281 = vadd.f32 %v2279, %v2280
    %v2282 = vtanh.pop %v2281
    %v2283 = vmul.f32 %v2277, %v2282
    %v2284 = vxor.u32 %v2256, 2147483648
    %v2285 = vxor.u32 %v2257, 2147483648
    %v2286 = vxor.u32 %v2258, 2147483648
    %v2287 = vmul.f32 %v2284, 1.442695
    %v2288 = vpow.pop %v2287
    %v2289 = vmul.f32 %v2285, 1.442695
    %v2290 = vpow.pop %v2289
    %v2291 = vmul.f32 %v2286, 1.442695
    %v2292 = vpow.pop %v2291
    %v2293 = vadd.f32 %v2288, 1.0
    %v2294 = vadd.f32 %v2290, 1.0
    %v2295 = vadd.f32 %v2292, 1.0
    %v2296 = vrcp.pop %v2293
    %v2297 = vmul.f32 1.0, %v2296
    %v2298 = vrcp.pop %v2294
    %v2299 = vmul.f32 1.0, %v2298
    %v2300 = vrcp.pop %v2295
    %v2301 = vmul.f32 1.0, %v2300
    %v2302 = vtanh.pop %v2259
    %v2303 = vmul.f32 %v2299, %v1947
    %v2304 = vmul.f32 %v2297, %v2302
    %v2305 = vadd.f32 %v2303, %v2304
    %v2306 = vtanh.pop %v2305
    %v2307 = vmul.f32 %v2301, %v2306
    %s2308 = scalar_lea.vmem [#allocation9], 24
    %2309 = vst [vmem:[%s2308] sm:$0xff] %v2283
    %s2310 = scalar_lea.vmem [#allocation10], 32
    %2311 = vst [vmem:[%s2310] sm:$0xff] %v2307
    %s2312 = smul.addr %s2107, 8
    %s2313 = scalar_lea.vmem [#allocation2], %s2312
    %v2314 = vld [vmem:[%s2313] sm:$0xff]
    %v2315 = vld [vmem:[%s2313 + $0x8] sm:$0xff]
    %v2316 = vld [vmem:[%s2313 + $0x10] sm:$0xff]
    %v2317 = vld [vmem:[%s2313 + $0x18] sm:$0xff]
    %2318 = vmatprep.subr.mxu0 %v747
    %2319 = vmatpush1.msra.mxu0 %v746
    %2320 = vmatprep.subr.mxu0 %v751
    %2321 = vmatpush1.msra.mxu0 %v750
    %2322 = vmatprep.subr.mxu0 %v755
    %2323 = vmatpush1.msra.mxu0 %v754
    %2324 = vmatprep.subr.mxu0 %v759
    %2325 = vmatpush1.msra.mxu0 %v758
    %2326 = vmatprep.subr.mxu0 %v763
    %2327 = vmatpush1.msra.mxu0 %v762
    %2328 = vmatprep.subr.mxu0 %v767
    %2329 = vmatpush1.msra.mxu0 %v766
    %2330 = vmatprep.subr.mxu0 %v771
    %2331 = vmatpush1.msra.mxu0 %v770
    %2332 = vmatprep.subr.mxu0 %v775
    %2333 = vmatpush1.msra.mxu0 %v774
    %2334 = vmatprep.subr.mxu0 %v779
    %2335 = vmatpush1.msra.mxu0 %v778
    %2336 = vmatprep.subr.mxu0 %v783
    %2337 = vmatpush1.msra.mxu0 %v782
    %2338 = vmatprep.subr.mxu0 %v787
    %2339 = vmatpush1.msra.mxu0 %v786
    %2340 = vmatprep.subr.mxu0 %v791
    %2341 = vmatpush1.msra.mxu0 %v790
    %2342 = vmatprep.subr.mxu0 %v795
    %2343 = vmatpush1.msra.mxu0 %v794
    %2344 = vmatprep.subr.mxu0 %v799
    %2345 = vmatpush1.msra.mxu0 %v798
    %2346 = vmatprep.subr.mxu0 %v803
    %2347 = vmatpush1.msra.mxu0 %v802
    %2348 = vmatprep.subr.mxu0 %v807
    %2349 = vmatpush1.msra.mxu0 %v806
    %2350 = vmatprep.subr.mxu0 0.0
    %2351 = vmatpush1.msra.mxu0 0.0
    %2352 = vmatprep.subr.mxu0 0.0
    %2353 = vmatpush1.msra.mxu0 0.0
    %2354 = vmatprep.subr.mxu0 0.0
    %2355 = vmatpush1.msra.mxu0 0.0
    %2356 = vmatprep.subr.mxu0 0.0
    %2357 = vmatpush1.msra.mxu0 0.0
    %2358 = vmatprep.subr.mxu0 0.0
    %2359 = vmatpush1.msra.mxu0 0.0
    %2360 = vmatprep.subr.mxu0 0.0
    %2361 = vmatpush1.msra.mxu0 0.0
    %2362 = vmatprep.subr.mxu0 0.0
    %2363 = vmatpush1.msra.mxu0 0.0
    %2364 = vmatprep.subr.mxu0 0.0
    %2365 = vmatpush1.msra.mxu0 0.0
    %2366 = vmatprep.subr.mxu0 0.0
    %2367 = vmatpush1.msra.mxu0 0.0
    %2368 = vmatprep.subr.mxu0 0.0
    %2369 = vmatpush1.msra.mxu0 0.0
    %2370 = vmatprep.subr.mxu0 0.0
    %2371 = vmatpush1.msra.mxu0 0.0
    %2372 = vmatprep.subr.mxu0 0.0
    %2373 = vmatpush1.msra.mxu0 0.0
    %2374 = vmatprep.subr.mxu0 0.0
    %2375 = vmatpush1.msra.mxu0 0.0
    %2376 = vmatprep.subr.mxu0 0.0
    %2377 = vmatpush1.msra.mxu0 0.0
    %2378 = vmatprep.subr.mxu0 0.0
    %2379 = vmatpush1.msra.mxu0 0.0
    %2380 = vmatprep.subr.mxu0 0.0
    %2381 = vmatpush1.msra.mxu0 0.0
    %2382 = vmatprep.mubr.f32.mxu0 0.0
    %2383 = vmatmul.mubr.f32.gmra.mrb[0].mxu0 %v2283
    %v2384 = vpop.f32.mrb[0].mxu0
    %v2385 = vadd.f32 0.0, %v2384
    %v2386 = vpop.f32.mrb[0].mxu0
    %v2387 = vadd.f32 0.0, %v2386
    %2388 = vdwg.mxu0
    %2389 = vmatprep.subr.mxu0 %v749
    %2390 = vmatpush1.msra.mxu0 %v748
    %2391 = vmatprep.subr.mxu0 %v753
    %2392 = vmatpush1.msra.mxu0 %v752
    %2393 = vmatprep.subr.mxu0 %v757
    %2394 = vmatpush1.msra.mxu0 %v756
    %2395 = vmatprep.subr.mxu0 %v761
    %2396 = vmatpush1.msra.mxu0 %v760
    %2397 = vmatprep.subr.mxu0 %v765
    %2398 = vmatpush1.msra.mxu0 %v764
    %2399 = vmatprep.subr.mxu0 %v769
    %2400 = vmatpush1.msra.mxu0 %v768
    %2401 = vmatprep.subr.mxu0 %v773
    %2402 = vmatpush1.msra.mxu0 %v772
    %2403 = vmatprep.subr.mxu0 %v777
    %2404 = vmatpush1.msra.mxu0 %v776
    %2405 = vmatprep.subr.mxu0 %v781
    %2406 = vmatpush1.msra.mxu0 %v780
    %2407 = vmatprep.subr.mxu0 %v785
    %2408 = vmatpush1.msra.mxu0 %v784
    %2409 = vmatprep.subr.mxu0 %v789
    %2410 = vmatpush1.msra.mxu0 %v788
    %2411 = vmatprep.subr.mxu0 %v793
    %2412 = vmatpush1.msra.mxu0 %v792
    %2413 = vmatprep.subr.mxu0 %v797
    %2414 = vmatpush1.msra.mxu0 %v796
    %2415 = vmatprep.subr.mxu0 %v801
    %2416 = vmatpush1.msra.mxu0 %v800
    %2417 = vmatprep.subr.mxu0 %v805
    %2418 = vmatpush1.msra.mxu0 %v804
    %2419 = vmatprep.subr.mxu0 %v809
    %2420 = vmatpush1.msra.mxu0 %v808
    %2421 = vmatprep.subr.mxu0 0.0
    %2422 = vmatpush1.msra.mxu0 0.0
    %2423 = vmatprep.subr.mxu0 0.0
    %2424 = vmatpush1.msra.mxu0 0.0
    %2425 = vmatprep.subr.mxu0 0.0
    %2426 = vmatpush1.msra.mxu0 0.0
    %2427 = vmatprep.subr.mxu0 0.0
    %2428 = vmatpush1.msra.mxu0 0.0
    %2429 = vmatprep.subr.mxu0 0.0
    %2430 = vmatpush1.msra.mxu0 0.0
    %2431 = vmatprep.subr.mxu0 0.0
    %2432 = vmatpush1.msra.mxu0 0.0
    %2433 = vmatprep.subr.mxu0 0.0
    %2434 = vmatpush1.msra.mxu0 0.0
    %2435 = vmatprep.subr.mxu0 0.0
    %2436 = vmatpush1.msra.mxu0 0.0
    %2437 = vmatprep.subr.mxu0 0.0
    %2438 = vmatpush1.msra.mxu0 0.0
    %2439 = vmatprep.subr.mxu0 0.0
    %2440 = vmatpush1.msra.mxu0 0.0
    %2441 = vmatprep.subr.mxu0 0.0
    %2442 = vmatpush1.msra.mxu0 0.0
    %2443 = vmatprep.subr.mxu0 0.0
    %2444 = vmatpush1.msra.mxu0 0.0
    %2445 = vmatprep.subr.mxu0 0.0
    %2446 = vmatpush1.msra.mxu0 0.0
    %2447 = vmatprep.subr.mxu0 0.0
    %2448 = vmatpush1.msra.mxu0 0.0
    %2449 = vmatprep.subr.mxu0 0.0
    %2450 = vmatpush1.msra.mxu0 0.0
    %2451 = vmatprep.subr.mxu0 0.0
    %2452 = vmatpush1.msra.mxu0 0.0
    %2453 = vmatprep.mubr.f32.mxu0 0.0
    %2454 = vmatmul.mubr.f32.gmra.mrb[0].mxu0 %v2283
    %v2455 = vpop.f32.mrb[0].mxu0
    %v2456 = vadd.f32 0.0, %v2455
    %v2457 = vpop.f32.mrb[0].mxu0
    %v2458 = vadd.f32 0.0, %v2457
    %2459 = vdwg.mxu0
    %v2460 = vadd.f32 %v2314, %v2385
    %v2461 = vadd.f32 %v2315, %v2387
    %v2462 = vadd.f32 %v2316, %v2456
    %v2463 = vadd.f32 %v2317, %v2458
    %s2464 = smul.addr %s1954, 8
    %s2465 = scalar_lea.vmem [#allocation3], %s2464
    %v2466 = vld [vmem:[%s2465] sm:$0xff]
    %v2467 = vld [vmem:[%s2465 + $0x8] sm:$0xff]
    %v2468 = vld [vmem:[%s2465 + $0x10] sm:$0xff]
    %v2469 = vld [vmem:[%s2465 + $0x18] sm:$0xff]
    %2470 = vmatprep.subr.mxu0 %v812
    %2471 = vmatpush1.msra.mxu0 %v811
    %2472 = vmatprep.subr.mxu0 %v816
    %2473 = vmatpush1.msra.mxu0 %v815
    %2474 = vmatprep.subr.mxu0 %v820
    %2475 = vmatpush1.msra.mxu0 %v819
    %2476 = vmatprep.subr.mxu0 %v824
    %2477 = vmatpush1.msra.mxu0 %v823
    %2478 = vmatprep.subr.mxu0 %v828
    %2479 = vmatpush1.msra.mxu0 %v827
    %2480 = vmatprep.subr.mxu0 %v832
    %2481 = vmatpush1.msra.mxu0 %v831
    %2482 = vmatprep.subr.mxu0 %v836
    %2483 = vmatpush1.msra.mxu0 %v835
    %2484 = vmatprep.subr.mxu0 %v840
    %2485 = vmatpush1.msra.mxu0 %v839
    %2486 = vmatprep.subr.mxu0 %v844
    %2487 = vmatpush1.msra.mxu0 %v843
    %2488 = vmatprep.subr.mxu0 %v848
    %2489 = vmatpush1.msra.mxu0 %v847
    %2490 = vmatprep.subr.mxu0 %v852
    %2491 = vmatpush1.msra.mxu0 %v851
    %2492 = vmatprep.subr.mxu0 %v856
    %2493 = vmatpush1.msra.mxu0 %v855
    %2494 = vmatprep.subr.mxu0 %v860
    %2495 = vmatpush1.msra.mxu0 %v859
    %2496 = vmatprep.subr.mxu0 %v864
    %2497 = vmatpush1.msra.mxu0 %v863
    %2498 = vmatprep.subr.mxu0 %v868
    %2499 = vmatpush1.msra.mxu0 %v867
    %2500 = vmatprep.subr.mxu0 %v872
    %2501 = vmatpush1.msra.mxu0 %v871
    %2502 = vmatprep.subr.mxu0 0.0
    %2503 = vmatpush1.msra.mxu0 0.0
    %2504 = vmatprep.subr.mxu0 0.0
    %2505 = vmatpush1.msra.mxu0 0.0
    %2506 = vmatprep.subr.mxu0 0.0
    %2507 = vmatpush1.msra.mxu0 0.0
    %2508 = vmatprep.subr.mxu0 0.0
    %2509 = vmatpush1.msra.mxu0 0.0
    %2510 = vmatprep.subr.mxu0 0.0
    %2511 = vmatpush1.msra.mxu0 0.0
    %2512 = vmatprep.subr.mxu0 0.0
    %2513 = vmatpush1.msra.mxu0 0.0
    %2514 = vmatprep.subr.mxu0 0.0
    %2515 = vmatpush1.msra.mxu0 0.0
    %2516 = vmatprep.subr.mxu0 0.0
    %2517 = vmatpush1.msra.mxu0 0.0
    %2518 = vmatprep.subr.mxu0 0.0
    %2519 = vmatpush1.msra.mxu0 0.0
    %2520 = vmatprep.subr.mxu0 0.0
    %2521 = vmatpush1.msra.mxu0 0.0
    %2522 = vmatprep.subr.mxu0 0.0
    %2523 = vmatpush1.msra.mxu0 0.0
    %2524 = vmatprep.subr.mxu0 0.0
    %2525 = vmatpush1.msra.mxu0 0.0
    %2526 = vmatprep.subr.mxu0 0.0
    %2527 = vmatpush1.msra.mxu0 0.0
    %2528 = vmatprep.subr.mxu0 0.0
    %2529 = vmatpush1.msra.mxu0 0.0
    %2530 = vmatprep.subr.mxu0 0.0
    %2531 = vmatpush1.msra.mxu0 0.0
    %2532 = vmatprep.subr.mxu0 0.0
    %2533 = vmatpush1.msra.mxu0 0.0
    %2534 = vmatprep.mubr.f32.mxu0 0.0
    %2535 = vmatmul.mubr.f32.gmra.mrb[0].mxu0 %v2307
    %v2536 = vpop.f32.mrb[0].mxu0
    %v2537 = vadd.f32 0.0, %v2536
    %v2538 = vpop.f32.mrb[0].mxu0
    %v2539 = vadd.f32 0.0, %v2538
    %2540 = vdwg.mxu0
    %2541 = vmatprep.subr.mxu0 %v814
    %2542 = vmatpush1.msra.mxu0 %v813
    %2543 = vmatprep.subr.mxu0 %v818
    %2544 = vmatpush1.msra.mxu0 %v817
    %2545 = vmatprep.subr.mxu0 %v822
    %2546 = vmatpush1.msra.mxu0 %v821
    %2547 = vmatprep.subr.mxu0 %v826
    %2548 = vmatpush1.msra.mxu0 %v825
    %2549 = vmatprep.subr.mxu0 %v830
    %2550 = vmatpush1.msra.mxu0 %v829
    %2551 = vmatprep.subr.mxu0 %v834
    %2552 = vmatpush1.msra.mxu0 %v833
    %2553 = vmatprep.subr.mxu0 %v838
    %2554 = vmatpush1.msra.mxu0 %v837
    %2555 = vmatprep.subr.mxu0 %v842
    %2556 = vmatpush1.msra.mxu0 %v841
    %2557 = vmatprep.subr.mxu0 %v846
    %2558 = vmatpush1.msra.mxu0 %v845
    %2559 = vmatprep.subr.mxu0 %v850
    %2560 = vmatpush1.msra.mxu0 %v849
    %2561 = vmatprep.subr.mxu0 %v854
    %2562 = vmatpush1.msra.mxu0 %v853
    %2563 = vmatprep.subr.mxu0 %v858
    %2564 = vmatpush1.msra.mxu0 %v857
    %2565 = vmatprep.subr.mxu0 %v862
    %2566 = vmatpush1.msra.mxu0 %v861
    %2567 = vmatprep.subr.mxu0 %v866
    %2568 = vmatpush1.msra.mxu0 %v865
    %2569 = vmatprep.subr.mxu0 %v870
    %2570 = vmatpush1.msra.mxu0 %v869
    %2571 = vmatprep.subr.mxu0 %v874
    %2572 = vmatpush1.msra.mxu0 %v873
    %2573 = vmatprep.subr.mxu0 0.0
    %2574 = vmatpush1.msra.mxu0 0.0
    %2575 = vmatprep.subr.mxu0 0.0
    %2576 = vmatpush1.msra.mxu0 0.0
    %2577 = vmatprep.subr.mxu0 0.0
    %2578 = vmatpush1.msra.mxu0 0.0
    %2579 = vmatprep.subr.mxu0 0.0
    %2580 = vmatpush1.msra.mxu0 0.0
    %2581 = vmatprep.subr.mxu0 0.0
    %2582 = vmatpush1.msra.mxu0 0.0
    %2583 = vmatprep.subr.mxu0 0.0
    %2584 = vmatpush1.msra.mxu0 0.0
    %2585 = vmatprep.subr.mxu0 0.0
    %2586 = vmatpush1.msra.mxu0 0.0
    %2587 = vmatprep.subr.mxu0 0.0
    %2588 = vmatpush1.msra.mxu0 0.0
    %2589 = vmatprep.subr.mxu0 0.0
    %2590 = vmatpush1.msra.mxu0 0.0
    %2591 = vmatprep.subr.mxu0 0.0
    %2592 = vmatpush1.msra.mxu0 0.0
    %2593 = vmatprep.subr.mxu0 0.0
    %2594 = vmatpush1.msra.mxu0 0.0
    %2595 = vmatprep.subr.mxu0 0.0
    %2596 = vmatpush1.msra.mxu0 0.0
    %2597 = vmatprep.subr.mxu0 0.0
    %2598 = vmatpush1.msra.mxu0 0.0
    %2599 = vmatprep.subr.mxu0 0.0
    %2600 = vmatpush1.msra.mxu0 0.0
    %2601 = vmatprep.subr.mxu0 0.0
    %2602 = vmatpush1.msra.mxu0 0.0
    %2603 = vmatprep.subr.mxu0 0.0
    %2604 = vmatpush1.msra.mxu0 0.0
    %2605 = vmatprep.mubr.f32.mxu0 0.0
    %2606 = vmatmul.mubr.f32.gmra.mrb[0].mxu0 %v2307
    %v2607 = vpop.f32.mrb[0].mxu0
    %v2608 = vadd.f32 0.0, %v2607
    %v2609 = vpop.f32.mrb[0].mxu0
    %v2610 = vadd.f32 0.0, %v2609
    %2611 = vdwg.mxu0
    %v2612 = vadd.f32 %v2466, %v2537
    %v2613 = vadd.f32 %v2467, %v2539
    %v2614 = vadd.f32 %v2468, %v2608
    %v2615 = vadd.f32 %v2469, %v2610
    %v2616 = vxor.u32 %v2460, 2147483648
    %v2617 = vxor.u32 %v2461, 2147483648
    %v2618 = vxor.u32 %v2462, 2147483648
    %v2619 = vmul.f32 %v2616, 1.442695
    %v2620 = vpow.pop %v2619
    %v2621 = vmul.f32 %v2617, 1.442695
    %v2622 = vpow.pop %v2621
    %v2623 = vmul.f32 %v2618, 1.442695
    %v2624 = vpow.pop %v2623
    %v2625 = vadd.f32 %v2620, 1.0
    %v2626 = vadd.f32 %v2622, 1.0
    %v2627 = vadd.f32 %v2624, 1.0
    %v2628 = vrcp.pop %v2625
    %v2629 = vmul.f32 1.0, %v2628
    %v2630 = vrcp.pop %v2626
    %v2631 = vmul.f32 1.0, %v2630
    %v2632 = vrcp.pop %v2627
    %v2633 = vmul.f32 1.0, %v2632
    %v2634 = vtanh.pop %v2463
    %v2635 = vmul.f32 %v2631, %v2281
    %v2636 = vmul.f32 %v2629, %v2634
    %v2637 = vadd.f32 %v2635, %v2636
    %v2638 = vtanh.pop %v2637
    %v2639 = vmul.f32 %v2633, %v2638
    %v2640 = vxor.u32 %v2612, 2147483648
    %v2641 = vxor.u32 %v2613, 2147483648
    %v2642 = vxor.u32 %v2614, 2147483648
    %v2643 = vmul.f32 %v2640, 1.442695
    %v2644 = vpow.pop %v2643
    %v2645 = vmul.f32 %v2641, 1.442695
    %v2646 = vpow.pop %v2645
    %v2647 = vmul.f32 %v2642, 1.442695
    %v2648 = vpow.pop %v2647
    %v2649 = vadd.f32 %v2644, 1.0
    %v2650 = vadd.f32 %v2646, 1.0
    %v2651 = vadd.f32 %v2648, 1.0
    %v2652 = vrcp.pop %v2649
    %v2653 = vmul.f32 1.0, %v2652
    %v2654 = vrcp.pop %v2650
    %v2655 = vmul.f32 1.0, %v2654
    %v2656 = vrcp.pop %v2651
    %v2657 = vmul.f32 1.0, %v2656
    %v2658 = vtanh.pop %v2615
    %v2659 = vmul.f32 %v2655, %v2305
    %v2660 = vmul.f32 %v2653, %v2658
    %v2661 = vadd.f32 %v2659, %v2660
    %v2662 = vtanh.pop %v2661
    %v2663 = vmul.f32 %v2657, %v2662
    %s2664 = scalar_lea.vmem [#allocation9], 32
    %2665 = vst [vmem:[%s2664] sm:$0xff] %v2639
    %s2666 = scalar_lea.vmem [#allocation10], 24
    %2667 = vst [vmem:[%s2666] sm:$0xff] %v2663
    %s2668 = smul.addr %s1749, 8
    %s2669 = scalar_lea.vmem [#allocation2], %s2668
    %v2670 = vld [vmem:[%s2669] sm:$0xff]
    %v2671 = vld [vmem:[%s2669 + $0x8] sm:$0xff]
    %v2672 = vld [vmem:[%s2669 + $0x10] sm:$0xff]
    %v2673 = vld [vmem:[%s2669 + $0x18] sm:$0xff]
    %2674 = vmatprep.subr.mxu0 %v747
    %2675 = vmatpush1.msra.mxu0 %v746
    %2676 = vmatprep.subr.mxu0 %v751
    %2677 = vmatpush1.msra.mxu0 %v750
    %2678 = vmatprep.subr.mxu0 %v755
    %2679 = vmatpush1.msra.mxu0 %v754
    %2680 = vmatprep.subr.mxu0 %v759
    %2681 = vmatpush1.msra.mxu0 %v758
    %2682 = vmatprep.subr.mxu0 %v763
    %2683 = vmatpush1.msra.mxu0 %v762
    %2684 = vmatprep.subr.mxu0 %v767
    %2685 = vmatpush1.msra.mxu0 %v766
    %2686 = vmatprep.subr.mxu0 %v771
    %2687 = vmatpush1.msra.mxu0 %v770
    %2688 = vmatprep.subr.mxu0 %v775
    %2689 = vmatpush1.msra.mxu0 %v774
    %2690 = vmatprep.subr.mxu0 %v779
    %2691 = vmatpush1.msra.mxu0 %v778
    %2692 = vmatprep.subr.mxu0 %v783
    %2693 = vmatpush1.msra.mxu0 %v782
    %2694 = vmatprep.subr.mxu0 %v787
    %2695 = vmatpush1.msra.mxu0 %v786
    %2696 = vmatprep.subr.mxu0 %v791
    %2697 = vmatpush1.msra.mxu0 %v790
    %2698 = vmatprep.subr.mxu0 %v795
    %2699 = vmatpush1.msra.mxu0 %v794
    %2700 = vmatprep.subr.mxu0 %v799
    %2701 = vmatpush1.msra.mxu0 %v798
    %2702 = vmatprep.subr.mxu0 %v803
    %2703 = vmatpush1.msra.mxu0 %v802
    %2704 = vmatprep.subr.mxu0 %v807
    %2705 = vmatpush1.msra.mxu0 %v806
    %2706 = vmatprep.subr.mxu0 0.0
    %2707 = vmatpush1.msra.mxu0 0.0
    %2708 = vmatprep.subr.mxu0 0.0
    %2709 = vmatpush1.msra.mxu0 0.0
    %2710 = vmatprep.subr.mxu0 0.0
    %2711 = vmatpush1.msra.mxu0 0.0
    %2712 = vmatprep.subr.mxu0 0.0
    %2713 = vmatpush1.msra.mxu0 0.0
    %2714 = vmatprep.subr.mxu0 0.0
    %2715 = vmatpush1.msra.mxu0 0.0
    %2716 = vmatprep.subr.mxu0 0.0
    %2717 = vmatpush1.msra.mxu0 0.0
    %2718 = vmatprep.subr.mxu0 0.0
    %2719 = vmatpush1.msra.mxu0 0.0
    %2720 = vmatprep.subr.mxu0 0.0
    %2721 = vmatpush1.msra.mxu0 0.0
    %2722 = vmatprep.subr.mxu0 0.0
    %2723 = vmatpush1.msra.mxu0 0.0
    %2724 = vmatprep.subr.mxu0 0.0
    %2725 = vmatpush1.msra.mxu0 0.0
    %2726 = vmatprep.subr.mxu0 0.0
    %2727 = vmatpush1.msra.mxu0 0.0
    %2728 = vmatprep.subr.mxu0 0.0
    %2729 = vmatpush1.msra.mxu0 0.0
    %2730 = vmatprep.subr.mxu0 0.0
    %2731 = vmatpush1.msra.mxu0 0.0
    %2732 = vmatprep.subr.mxu0 0.0
    %2733 = vmatpush1.msra.mxu0 0.0
    %2734 = vmatprep.subr.mxu0 0.0
    %2735 = vmatpush1.msra.mxu0 0.0
    %2736 = vmatprep.subr.mxu0 0.0
    %2737 = vmatpush1.msra.mxu0 0.0
    %2738 = vmatprep.mubr.f32.mxu0 0.0
    %2739 = vmatmul.mubr.f32.gmra.mrb[0].mxu0 %v2639
    %v2740 = vpop.f32.mrb[0].mxu0
    %v2741 = vadd.f32 0.0, %v2740
    %v2742 = vpop.f32.mrb[0].mxu0
    %v2743 = vadd.f32 0.0, %v2742
    %2744 = vdwg.mxu0
    %2745 = vmatprep.subr.mxu0 %v749
    %2746 = vmatpush1.msra.mxu0 %v748
    %2747 = vmatprep.subr.mxu0 %v753
    %2748 = vmatpush1.msra.mxu0 %v752
    %2749 = vmatprep.subr.mxu0 %v757
    %2750 = vmatpush1.msra.mxu0 %v756
    %2751 = vmatprep.subr.mxu0 %v761
    %2752 = vmatpush1.msra.mxu0 %v760
    %2753 = vmatprep.subr.mxu0 %v765
    %2754 = vmatpush1.msra.mxu0 %v764
    %2755 = vmatprep.subr.mxu0 %v769
    %2756 = vmatpush1.msra.mxu0 %v768
    %2757 = vmatprep.subr.mxu0 %v773
    %2758 = vmatpush1.msra.mxu0 %v772
    %2759 = vmatprep.subr.mxu0 %v777
    %2760 = vmatpush1.msra.mxu0 %v776
    %2761 = vmatprep.subr.mxu0 %v781
    %2762 = vmatpush1.msra.mxu0 %v780
    %2763 = vmatprep.subr.mxu0 %v785
    %2764 = vmatpush1.msra.mxu0 %v784
    %2765 = vmatprep.subr.mxu0 %v789
    %2766 = vmatpush1.msra.mxu0 %v788
    %2767 = vmatprep.subr.mxu0 %v793
    %2768 = vmatpush1.msra.mxu0 %v792
    %2769 = vmatprep.subr.mxu0 %v797
    %2770 = vmatpush1.msra.mxu0 %v796
    %2771 = vmatprep.subr.mxu0 %v801
    %2772 = vmatpush1.msra.mxu0 %v800
    %2773 = vmatprep.subr.mxu0 %v805
    %2774 = vmatpush1.msra.mxu0 %v804
    %2775 = vmatprep.subr.mxu0 %v809
    %2776 = vmatpush1.msra.mxu0 %v808
    %2777 = vmatprep.subr.mxu0 0.0
    %2778 = vmatpush1.msra.mxu0 0.0
    %2779 = vmatprep.subr.mxu0 0.0
    %2780 = vmatpush1.msra.mxu0 0.0
    %2781 = vmatprep.subr.mxu0 0.0
    %2782 = vmatpush1.msra.mxu0 0.0
    %2783 = vmatprep.subr.mxu0 0.0
    %2784 = vmatpush1.msra.mxu0 0.0
    %2785 = vmatprep.subr.mxu0 0.0
    %2786 = vmatpush1.msra.mxu0 0.0
    %2787 = vmatprep.subr.mxu0 0.0
    %2788 = vmatpush1.msra.mxu0 0.0
    %2789 = vmatprep.subr.mxu0 0.0
    %2790 = vmatpush1.msra.mxu0 0.0
    %2791 = vmatprep.subr.mxu0 0.0
    %2792 = vmatpush1.msra.mxu0 0.0
    %2793 = vmatprep.subr.mxu0 0.0
    %2794 = vmatpush1.msra.mxu0 0.0
    %2795 = vmatprep.subr.mxu0 0.0
    %2796 = vmatpush1.msra.mxu0 0.0
    %2797 = vmatprep.subr.mxu0 0.0
    %2798 = vmatpush1.msra.mxu0 0.0
    %2799 = vmatprep.subr.mxu0 0.0
    %2800 = vmatpush1.msra.mxu0 0.0
    %2801 = vmatprep.subr.mxu0 0.0
    %2802 = vmatpush1.msra.mxu0 0.0
    %2803 = vmatprep.subr.mxu0 0.0
    %2804 = vmatpush1.msra.mxu0 0.0
    %2805 = vmatprep.subr.mxu0 0.0
    %2806 = vmatpush1.msra.mxu0 0.0
    %2807 = vmatprep.subr.mxu0 0.0
    %2808 = vmatpush1.msra.mxu0 0.0
    %2809 = vmatprep.mubr.f32.mxu0 0.0
    %2810 = vmatmul.mubr.f32.gmra.mrb[0].mxu0 %v2639
    %v2811 = vpop.f32.mrb[0].mxu0
    %v2812 = vadd.f32 0.0, %v2811
    %v2813 = vpop.f32.mrb[0].mxu0
    %v2814 = vadd.f32 0.0, %v2813
    %2815 = vdwg.mxu0
    %v2816 = vadd.f32 %v2670, %v2741
    %v2817 = vadd.f32 %v2671, %v2743
    %v2818 = vadd.f32 %v2672, %v2812
    %v2819 = vadd.f32 %v2673, %v2814
    %s2820 = smul.addr %s1596, 8
    %s2821 = scalar_lea.vmem [#allocation3], %s2820
    %v2822 = vld [vmem:[%s2821] sm:$0xff]
    %v2823 = vld [vmem:[%s2821 + $0x8] sm:$0xff]
    %v2824 = vld [vmem:[%s2821 + $0x10] sm:$0xff]
    %v2825 = vld [vmem:[%s2821 + $0x18] sm:$0xff]
    %2826 = vmatprep.subr.mxu0 %v812
    %2827 = vmatpush1.msra.mxu0 %v811
    %2828 = vmatprep.subr.mxu0 %v816
    %2829 = vmatpush1.msra.mxu0 %v815
    %2830 = vmatprep.subr.mxu0 %v820
    %2831 = vmatpush1.msra.mxu0 %v819
    %2832 = vmatprep.subr.mxu0 %v824
    %2833 = vmatpush1.msra.mxu0 %v823
    %2834 = vmatprep.subr.mxu0 %v828
    %2835 = vmatpush1.msra.mxu0 %v827
    %2836 = vmatprep.subr.mxu0 %v832
    %2837 = vmatpush1.msra.mxu0 %v831
    %2838 = vmatprep.subr.mxu0 %v836
    %2839 = vmatpush1.msra.mxu0 %v835
    %2840 = vmatprep.subr.mxu0 %v840
    %2841 = vmatpush1.msra.mxu0 %v839
    %2842 = vmatprep.subr.mxu0 %v844
    %2843 = vmatpush1.msra.mxu0 %v843
    %2844 = vmatprep.subr.mxu0 %v848
    %2845 = vmatpush1.msra.mxu0 %v847
    %2846 = vmatprep.subr.mxu0 %v852
    %2847 = vmatpush1.msra.mxu0 %v851
    %2848 = vmatprep.subr.mxu0 %v856
    %2849 = vmatpush1.msra.mxu0 %v855
    %2850 = vmatprep.subr.mxu0 %v860
    %2851 = vmatpush1.msra.mxu0 %v859
    %2852 = vmatprep.subr.mxu0 %v864
    %2853 = vmatpush1.msra.mxu0 %v863
    %2854 = vmatprep.subr.mxu0 %v868
    %2855 = vmatpush1.msra.mxu0 %v867
    %2856 = vmatprep.subr.mxu0 %v872
    %2857 = vmatpush1.msra.mxu0 %v871
    %2858 = vmatprep.subr.mxu0 0.0
    %2859 = vmatpush1.msra.mxu0 0.0
    %2860 = vmatprep.subr.mxu0 0.0
    %2861 = vmatpush1.msra.mxu0 0.0
    %2862 = vmatprep.subr.mxu0 0.0
    %2863 = vmatpush1.msra.mxu0 0.0
    %2864 = vmatprep.subr.mxu0 0.0
    %2865 = vmatpush1.msra.mxu0 0.0
    %2866 = vmatprep.subr.mxu0 0.0
    %2867 = vmatpush1.msra.mxu0 0.0
    %2868 = vmatprep.subr.mxu0 0.0
    %2869 = vmatpush1.msra.mxu0 0.0
    %2870 = vmatprep.subr.mxu0 0.0
    %2871 = vmatpush1.msra.mxu0 0.0
    %2872 = vmatprep.subr.mxu0 0.0
    %2873 = vmatpush1.msra.mxu0 0.0
    %2874 = vmatprep.subr.mxu0 0.0
    %2875 = vmatpush1.msra.mxu0 0.0
    %2876 = vmatprep.subr.mxu0 0.0
    %2877 = vmatpush1.msra.mxu0 0.0
    %2878 = vmatprep.subr.mxu0 0.0
    %2879 = vmatpush1.msra.mxu0 0.0
    %2880 = vmatprep.subr.mxu0 0.0
    %2881 = vmatpush1.msra.mxu0 0.0
    %2882 = vmatprep.subr.mxu0 0.0
    %2883 = vmatpush1.msra.mxu0 0.0
    %2884 = vmatprep.subr.mxu0 0.0
    %2885 = vmatpush1.msra.mxu0 0.0
    %2886 = vmatprep.subr.mxu0 0.0
    %2887 = vmatpush1.msra.mxu0 0.0
    %2888 = vmatprep.subr.mxu0 0.0
    %2889 = vmatpush1.msra.mxu0 0.0
    %2890 = vmatprep.mubr.f32.mxu0 0.0
    %2891 = vmatmul.mubr.f32.gmra.mrb[0].mxu0 %v2663
    %v2892 = vpop.f32.mrb[0].mxu0
    %v2893 = vadd.f32 0.0, %v2892
    %v2894 = vpop.f32.mrb[0].mxu0
    %v2895 = vadd.f32 0.0, %v2894
    %2896 = vdwg.mxu0
    %2897 = vmatprep.subr.mxu0 %v814
    %2898 = vmatpush1.msra.mxu0 %v813
    %2899 = vmatprep.subr.mxu0 %v818
    %2900 = vmatpush1.msra.mxu0 %v817
    %2901 = vmatprep.subr.mxu0 %v822
    %2902 = vmatpush1.msra.mxu0 %v821
    %2903 = vmatprep.subr.mxu0 %v826
    %2904 = vmatpush1.msra.mxu0 %v825
    %2905 = vmatprep.subr.mxu0 %v830
    %2906 = vmatpush1.msra.mxu0 %v829
    %2907 = vmatprep.subr.mxu0 %v834
    %2908 = vmatpush1.msra.mxu0 %v833
    %2909 = vmatprep.subr.mxu0 %v838
    %2910 = vmatpush1.msra.mxu0 %v837
    %2911 = vmatprep.subr.mxu0 %v842
    %2912 = vmatpush1.msra.mxu0 %v841
    %2913 = vmatprep.subr.mxu0 %v846
    %2914 = vmatpush1.msra.mxu0 %v845
    %2915 = vmatprep.subr.mxu0 %v850
    %2916 = vmatpush1.msra.mxu0 %v849
    %2917 = vmatprep.subr.mxu0 %v854
    %2918 = vmatpush1.msra.mxu0 %v853
    %2919 = vmatprep.subr.mxu0 %v858
    %2920 = vmatpush1.msra.mxu0 %v857
    %2921 = vmatprep.subr.mxu0 %v862
    %2922 = vmatpush1.msra.mxu0 %v861
    %2923 = vmatprep.subr.mxu0 %v866
    %2924 = vmatpush1.msra.mxu0 %v865
    %2925 = vmatprep.subr.mxu0 %v870
    %2926 = vmatpush1.msra.mxu0 %v869
    %2927 = vmatprep.subr.mxu0 %v874
    %2928 = vmatpush1.msra.mxu0 %v873
    %2929 = vmatprep.subr.mxu0 0.0
    %2930 = vmatpush1.msra.mxu0 0.0
    %2931 = vmatprep.subr.mxu0 0.0
    %2932 = vmatpush1.msra.mxu0 0.0
    %2933 = vmatprep.subr.mxu0 0.0
    %2934 = vmatpush1.msra.mxu0 0.0
    %2935 = vmatprep.subr.mxu0 0.0
    %2936 = vmatpush1.msra.mxu0 0.0
    %2937 = vmatprep.subr.mxu0 0.0
    %2938 = vmatpush1.msra.mxu0 0.0
    %2939 = vmatprep.subr.mxu0 0.0
    %2940 = vmatpush1.msra.mxu0 0.0
    %2941 = vmatprep.subr.mxu0 0.0
    %2942 = vmatpush1.msra.mxu0 0.0
    %2943 = vmatprep.subr.mxu0 0.0
    %2944 = vmatpush1.msra.mxu0 0.0
    %2945 = vmatprep.subr.mxu0 0.0
    %2946 = vmatpush1.msra.mxu0 0.0
    %2947 = vmatprep.subr.mxu0 0.0
    %2948 = vmatpush1.msra.mxu0 0.0
    %2949 = vmatprep.subr.mxu0 0.0
    %2950 = vmatpush1.msra.mxu0 0.0
    %2951 = vmatprep.subr.mxu0 0.0
    %2952 = vmatpush1.msra.mxu0 0.0
    %2953 = vmatprep.subr.mxu0 0.0
    %2954 = vmatpush1.msra.mxu0 0.0
    %2955 = vmatprep.subr.mxu0 0.0
    %2956 = vmatpush1.msra.mxu0 0.0
    %2957 = vmatprep.subr.mxu0 0.0
    %2958 = vmatpush1.msra.mxu0 0.0
    %2959 = vmatprep.subr.mxu0 0.0
    %2960 = vmatpush1.msra.mxu0 0.0
    %2961 = vmatprep.mubr.f32.mxu0 0.0
    %2962 = vmatmul.mubr.f32.gmra.mrb[0].mxu0 %v2663
    %v2963 = vpop.f32.mrb[0].mxu0
    %v2964 = vadd.f32 0.0, %v2963
    %v2965 = vpop.f32.mrb[0].mxu0
    %v2966 = vadd.f32 0.0, %v2965
    %2967 = vdwg.mxu0
    %v2968 = vadd.f32 %v2822, %v2893
    %v2969 = vadd.f32 %v2823, %v2895
    %v2970 = vadd.f32 %v2824, %v2964
    %v2971 = vadd.f32 %v2825, %v2966
    %v2972 = vxor.u32 %v2816, 2147483648
    %v2973 = vxor.u32 %v2817, 2147483648
    %v2974 = vxor.u32 %v2818, 2147483648
    %v2975 = vmul.f32 %v2972, 1.442695
    %v2976 = vpow.pop %v2975
    %v2977 = vmul.f32 %v2973, 1.442695
    %v2978 = vpow.pop %v2977
    %v2979 = vmul.f32 %v2974, 1.442695
    %v2980 = vpow.pop %v2979
    %v2981 = vadd.f32 %v2976, 1.0
    %v2982 = vadd.f32 %v2978, 1.0
    %v2983 = vadd.f32 %v2980, 1.0
    %v2984 = vrcp.pop %v2981
    %v2985 = vmul.f32 1.0, %v2984
    %v2986 = vrcp.pop %v2982
    %v2987 = vmul.f32 1.0, %v2986
    %v2988 = vrcp.pop %v2983
    %v2989 = vmul.f32 1.0, %v2988
    %v2990 = vtanh.pop %v2819
    %v2991 = vmul.f32 %v2987, %v2637
    %v2992 = vmul.f32 %v2985, %v2990
    %v2993 = vadd.f32 %v2991, %v2992
    %v2994 = vtanh.pop %v2993
    %v2995 = vmul.f32 %v2989, %v2994
    %v2996 = vxor.u32 %v2968, 2147483648
    %v2997 = vxor.u32 %v2969, 2147483648
    %v2998 = vxor.u32 %v2970, 2147483648
    %v2999 = vmul.f32 %v2996, 1.442695
    %v3000 = vpow.pop %v2999
    %v3001 = vmul.f32 %v2997, 1.442695
    %v3002 = vpow.pop %v3001
    %v3003 = vmul.f32 %v2998, 1.442695
    %v3004 = vpow.pop %v3003
    %v3005 = vadd.f32 %v3000, 1.0
    %v3006 = vadd.f32 %v3002, 1.0
    %v3007 = vadd.f32 %v3004, 1.0
    %v3008 = vrcp.pop %v3005
    %v3009 = vmul.f32 1.0, %v3008
    %v3010 = vrcp.pop %v3006
    %v3011 = vmul.f32 1.0, %v3010
    %v3012 = vrcp.pop %v3007
    %v3013 = vmul.f32 1.0, %v3012
    %v3014 = vtanh.pop %v2971
    %v3015 = vmul.f32 %v3011, %v2661
    %v3016 = vmul.f32 %v3009, %v3014
    %v3017 = vadd.f32 %v3015, %v3016
    %v3018 = vtanh.pop %v3017
    %v3019 = vmul.f32 %v3013, %v3018
    %s3020 = scalar_lea.vmem [#allocation9], 40
    %3021 = vst [vmem:[%s3020] sm:$0xff] %v2995
    %s3022 = scalar_lea.vmem [#allocation10], 16
    %3023 = vst [vmem:[%s3022] sm:$0xff] %v3019
    %s3024 = smul.addr %s1391, 8
    %s3025 = scalar_lea.vmem [#allocation2], %s3024
    %v3026 = vld [vmem:[%s3025] sm:$0xff]
    %v3027 = vld [vmem:[%s3025 + $0x8] sm:$0xff]
    %v3028 = vld [vmem:[%s3025 + $0x10] sm:$0xff]
    %v3029 = vld [vmem:[%s3025 + $0x18] sm:$0xff]
    %3030 = vmatprep.subr.mxu0 %v747
    %3031 = vmatpush1.msra.mxu0 %v746
    %3032 = vmatprep.subr.mxu0 %v751
    %3033 = vmatpush1.msra.mxu0 %v750
    %3034 = vmatprep.subr.mxu0 %v755
    %3035 = vmatpush1.msra.mxu0 %v754
    %3036 = vmatprep.subr.mxu0 %v759
    %3037 = vmatpush1.msra.mxu0 %v758
    %3038 = vmatprep.subr.mxu0 %v763
    %3039 = vmatpush1.msra.mxu0 %v762
    %3040 = vmatprep.subr.mxu0 %v767
    %3041 = vmatpush1.msra.mxu0 %v766
    %3042 = vmatprep.subr.mxu0 %v771
    %3043 = vmatpush1.msra.mxu0 %v770
    %3044 = vmatprep.subr.mxu0 %v775
    %3045 = vmatpush1.msra.mxu0 %v774
    %3046 = vmatprep.subr.mxu0 %v779
    %3047 = vmatpush1.msra.mxu0 %v778
    %3048 = vmatprep.subr.mxu0 %v783
    %3049 = vmatpush1.msra.mxu0 %v782
    %3050 = vmatprep.subr.mxu0 %v787
    %3051 = vmatpush1.msra.mxu0 %v786
    %3052 = vmatprep.subr.mxu0 %v791
    %3053 = vmatpush1.msra.mxu0 %v790
    %3054 = vmatprep.subr.mxu0 %v795
    %3055 = vmatpush1.msra.mxu0 %v794
    %3056 = vmatprep.subr.mxu0 %v799
    %3057 = vmatpush1.msra.mxu0 %v798
    %3058 = vmatprep.subr.mxu0 %v803
    %3059 = vmatpush1.msra.mxu0 %v802
    %3060 = vmatprep.subr.mxu0 %v807
    %3061 = vmatpush1.msra.mxu0 %v806
    %3062 = vmatprep.subr.mxu0 0.0
    %3063 = vmatpush1.msra.mxu0 0.0
    %3064 = vmatprep.subr.mxu0 0.0
    %3065 = vmatpush1.msra.mxu0 0.0
    %3066 = vmatprep.subr.mxu0 0.0
    %3067 = vmatpush1.msra.mxu0 0.0
    %3068 = vmatprep.subr.mxu0 0.0
    %3069 = vmatpush1.msra.mxu0 0.0
    %3070 = vmatprep.subr.mxu0 0.0
    %3071 = vmatpush1.msra.mxu0 0.0
    %3072 = vmatprep.subr.mxu0 0.0
    %3073 = vmatpush1.msra.mxu0 0.0
    %3074 = vmatprep.subr.mxu0 0.0
    %3075 = vmatpush1.msra.mxu0 0.0
    %3076 = vmatprep.subr.mxu0 0.0
    %3077 = vmatpush1.msra.mxu0 0.0
    %3078 = vmatprep.subr.mxu0 0.0
    %3079 = vmatpush1.msra.mxu0 0.0
    %3080 = vmatprep.subr.mxu0 0.0
    %3081 = vmatpush1.msra.mxu0 0.0
    %3082 = vmatprep.subr.mxu0 0.0
    %3083 = vmatpush1.msra.mxu0 0.0
    %3084 = vmatprep.subr.mxu0 0.0
    %3085 = vmatpush1.msra.mxu0 0.0
    %3086 = vmatprep.subr.mxu0 0.0
    %3087 = vmatpush1.msra.mxu0 0.0
    %3088 = vmatprep.subr.mxu0 0.0
    %3089 = vmatpush1.msra.mxu0 0.0
    %3090 = vmatprep.subr.mxu0 0.0
    %3091 = vmatpush1.msra.mxu0 0.0
    %3092 = vmatprep.subr.mxu0 0.0
    %3093 = vmatpush1.msra.mxu0 0.0
    %3094 = vmatprep.mubr.f32.mxu0 0.0
    %3095 = vmatmul.mubr.f32.gmra.mrb[0].mxu0 %v2995
    %v3096 = vpop.f32.mrb[0].mxu0
    %v3097 = vadd.f32 0.0, %v3096
    %v3098 = vpop.f32.mrb[0].mxu0
    %v3099 = vadd.f32 0.0, %v3098
    %3100 = vdwg.mxu0
    %3101 = vmatprep.subr.mxu0 %v749
    %3102 = vmatpush1.msra.mxu0 %v748
    %3103 = vmatprep.subr.mxu0 %v753
    %3104 = vmatpush1.msra.mxu0 %v752
    %3105 = vmatprep.subr.mxu0 %v757
    %3106 = vmatpush1.msra.mxu0 %v756
    %3107 = vmatprep.subr.mxu0 %v761
    %3108 = vmatpush1.msra.mxu0 %v760
    %3109 = vmatprep.subr.mxu0 %v765
    %3110 = vmatpush1.msra.mxu0 %v764
    %3111 = vmatprep.subr.mxu0 %v769
    %3112 = vmatpush1.msra.mxu0 %v768
    %3113 = vmatprep.subr.mxu0 %v773
    %3114 = vmatpush1.msra.mxu0 %v772
    %3115 = vmatprep.subr.mxu0 %v777
    %3116 = vmatpush1.msra.mxu0 %v776
    %3117 = vmatprep.subr.mxu0 %v781
    %3118 = vmatpush1.msra.mxu0 %v780
    %3119 = vmatprep.subr.mxu0 %v785
    %3120 = vmatpush1.msra.mxu0 %v784
    %3121 = vmatprep.subr.mxu0 %v789
    %3122 = vmatpush1.msra.mxu0 %v788
    %3123 = vmatprep.subr.mxu0 %v793
    %3124 = vmatpush1.msra.mxu0 %v792
    %3125 = vmatprep.subr.mxu0 %v797
    %3126 = vmatpush1.msra.mxu0 %v796
    %3127 = vmatprep.subr.mxu0 %v801
    %3128 = vmatpush1.msra.mxu0 %v800
    %3129 = vmatprep.subr.mxu0 %v805
    %3130 = vmatpush1.msra.mxu0 %v804
    %3131 = vmatprep.subr.mxu0 %v809
    %3132 = vmatpush1.msra.mxu0 %v808
    %3133 = vmatprep.subr.mxu0 0.0
    %3134 = vmatpush1.msra.mxu0 0.0
    %3135 = vmatprep.subr.mxu0 0.0
    %3136 = vmatpush1.msra.mxu0 0.0
    %3137 = vmatprep.subr.mxu0 0.0
    %3138 = vmatpush1.msra.mxu0 0.0
    %3139 = vmatprep.subr.mxu0 0.0
    %3140 = vmatpush1.msra.mxu0 0.0
    %3141 = vmatprep.subr.mxu0 0.0
    %3142 = vmatpush1.msra.mxu0 0.0
    %3143 = vmatprep.subr.mxu0 0.0
    %3144 = vmatpush1.msra.mxu0 0.0
    %3145 = vmatprep.subr.mxu0 0.0
    %3146 = vmatpush1.msra.mxu0 0.0
    %3147 = vmatprep.subr.mxu0 0.0
    %3148 = vmatpush1.msra.mxu0 0.0
    %3149 = vmatprep.subr.mxu0 0.0
    %3150 = vmatpush1.msra.mxu0 0.0
    %3151 = vmatprep.subr.mxu0 0.0
    %3152 = vmatpush1.msra.mxu0 0.0
    %3153 = vmatprep.subr.mxu0 0.0
    %3154 = vmatpush1.msra.mxu0 0.0
    %3155 = vmatprep.subr.mxu0 0.0
    %3156 = vmatpush1.msra.mxu0 0.0
    %3157 = vmatprep.subr.mxu0 0.0
    %3158 = vmatpush1.msra.mxu0 0.0
    %3159 = vmatprep.subr.mxu0 0.0
    %3160 = vmatpush1.msra.mxu0 0.0
    %3161 = vmatprep.subr.mxu0 0.0
    %3162 = vmatpush1.msra.mxu0 0.0
    %3163 = vmatprep.subr.mxu0 0.0
    %3164 = vmatpush1.msra.mxu0 0.0
    %3165 = vmatprep.mubr.f32.mxu0 0.0
    %3166 = vmatmul.mubr.f32.gmra.mrb[0].mxu0 %v2995
    %v3167 = vpop.f32.mrb[0].mxu0
    %v3168 = vadd.f32 0.0, %v3167
    %v3169 = vpop.f32.mrb[0].mxu0
    %v3170 = vadd.f32 0.0, %v3169
    %3171 = vdwg.mxu0
    %v3172 = vadd.f32 %v3026, %v3097
    %v3173 = vadd.f32 %v3027, %v3099
    %v3174 = vadd.f32 %v3028, %v3168
    %v3175 = vadd.f32 %v3029, %v3170
    %s3176 = smul.addr %s1238, 8
    %s3177 = scalar_lea.vmem [#allocation3], %s3176
    %v3178 = vld [vmem:[%s3177] sm:$0xff]
    %v3179 = vld [vmem:[%s3177 + $0x8] sm:$0xff]
    %v3180 = vld [vmem:[%s3177 + $0x10] sm:$0xff]
    %v3181 = vld [vmem:[%s3177 + $0x18] sm:$0xff]
    %3182 = vmatprep.subr.mxu0 %v812
    %3183 = vmatpush1.msra.mxu0 %v811
    %3184 = vmatprep.subr.mxu0 %v816
    %3185 = vmatpush1.msra.mxu0 %v815
    %3186 = vmatprep.subr.mxu0 %v820
    %3187 = vmatpush1.msra.mxu0 %v819
    %3188 = vmatprep.subr.mxu0 %v824
    %3189 = vmatpush1.msra.mxu0 %v823
    %3190 = vmatprep.subr.mxu0 %v828
    %3191 = vmatpush1.msra.mxu0 %v827
    %3192 = vmatprep.subr.mxu0 %v832
    %3193 = vmatpush1.msra.mxu0 %v831
    %3194 = vmatprep.subr.mxu0 %v836
    %3195 = vmatpush1.msra.mxu0 %v835
    %3196 = vmatprep.subr.mxu0 %v840
    %3197 = vmatpush1.msra.mxu0 %v839
    %3198 = vmatprep.subr.mxu0 %v844
    %3199 = vmatpush1.msra.mxu0 %v843
    %3200 = vmatprep.subr.mxu0 %v848
    %3201 = vmatpush1.msra.mxu0 %v847
    %3202 = vmatprep.subr.mxu0 %v852
    %3203 = vmatpush1.msra.mxu0 %v851
    %3204 = vmatprep.subr.mxu0 %v856
    %3205 = vmatpush1.msra.mxu0 %v855
    %3206 = vmatprep.subr.mxu0 %v860
    %3207 = vmatpush1.msra.mxu0 %v859
    %3208 = vmatprep.subr.mxu0 %v864
    %3209 = vmatpush1.msra.mxu0 %v863
    %3210 = vmatprep.subr.mxu0 %v868
    %3211 = vmatpush1.msra.mxu0 %v867
    %3212 = vmatprep.subr.mxu0 %v872
    %3213 = vmatpush1.msra.mxu0 %v871
    %3214 = vmatprep.subr.mxu0 0.0
    %3215 = vmatpush1.msra.mxu0 0.0
    %3216 = vmatprep.subr.mxu0 0.0
    %3217 = vmatpush1.msra.mxu0 0.0
    %3218 = vmatprep.subr.mxu0 0.0
    %3219 = vmatpush1.msra.mxu0 0.0
    %3220 = vmatprep.subr.mxu0 0.0
    %3221 = vmatpush1.msra.mxu0 0.0
    %3222 = vmatprep.subr.mxu0 0.0
    %3223 = vmatpush1.msra.mxu0 0.0
    %3224 = vmatprep.subr.mxu0 0.0
    %3225 = vmatpush1.msra.mxu0 0.0
    %3226 = vmatprep.subr.mxu0 0.0
    %3227 = vmatpush1.msra.mxu0 0.0
    %3228 = vmatprep.subr.mxu0 0.0
    %3229 = vmatpush1.msra.mxu0 0.0
    %3230 = vmatprep.subr.mxu0 0.0
    %3231 = vmatpush1.msra.mxu0 0.0
    %3232 = vmatprep.subr.mxu0 0.0
    %3233 = vmatpush1.msra.mxu0 0.0
    %3234 = vmatprep.subr.mxu0 0.0
    %3235 = vmatpush1.msra.mxu0 0.0
    %3236 = vmatprep.subr.mxu0 0.0
    %3237 = vmatpush1.msra.mxu0 0.0
    %3238 = vmatprep.subr.mxu0 0.0
    %3239 = vmatpush1.msra.mxu0 0.0
    %3240 = vmatprep.subr.mxu0 0.0
    %3241 = vmatpush1.msra.mxu0 0.0
    %3242 = vmatprep.subr.mxu0 0.0
    %3243 = vmatpush1.msra.mxu0 0.0
    %3244 = vmatprep.subr.mxu0 0.0
    %3245 = vmatpush1.msra.mxu0 0.0
    %3246 = vmatprep.mubr.f32.mxu0 0.0
    %3247 = vmatmul.mubr.f32.gmra.mrb[0].mxu0 %v3019
    %v3248 = vpop.f32.mrb[0].mxu0
    %v3249 = vadd.f32 0.0, %v3248
    %v3250 = vpop.f32.mrb[0].mxu0
    %v3251 = vadd.f32 0.0, %v3250
    %3252 = vdwg.mxu0
    %3253 = vmatprep.subr.mxu0 %v814
    %3254 = vmatpush1.msra.mxu0 %v813
    %3255 = vmatprep.subr.mxu0 %v818
    %3256 = vmatpush1.msra.mxu0 %v817
    %3257 = vmatprep.subr.mxu0 %v822
    %3258 = vmatpush1.msra.mxu0 %v821
    %3259 = vmatprep.subr.mxu0 %v826
    %3260 = vmatpush1.msra.mxu0 %v825
    %3261 = vmatprep.subr.mxu0 %v830
    %3262 = vmatpush1.msra.mxu0 %v829
    %3263 = vmatprep.subr.mxu0 %v834
    %3264 = vmatpush1.msra.mxu0 %v833
    %3265 = vmatprep.subr.mxu0 %v838
    %3266 = vmatpush1.msra.mxu0 %v837
    %3267 = vmatprep.subr.mxu0 %v842
    %3268 = vmatpush1.msra.mxu0 %v841
    %3269 = vmatprep.subr.mxu0 %v846
    %3270 = vmatpush1.msra.mxu0 %v845
    %3271 = vmatprep.subr.mxu0 %v850
    %3272 = vmatpush1.msra.mxu0 %v849
    %3273 = vmatprep.subr.mxu0 %v854
    %3274 = vmatpush1.msra.mxu0 %v853
    %3275 = vmatprep.subr.mxu0 %v858
    %3276 = vmatpush1.msra.mxu0 %v857
    %3277 = vmatprep.subr.mxu0 %v862
    %3278 = vmatpush1.msra.mxu0 %v861
    %3279 = vmatprep.subr.mxu0 %v866
    %3280 = vmatpush1.msra.mxu0 %v865
    %3281 = vmatprep.subr.mxu0 %v870
    %3282 = vmatpush1.msra.mxu0 %v869
    %3283 = vmatprep.subr.mxu0 %v874
    %3284 = vmatpush1.msra.mxu0 %v873
    %3285 = vmatprep.subr.mxu0 0.0
    %3286 = vmatpush1.msra.mxu0 0.0
    %3287 = vmatprep.subr.mxu0 0.0
    %3288 = vmatpush1.msra.mxu0 0.0
    %3289 = vmatprep.subr.mxu0 0.0
    %3290 = vmatpush1.msra.mxu0 0.0
    %3291 = vmatprep.subr.mxu0 0.0
    %3292 = vmatpush1.msra.mxu0 0.0
    %3293 = vmatprep.subr.mxu0 0.0
    %3294 = vmatpush1.msra.mxu0 0.0
    %3295 = vmatprep.subr.mxu0 0.0
    %3296 = vmatpush1.msra.mxu0 0.0
    %3297 = vmatprep.subr.mxu0 0.0
    %3298 = vmatpush1.msra.mxu0 0.0
    %3299 = vmatprep.subr.mxu0 0.0
    %3300 = vmatpush1.msra.mxu0 0.0
    %3301 = vmatprep.subr.mxu0 0.0
    %3302 = vmatpush1.msra.mxu0 0.0
    %3303 = vmatprep.subr.mxu0 0.0
    %3304 = vmatpush1.msra.mxu0 0.0
    %3305 = vmatprep.subr.mxu0 0.0
    %3306 = vmatpush1.msra.mxu0 0.0
    %3307 = vmatprep.subr.mxu0 0.0
    %3308 = vmatpush1.msra.mxu0 0.0
    %3309 = vmatprep.subr.mxu0 0.0
    %3310 = vmatpush1.msra.mxu0 0.0
    %3311 = vmatprep.subr.mxu0 0.0
    %3312 = vmatpush1.msra.mxu0 0.0
    %3313 = vmatprep.subr.mxu0 0.0
    %3314 = vmatpush1.msra.mxu0 0.0
    %3315 = vmatprep.subr.mxu0 0.0
    %3316 = vmatpush1.msra.mxu0 0.0
    %3317 = vmatprep.mubr.f32.mxu0 0.0
    %3318 = vmatmul.mubr.f32.gmra.mrb[0].mxu0 %v3019
    %v3319 = vpop.f32.mrb[0].mxu0
    %v3320 = vadd.f32 0.0, %v3319
    %v3321 = vpop.f32.mrb[0].mxu0
    %v3322 = vadd.f32 0.0, %v3321
    %3323 = vdwg.mxu0
    %v3324 = vadd.f32 %v3178, %v3249
    %v3325 = vadd.f32 %v3179, %v3251
    %v3326 = vadd.f32 %v3180, %v3320
    %v3327 = vadd.f32 %v3181, %v3322
    %v3328 = vxor.u32 %v3172, 2147483648
    %v3329 = vxor.u32 %v3173, 2147483648
    %v3330 = vxor.u32 %v3174, 2147483648
    %v3331 = vmul.f32 %v3328, 1.442695
    %v3332 = vpow.pop %v3331
    %v3333 = vmul.f32 %v3329, 1.442695
    %v3334 = vpow.pop %v3333
    %v3335 = vmul.f32 %v3330, 1.442695
    %v3336 = vpow.pop %v3335
    %v3337 = vadd.f32 %v3332, 1.0
    %v3338 = vadd.f32 %v3334, 1.0
    %v3339 = vadd.f32 %v3336, 1.0
    %v3340 = vrcp.pop %v3337
    %v3341 = vmul.f32 1.0, %v3340
    %v3342 = vrcp.pop %v3338
    %v3343 = vmul.f32 1.0, %v3342
    %v3344 = vrcp.pop %v3339
    %v3345 = vmul.f32 1.0, %v3344
    %v3346 = vtanh.pop %v3175
    %v3347 = vmul.f32 %v3343, %v2993
    %v3348 = vmul.f32 %v3341, %v3346
    %v3349 = vadd.f32 %v3347, %v3348
    %v3350 = vtanh.pop %v3349
    %v3351 = vmul.f32 %v3345, %v3350
    %v3352 = vxor.u32 %v3324, 2147483648
    %v3353 = vxor.u32 %v3325, 2147483648
    %v3354 = vxor.u32 %v3326, 2147483648
    %v3355 = vmul.f32 %v3352, 1.442695
    %v3356 = vpow.pop %v3355
    %v3357 = vmul.f32 %v3353, 1.442695
    %v3358 = vpow.pop %v3357
    %v3359 = vmul.f32 %v3354, 1.442695
    %v3360 = vpow.pop %v3359
    %v3361 = vadd.f32 %v3356, 1.0
    %v3362 = vadd.f32 %v3358, 1.0
    %v3363 = vadd.f32 %v3360, 1.0
    %v3364 = vrcp.pop %v3361
    %v3365 = vmul.f32 1.0, %v3364
    %v3366 = vrcp.pop %v3362
    %v3367 = vmul.f32 1.0, %v3366
    %v3368 = vrcp.pop %v3363
    %v3369 = vmul.f32 1.0, %v3368
    %v3370 = vtanh.pop %v3327
    %v3371 = vmul.f32 %v3367, %v3017
    %v3372 = vmul.f32 %v3365, %v3370
    %v3373 = vadd.f32 %v3371, %v3372
    %v3374 = vtanh.pop %v3373
    %v3375 = vmul.f32 %v3369, %v3374
    %s3376 = scalar_lea.vmem [#allocation9], 48
    %3377 = vst [vmem:[%s3376] sm:$0xff] %v3351
    %s3378 = scalar_lea.vmem [#allocation10], 8
    %3379 = vst [vmem:[%s3378] sm:$0xff] %v3375
    %s3380 = smul.addr %s1034, 8
    %s3381 = scalar_lea.vmem [#allocation2], %s3380
    %v3382 = vld [vmem:[%s3381] sm:$0xff]
    %v3383 = vld [vmem:[%s3381 + $0x8] sm:$0xff]
    %v3384 = vld [vmem:[%s3381 + $0x10] sm:$0xff]
    %v3385 = vld [vmem:[%s3381 + $0x18] sm:$0xff]
    %3386 = vmatprep.subr.mxu0 %v747
    %3387 = vmatpush1.msra.mxu0 %v746
    %3388 = vmatprep.subr.mxu0 %v751
    %3389 = vmatpush1.msra.mxu0 %v750
    %3390 = vmatprep.subr.mxu0 %v755
    %3391 = vmatpush1.msra.mxu0 %v754
    %3392 = vmatprep.subr.mxu0 %v759
    %3393 = vmatpush1.msra.mxu0 %v758
    %3394 = vmatprep.subr.mxu0 %v763
    %3395 = vmatpush1.msra.mxu0 %v762
    %3396 = vmatprep.subr.mxu0 %v767
    %3397 = vmatpush1.msra.mxu0 %v766
    %3398 = vmatprep.subr.mxu0 %v771
    %3399 = vmatpush1.msra.mxu0 %v770
    %3400 = vmatprep.subr.mxu0 %v775
    %3401 = vmatpush1.msra.mxu0 %v774
    %3402 = vmatprep.subr.mxu0 %v779
    %3403 = vmatpush1.msra.mxu0 %v778
    %3404 = vmatprep.subr.mxu0 %v783
    %3405 = vmatpush1.msra.mxu0 %v782
    %3406 = vmatprep.subr.mxu0 %v787
    %3407 = vmatpush1.msra.mxu0 %v786
    %3408 = vmatprep.subr.mxu0 %v791
    %3409 = vmatpush1.msra.mxu0 %v790
    %3410 = vmatprep.subr.mxu0 %v795
    %3411 = vmatpush1.msra.mxu0 %v794
    %3412 = vmatprep.subr.mxu0 %v799
    %3413 = vmatpush1.msra.mxu0 %v798
    %3414 = vmatprep.subr.mxu0 %v803
    %3415 = vmatpush1.msra.mxu0 %v802
    %3416 = vmatprep.subr.mxu0 %v807
    %3417 = vmatpush1.msra.mxu0 %v806
    %3418 = vmatprep.subr.mxu0 0.0
    %3419 = vmatpush1.msra.mxu0 0.0
    %3420 = vmatprep.subr.mxu0 0.0
    %3421 = vmatpush1.msra.mxu0 0.0
    %3422 = vmatprep.subr.mxu0 0.0
    %3423 = vmatpush1.msra.mxu0 0.0
    %3424 = vmatprep.subr.mxu0 0.0
    %3425 = vmatpush1.msra.mxu0 0.0
    %3426 = vmatprep.subr.mxu0 0.0
    %3427 = vmatpush1.msra.mxu0 0.0
    %3428 = vmatprep.subr.mxu0 0.0
    %3429 = vmatpush1.msra.mxu0 0.0
    %3430 = vmatprep.subr.mxu0 0.0
    %3431 = vmatpush1.msra.mxu0 0.0
    %3432 = vmatprep.subr.mxu0 0.0
    %3433 = vmatpush1.msra.mxu0 0.0
    %3434 = vmatprep.subr.mxu0 0.0
    %3435 = vmatpush1.msra.mxu0 0.0
    %3436 = vmatprep.subr.mxu0 0.0
    %3437 = vmatpush1.msra.mxu0 0.0
    %3438 = vmatprep.subr.mxu0 0.0
    %3439 = vmatpush1.msra.mxu0 0.0
    %3440 = vmatprep.subr.mxu0 0.0
    %3441 = vmatpush1.msra.mxu0 0.0
    %3442 = vmatprep.subr.mxu0 0.0
    %3443 = vmatpush1.msra.mxu0 0.0
    %3444 = vmatprep.subr.mxu0 0.0
    %3445 = vmatpush1.msra.mxu0 0.0
    %3446 = vmatprep.subr.mxu0 0.0
    %3447 = vmatpush1.msra.mxu0 0.0
    %3448 = vmatprep.subr.mxu0 0.0
    %3449 = vmatpush1.msra.mxu0 0.0
    %3450 = vmatprep.mubr.f32.mxu0 0.0
    %3451 = vmatmul.mubr.f32.gmra.mrb[0].mxu0 %v3351
    %v3452 = vpop.f32.mrb[0].mxu0
    %v3453 = vadd.f32 0.0, %v3452
    %v3454 = vpop.f32.mrb[0].mxu0
    %v3455 = vadd.f32 0.0, %v3454
    %3456 = vdwg.mxu0
    %3457 = vmatprep.subr.mxu0 %v749
    %3458 = vmatpush1.msra.mxu0 %v748
    %3459 = vmatprep.subr.mxu0 %v753
    %3460 = vmatpush1.msra.mxu0 %v752
    %3461 = vmatprep.subr.mxu0 %v757
    %3462 = vmatpush1.msra.mxu0 %v756
    %3463 = vmatprep.subr.mxu0 %v761
    %3464 = vmatpush1.msra.mxu0 %v760
    %3465 = vmatprep.subr.mxu0 %v765
    %3466 = vmatpush1.msra.mxu0 %v764
    %3467 = vmatprep.subr.mxu0 %v769
    %3468 = vmatpush1.msra.mxu0 %v768
    %3469 = vmatprep.subr.mxu0 %v773
    %3470 = vmatpush1.msra.mxu0 %v772
    %3471 = vmatprep.subr.mxu0 %v777
    %3472 = vmatpush1.msra.mxu0 %v776
    %3473 = vmatprep.subr.mxu0 %v781
    %3474 = vmatpush1.msra.mxu0 %v780
    %3475 = vmatprep.subr.mxu0 %v785
    %3476 = vmatpush1.msra.mxu0 %v784
    %3477 = vmatprep.subr.mxu0 %v789
    %3478 = vmatpush1.msra.mxu0 %v788
    %3479 = vmatprep.subr.mxu0 %v793
    %3480 = vmatpush1.msra.mxu0 %v792
    %3481 = vmatprep.subr.mxu0 %v797
    %3482 = vmatpush1.msra.mxu0 %v796
    %3483 = vmatprep.subr.mxu0 %v801
    %3484 = vmatpush1.msra.mxu0 %v800
    %3485 = vmatprep.subr.mxu0 %v805
    %3486 = vmatpush1.msra.mxu0 %v804
    %3487 = vmatprep.subr.mxu0 %v809
    %3488 = vmatpush1.msra.mxu0 %v808
    %3489 = vmatprep.subr.mxu0 0.0
    %3490 = vmatpush1.msra.mxu0 0.0
    %3491 = vmatprep.subr.mxu0 0.0
    %3492 = vmatpush1.msra.mxu0 0.0
    %3493 = vmatprep.subr.mxu0 0.0
    %3494 = vmatpush1.msra.mxu0 0.0
    %3495 = vmatprep.subr.mxu0 0.0
    %3496 = vmatpush1.msra.mxu0 0.0
    %3497 = vmatprep.subr.mxu0 0.0
    %3498 = vmatpush1.msra.mxu0 0.0
    %3499 = vmatprep.subr.mxu0 0.0
    %3500 = vmatpush1.msra.mxu0 0.0
    %3501 = vmatprep.subr.mxu0 0.0
    %3502 = vmatpush1.msra.mxu0 0.0
    %3503 = vmatprep.subr.mxu0 0.0
    %3504 = vmatpush1.msra.mxu0 0.0
    %3505 = vmatprep.subr.mxu0 0.0
    %3506 = vmatpush1.msra.mxu0 0.0
    %3507 = vmatprep.subr.mxu0 0.0
    %3508 = vmatpush1.msra.mxu0 0.0
    %3509 = vmatprep.subr.mxu0 0.0
    %3510 = vmatpush1.msra.mxu0 0.0
    %3511 = vmatprep.subr.mxu0 0.0
    %3512 = vmatpush1.msra.mxu0 0.0
    %3513 = vmatprep.subr.mxu0 0.0
    %3514 = vmatpush1.msra.mxu0 0.0
    %3515 = vmatprep.subr.mxu0 0.0
    %3516 = vmatpush1.msra.mxu0 0.0
    %3517 = vmatprep.subr.mxu0 0.0
    %3518 = vmatpush1.msra.mxu0 0.0
    %3519 = vmatprep.subr.mxu0 0.0
    %3520 = vmatpush1.msra.mxu0 0.0
    %3521 = vmatprep.mubr.f32.mxu0 0.0
    %3522 = vmatmul.mubr.f32.gmra.mrb[0].mxu0 %v3351
    %v3523 = vpop.f32.mrb[0].mxu0
    %v3524 = vadd.f32 0.0, %v3523
    %v3525 = vpop.f32.mrb[0].mxu0
    %v3526 = vadd.f32 0.0, %v3525
    %3527 = vdwg.mxu0
    %v3528 = vadd.f32 %v3382, %v3453
    %v3529 = vadd.f32 %v3383, %v3455
    %v3530 = vadd.f32 %v3384, %v3524
    %v3531 = vadd.f32 %v3385, %v3526
    %s3532 = smul.addr %s881, 8
    %s3533 = scalar_lea.vmem [#allocation3], %s3532
    %v3534 = vld [vmem:[%s3533] sm:$0xff]
    %v3535 = vld [vmem:[%s3533 + $0x8] sm:$0xff]
    %v3536 = vld [vmem:[%s3533 + $0x10] sm:$0xff]
    %v3537 = vld [vmem:[%s3533 + $0x18] sm:$0xff]
    %3538 = vmatprep.subr.mxu0 %v812
    %3539 = vmatpush1.msra.mxu0 %v811
    %3540 = vmatprep.subr.mxu0 %v816
    %3541 = vmatpush1.msra.mxu0 %v815
    %3542 = vmatprep.subr.mxu0 %v820
    %3543 = vmatpush1.msra.mxu0 %v819
    %3544 = vmatprep.subr.mxu0 %v824
    %3545 = vmatpush1.msra.mxu0 %v823
    %3546 = vmatprep.subr.mxu0 %v828
    %3547 = vmatpush1.msra.mxu0 %v827
    %3548 = vmatprep.subr.mxu0 %v832
    %3549 = vmatpush1.msra.mxu0 %v831
    %3550 = vmatprep.subr.mxu0 %v836
    %3551 = vmatpush1.msra.mxu0 %v835
    %3552 = vmatprep.subr.mxu0 %v840
    %3553 = vmatpush1.msra.mxu0 %v839
    %3554 = vmatprep.subr.mxu0 %v844
    %3555 = vmatpush1.msra.mxu0 %v843
    %3556 = vmatprep.subr.mxu0 %v848
    %3557 = vmatpush1.msra.mxu0 %v847
    %3558 = vmatprep.subr.mxu0 %v852
    %3559 = vmatpush1.msra.mxu0 %v851
    %3560 = vmatprep.subr.mxu0 %v856
    %3561 = vmatpush1.msra.mxu0 %v855
    %3562 = vmatprep.subr.mxu0 %v860
    %3563 = vmatpush1.msra.mxu0 %v859
    %3564 = vmatprep.subr.mxu0 %v864
    %3565 = vmatpush1.msra.mxu0 %v863
    %3566 = vmatprep.subr.mxu0 %v868
    %3567 = vmatpush1.msra.mxu0 %v867
    %3568 = vmatprep.subr.mxu0 %v872
    %3569 = vmatpush1.msra.mxu0 %v871
    %3570 = vmatprep.subr.mxu0 0.0
    %3571 = vmatpush1.msra.mxu0 0.0
    %3572 = vmatprep.subr.mxu0 0.0
    %3573 = vmatpush1.msra.mxu0 0.0
    %3574 = vmatprep.subr.mxu0 0.0
    %3575 = vmatpush1.msra.mxu0 0.0
    %3576 = vmatprep.subr.mxu0 0.0
    %3577 = vmatpush1.msra.mxu0 0.0
    %3578 = vmatprep.subr.mxu0 0.0
    %3579 = vmatpush1.msra.mxu0 0.0
    %3580 = vmatprep.subr.mxu0 0.0
    %3581 = vmatpush1.msra.mxu0 0.0
    %3582 = vmatprep.subr.mxu0 0.0
    %3583 = vmatpush1.msra.mxu0 0.0
    %3584 = vmatprep.subr.mxu0 0.0
    %3585 = vmatpush1.msra.mxu0 0.0
    %3586 = vmatprep.subr.mxu0 0.0
    %3587 = vmatpush1.msra.mxu0 0.0
    %3588 = vmatprep.subr.mxu0 0.0
    %3589 = vmatpush1.msra.mxu0 0.0
    %3590 = vmatprep.subr.mxu0 0.0
    %3591 = vmatpush1.msra.mxu0 0.0
    %3592 = vmatprep.subr.mxu0 0.0
    %3593 = vmatpush1.msra.mxu0 0.0
    %3594 = vmatprep.subr.mxu0 0.0
    %3595 = vmatpush1.msra.mxu0 0.0
    %3596 = vmatprep.subr.mxu0 0.0
    %3597 = vmatpush1.msra.mxu0 0.0
    %3598 = vmatprep.subr.mxu0 0.0
    %3599 = vmatpush1.msra.mxu0 0.0
    %3600 = vmatprep.subr.mxu0 0.0
    %3601 = vmatpush1.msra.mxu0 0.0
    %3602 = vmatprep.mubr.f32.mxu0 0.0
    %3603 = vmatmul.mubr.f32.gmra.mrb[0].mxu0 %v3375
    %v3604 = vpop.f32.mrb[0].mxu0
    %v3605 = vadd.f32 0.0, %v3604
    %v3606 = vpop.f32.mrb[0].mxu0
    %v3607 = vadd.f32 0.0, %v3606
    %3608 = vdwg.mxu0
    %3609 = vmatprep.subr.mxu0 %v814
    %3610 = vmatpush1.msra.mxu0 %v813
    %3611 = vmatprep.subr.mxu0 %v818
    %3612 = vmatpush1.msra.mxu0 %v817
    %3613 = vmatprep.subr.mxu0 %v822
    %3614 = vmatpush1.msra.mxu0 %v821
    %3615 = vmatprep.subr.mxu0 %v826
    %3616 = vmatpush1.msra.mxu0 %v825
    %3617 = vmatprep.subr.mxu0 %v830
    %3618 = vmatpush1.msra.mxu0 %v829
    %3619 = vmatprep.subr.mxu0 %v834
    %3620 = vmatpush1.msra.mxu0 %v833
    %3621 = vmatprep.subr.mxu0 %v838
    %3622 = vmatpush1.msra.mxu0 %v837
    %3623 = vmatprep.subr.mxu0 %v842
    %3624 = vmatpush1.msra.mxu0 %v841
    %3625 = vmatprep.subr.mxu0 %v846
    %3626 = vmatpush1.msra.mxu0 %v845
    %3627 = vmatprep.subr.mxu0 %v850
    %3628 = vmatpush1.msra.mxu0 %v849
    %3629 = vmatprep.subr.mxu0 %v854
    %3630 = vmatpush1.msra.mxu0 %v853
    %3631 = vmatprep.subr.mxu0 %v858
    %3632 = vmatpush1.msra.mxu0 %v857
    %3633 = vmatprep.subr.mxu0 %v862
    %3634 = vmatpush1.msra.mxu0 %v861
    %3635 = vmatprep.subr.mxu0 %v866
    %3636 = vmatpush1.msra.mxu0 %v865
    %3637 = vmatprep.subr.mxu0 %v870
    %3638 = vmatpush1.msra.mxu0 %v869
    %3639 = vmatprep.subr.mxu0 %v874
    %3640 = vmatpush1.msra.mxu0 %v873
    %3641 = vmatprep.subr.mxu0 0.0
    %3642 = vmatpush1.msra.mxu0 0.0
    %3643 = vmatprep.subr.mxu0 0.0
    %3644 = vmatpush1.msra.mxu0 0.0
    %3645 = vmatprep.subr.mxu0 0.0
    %3646 = vmatpush1.msra.mxu0 0.0
    %3647 = vmatprep.subr.mxu0 0.0
    %3648 = vmatpush1.msra.mxu0 0.0
    %3649 = vmatprep.subr.mxu0 0.0
    %3650 = vmatpush1.msra.mxu0 0.0
    %3651 = vmatprep.subr.mxu0 0.0
    %3652 = vmatpush1.msra.mxu0 0.0
    %3653 = vmatprep.subr.mxu0 0.0
    %3654 = vmatpush1.msra.mxu0 0.0
    %3655 = vmatprep.subr.mxu0 0.0
    %3656 = vmatpush1.msra.mxu0 0.0
    %3657 = vmatprep.subr.mxu0 0.0
    %3658 = vmatpush1.msra.mxu0 0.0
    %3659 = vmatprep.subr.mxu0 0.0
    %3660 = vmatpush1.msra.mxu0 0.0
    %3661 = vmatprep.subr.mxu0 0.0
    %3662 = vmatpush1.msra.mxu0 0.0
    %3663 = vmatprep.subr.mxu0 0.0
    %3664 = vmatpush1.msra.mxu0 0.0
    %3665 = vmatprep.subr.mxu0 0.0
    %3666 = vmatpush1.msra.mxu0 0.0
    %3667 = vmatprep.subr.mxu0 0.0
    %3668 = vmatpush1.msra.mxu0 0.0
    %3669 = vmatprep.subr.mxu0 0.0
    %3670 = vmatpush1.msra.mxu0 0.0
    %3671 = vmatprep.subr.mxu0 0.0
    %3672 = vmatpush1.msra.mxu0 0.0
    %3673 = vmatprep.mubr.f32.mxu0 0.0
    %3674 = vmatmul.mubr.f32.gmra.mrb[0].mxu0 %v3375
    %v3675 = vpop.f32.mrb[0].mxu0
    %v3676 = vadd.f32 0.0, %v3675
    %v3677 = vpop.f32.mrb[0].mxu0
    %v3678 = vadd.f32 0.0, %v3677
    %3679 = vdwg.mxu0
    %v3680 = vadd.f32 %v3534, %v3605
    %v3681 = vadd.f32 %v3535, %v3607
    %v3682 = vadd.f32 %v3536, %v3676
    %v3683 = vadd.f32 %v3537, %v3678
    %v3684 = vxor.u32 %v3528, 2147483648
    %v3685 = vxor.u32 %v3529, 2147483648
    %v3686 = vxor.u32 %v3530, 2147483648
    %v3687 = vmul.f32 %v3684, 1.442695
    %v3688 = vpow.pop %v3687
    %v3689 = vmul.f32 %v3685, 1.442695
    %v3690 = vpow.pop %v3689
    %v3691 = vmul.f32 %v3686, 1.442695
    %v3692 = vpow.pop %v3691
    %v3693 = vadd.f32 %v3688, 1.0
    %v3694 = vadd.f32 %v3690, 1.0
    %v3695 = vadd.f32 %v3692, 1.0
    %v3696 = vrcp.pop %v3693
    %v3697 = vmul.f32 1.0, %v3696
    %v3698 = vrcp.pop %v3694
    %v3699 = vmul.f32 1.0, %v3698
    %v3700 = vrcp.pop %v3695
    %v3701 = vmul.f32 1.0, %v3700
    %v3702 = vtanh.pop %v3531
    %v3703 = vmul.f32 %v3699, %v3349
    %v3704 = vmul.f32 %v3697, %v3702
    %v3705 = vadd.f32 %v3703, %v3704
    %v3706 = vtanh.pop %v3705
    %v3707 = vmul.f32 %v3701, %v3706
    %v3708 = vxor.u32 %v3680, 2147483648
    %v3709 = vxor.u32 %v3681, 2147483648
    %v3710 = vxor.u32 %v3682, 2147483648
    %v3711 = vmul.f32 %v3708, 1.442695
    %v3712 = vpow.pop %v3711
    %v3713 = vmul.f32 %v3709, 1.442695
    %v3714 = vpow.pop %v3713
    %v3715 = vmul.f32 %v3710, 1.442695
    %v3716 = vpow.pop %v3715
    %v3717 = vadd.f32 %v3712, 1.0
    %v3718 = vadd.f32 %v3714, 1.0
    %v3719 = vadd.f32 %v3716, 1.0
    %v3720 = vrcp.pop %v3717
    %v3721 = vmul.f32 1.0, %v3720
    %v3722 = vrcp.pop %v3718
    %v3723 = vmul.f32 1.0, %v3722
    %v3724 = vrcp.pop %v3719
    %v3725 = vmul.f32 1.0, %v3724
    %v3726 = vtanh.pop %v3683
    %v3727 = vmul.f32 %v3723, %v3373
    %v3728 = vmul.f32 %v3721, %v3726
    %v3729 = vadd.f32 %v3727, %v3728
    %v3730 = vtanh.pop %v3729
    %v3731 = vmul.f32 %v3725, %v3730
    %s3732 = scalar_lea.vmem [#allocation9], 56
    %3733 = vst [vmem:[%s3732] sm:$0xff] %v3707
    %3734 = vst [vmem:[#allocation10] sm:$0xff] %v3731
    %3735 = vst [vmem:[#allocation12] sm:$0xff] %v3707
    %3736 = vst [vmem:[#allocation13] sm:$0xff] %v3705
    %3737 = vst [vmem:[%s877] sm:$0xff] %v3731
    %3738 = vst [vmem:[%s879] sm:$0xff] %v3729
    // Predicated region
    $region34: #{tpu_custom_call.1} parent=1 // pred_check
      _
    $region35: #{tpu_custom_call.1} parent=1 // pred_check_branch
      %3740 = sbr.rel (0) target = $region37
    $region36: #{tpu_custom_call.1} parent=1 // pred_region
      %s3742 = ssub.s32 1024, 1024
      %3743 = vsyncadd [#allocation6], %s3742
      %s3744 = sshll.u32 [#allocation9], 4
      %s3745 = int_to_ptr.vmem [resolvable:$true] %s3744
      %3750 = dma.vmem_to_hbm [thread:$0]  %s3745, 1024, %s5, [#allocation6], 128, 128, 8
    $region37: #{tpu_custom_call.1} parent=1 // pred_fallthru
      _
    // Predicated region
    $region38: #{tpu_custom_call.1} parent=1 // pred_check
      _
    $region39: #{tpu_custom_call.1} parent=1 // pred_check_branch
      %3752 = sbr.rel (0) target = $region41
    $region40: #{tpu_custom_call.1} parent=1 // pred_region
      %s3753 = ssub.s32 0, 0
      %s3754 = smul.u32 8, %s3753
      %s3756 = ssub.s32 1024, 1024
      %3757 = vsyncadd [#allocation11], %s3756
      %s3758 = smul.addr %s3754, 128
      %s3759 = scalar_lea.hbm %s6, %s3758
      %s3760 = sshll.u32 [#allocation10], 4
      %s3761 = int_to_ptr.vmem [resolvable:$true] %s3760
      %3766 = dma.vmem_to_hbm [thread:$0]  %s3761, 1024, %s3759, [#allocation11], 128, 128, 8
    $region41: #{tpu_custom_call.1} parent=1 // pred_fallthru
      _
    // Predicated region
    $region42: #{tpu_custom_call.1} parent=1 // pred_check
      _
    $region43: #{tpu_custom_call.1} parent=1 // pred_check_branch
      %3768 = sbr.rel (0) target = $region45
    $region44: #{tpu_custom_call.1} parent=1 // pred_region
      %s3770 = ssub.s32 256, 256
      %3771 = vsyncadd [#allocation11], %s3770
      %s3772 = sshll.u32 [#allocation12], 4
      %s3773 = int_to_ptr.vmem [resolvable:$true] %s3772
      %3778 = dma.vmem_to_hbm [thread:$0]  %s3773, 256, %s7, [#allocation11], 128, 128, 8
    $region45: #{tpu_custom_call.1} parent=1 // pred_fallthru
      _
    // Predicated region
    $region46: #{tpu_custom_call.1} parent=1 // pred_check
      _
    $region47: #{tpu_custom_call.1} parent=1 // pred_check_branch
      %3780 = sbr.rel (0) target = $region49
    $region48: #{tpu_custom_call.1} parent=1 // pred_region
      %s3782 = ssub.s32 256, 256
      %3783 = vsyncadd [#allocation14], %s3782
      %s3784 = sshll.u32 [#allocation13], 4
      %s3785 = int_to_ptr.vmem [resolvable:$true] %s3784
      %3790 = dma.vmem_to_hbm [thread:$0]  %s3785, 256, %s8, [#allocation14], 128, 128, 8
    $region49: #{tpu_custom_call.1} parent=1 // pred_fallthru
      _
    // Predicated region
    $region50: #{tpu_custom_call.1} parent=1 // pred_check
      _
    $region51: #{tpu_custom_call.1} parent=1 // pred_check_branch
      %3792 = sbr.rel (0) target = $region53
    $region52: #{tpu_custom_call.1} parent=1 // pred_region
      %3793 = dma.done [#allocation6], 1024
    $region53: #{tpu_custom_call.1} parent=1 // pred_fallthru
      _
    // Predicated region
    $region54: #{tpu_custom_call.1} parent=1 // pred_check
      _
    $region55: #{tpu_custom_call.1} parent=1 // pred_check_branch
      %3795 = sbr.rel (0) target = $region57
    $region56: #{tpu_custom_call.1} parent=1 // pred_region
      %3796 = dma.done [#allocation11], 1024
    $region57: #{tpu_custom_call.1} parent=1 // pred_fallthru
      _
    // Predicated region
    $region58: #{tpu_custom_call.1} parent=1 // pred_check
      _
    $region59: #{tpu_custom_call.1} parent=1 // pred_check_branch
      %3798 = sbr.rel (0) target = $region61
    $region60: #{tpu_custom_call.1} parent=1 // pred_region
      %3799 = dma.done [#allocation11], 256
    $region61: #{tpu_custom_call.1} parent=1 // pred_fallthru
      _
    // Predicated region
    $region62: #{tpu_custom_call.1} parent=1 // pred_check
      _
    $region63: #{tpu_custom_call.1} parent=1 // pred_check_branch
      %3801 = sbr.rel (0) target = $region65
    $region64: #{tpu_custom_call.1} parent=1 // pred_region
      %3802 = dma.done [#allocation14], 256
    $region65: #{tpu_custom_call.1} parent=1 // pred_fallthru
      _
    %3803 = vsyncpa [#allocation5], 1
    %3804 = vsyncpa [#allocation8], 1
    %3805 = vsyncpa [#allocation6], 1
    %3806 = vsyncpa [#allocation11], 1
    %3807 = vsyncpa [#allocation14], 1

</llo_original>
